<compile_context>
chip_gen: v6e
topology: v6e:2x2x1
jax: 0.10.0
libtpu: 0.0.40
codegen_flags: <defaults>
</compile_context>

<pallas_src>
import functools

import jax
import jax.numpy as jnp
from jax.experimental import pallas as pl
from jax.experimental.pallas import tpu as pltpu

LATENT_DIM = 100
CHANNELS = 1
HEIGHT = 28
WIDTH = 28
BN_EPS = 0.8          # second positional arg of BatchNorm1d(out_feat, 0.8) is eps
LRELU_SLOPE = 0.2

# Hidden widths are fixed by the module.
_H1, _H2, _H3, _H4 = 128, 256, 512, 1024

# Static, 128-aligned lane offsets of the packed (1, F) parameter vector:
#   [ b1 | gamma2 | beta2 | gamma3 | beta3 | gamma4 | beta4 | b5(padded) ]
B1_OFF = 0
G2_OFF = B1_OFF + _H1
BE2_OFF = G2_OFF + _H2
G3_OFF = BE2_OFF + _H2
BE3_OFF = G3_OFF + _H3
G4_OFF = BE3_OFF + _H3
BE4_OFF = G4_OFF + _H4
B5_OFF = BE4_OFF + _H4


def _round_up(x, m):
    return ((x + m - 1) // m) * m


def _leaky_relu(x):
    # Valid for 0 < slope < 1: max(x, s*x) == LeakyReLU(x).
    return jnp.maximum(x, LRELU_SLOPE * x)


def generator_kernel(z_ref, w1_ref, w2_ref, w3_ref, w4_hbm, w5_hbm, vec_ref,
                     out_ref, w4_buf, w5_buf, dma_sem):
    """Whole forward fused; w4/w5 are manually prefetched from HBM."""
    # Kick off the two big weight DMAs immediately so they overlap the first
    # three layers' compute (they are ~85% of all weight bytes).
    cp4 = pltpu.make_async_copy(w4_hbm, w4_buf, dma_sem.at[0])
    cp5 = pltpu.make_async_copy(w5_hbm, w5_buf, dma_sem.at[1])
    cp4.start()
    cp5.start()

    def linear(x, w, b=None):
        # bf16 x bf16 operands, f32 accumulation on the MXU.
        acc = jnp.dot(x.astype(jnp.bfloat16), w,
                      preferred_element_type=jnp.float32)
        if b is not None:
            acc = acc + b
        return acc

    def batchnorm_lrelu(x, g, be):
        # Training-mode BatchNorm1d, biased batch variance, single pass:
        # var = E[x^2] - mean^2, clamped at 0 so rsqrt never sees a negative.
        mean = jnp.mean(x, axis=0, keepdims=True)
        mean_sq = jnp.mean(x * x, axis=0, keepdims=True)
        var = jnp.maximum(mean_sq - mean * mean, 0.0)
        xn = (x - mean) * jax.lax.rsqrt(var + BN_EPS)
        return _leaky_relu(xn * g + be)

    # Static 128-aligned slices of the packed parameter vector (zero-cost views).
    b1 = vec_ref[:, B1_OFF:B1_OFF + _H1]
    g2 = vec_ref[:, G2_OFF:G2_OFF + _H2]
    be2 = vec_ref[:, BE2_OFF:BE2_OFF + _H2]
    g3 = vec_ref[:, G3_OFF:G3_OFF + _H3]
    be3 = vec_ref[:, BE3_OFF:BE3_OFF + _H3]
    g4 = vec_ref[:, G4_OFF:G4_OFF + _H4]
    be4 = vec_ref[:, BE4_OFF:BE4_OFF + _H4]
    b5 = vec_ref[:, B5_OFF:]

    # block 1 (no BN): Linear + bias + LeakyReLU.
    h = _leaky_relu(linear(z_ref[...], w1_ref[...], b1))
    # blocks 2-4: bias dropped — exactly cancelled by BN mean subtraction.
    h = batchnorm_lrelu(linear(h, w2_ref[...]), g2, be2)
    h = batchnorm_lrelu(linear(h, w3_ref[...]), g3, be3)
    cp4.wait()
    h = batchnorm_lrelu(linear(h, w4_buf[...]), g4, be4)
    cp5.wait()
    # head: Linear + Tanh.  Padded head lanes (zero W columns / zero bias)
    # give tanh(0) = 0 and are sliced off in the wrapper.
    out_ref[...] = jnp.tanh(linear(h, w5_buf[...], b5))


def init_params(key, latent_dim=LATENT_DIM, channels=CHANNELS,
                height=HEIGHT, width=WIDTH):
    """Deterministic synthetic parameters, PyTorch-Linear-style uniform init.

    Returns (w1, w2, w3, w4, w5, packed_vec):
      * weights bf16, w1 zero-row-padded on the latent axis to 128,
        w5/b5 zero-column-padded to the next multiple of 128 lanes,
      * packed_vec is the f32 concat [b1|g2|be2|g3|be3|g4|be4|b5_pad].
    b2/b3/b4 are omitted (exactly cancelled by training-mode BatchNorm).
    """
    out_dim = channels * height * width
    dims = [latent_dim, _H1, _H2, _H3, _H4, out_dim]
    latent_pad = _round_up(latent_dim, 128)
    out_pad = _round_up(out_dim, 128)

    keys = jax.random.split(key, len(dims) - 1)
    ws, b1, b5 = [], None, None
    for i, (fan_in, fan_out) in enumerate(zip(dims[:-1], dims[1:])):
        kw, kb = jax.random.split(keys[i])
        bound = 1.0 / (fan_in ** 0.5)
        w = jax.random.uniform(kw, (fan_in, fan_out), jnp.float32, -bound, bound)
        b = jax.random.uniform(kb, (1, fan_out), jnp.float32, -bound, bound)
        if i == 0 and latent_pad != fan_in:                 # pad K of first matmul
            w = jnp.pad(w, ((0, latent_pad - fan_in), (0, 0)))
        if i == len(dims) - 2 and out_pad != fan_out:       # pad N of head matmul
            w = jnp.pad(w, ((0, 0), (0, out_pad - fan_out)))
            b = jnp.pad(b, ((0, 0), (0, out_pad - fan_out)))
        ws.append(w.astype(jnp.bfloat16))
        if i == 0:
            b1 = b
        if i == len(dims) - 2:
            b5 = b

    # BatchNorm affine params for blocks 2-4 (gamma=1, beta=0 at init).
    g2, be2 = jnp.ones((1, _H2), jnp.float32), jnp.zeros((1, _H2), jnp.float32)
    g3, be3 = jnp.ones((1, _H3), jnp.float32), jnp.zeros((1, _H3), jnp.float32)
    g4, be4 = jnp.ones((1, _H4), jnp.float32), jnp.zeros((1, _H4), jnp.float32)

    packed = jnp.concatenate([b1, g2, be2, g3, be3, g4, be4, b5], axis=1)
    return (ws[0], ws[1], ws[2], ws[3], ws[4], packed)


@functools.partial(jax.jit, static_argnames=("channels", "height", "width"))
def generator_forward(z, params, *, channels=CHANNELS, height=HEIGHT, width=WIDTH):
    w1, w2, w3, w4, w5, packed = params
    batch, latent = z.shape
    out_dim = channels * height * width
    latent_pad = w1.shape[0]     # padded K of the first linear (128)
    out_pad = w5.shape[1]        # padded N of the head (896 for 784)

    if latent_pad != latent:     # zero-pad latent 100 -> 128 (lane-dense K)
        z = jnp.pad(z, ((0, 0), (0, latent_pad - latent)))

    vmem = pl.BlockSpec(memory_space=pltpu.MemorySpace.VMEM)
    flat = pl.pallas_call(
        generator_kernel,
        out_shape=jax.ShapeDtypeStruct((batch, out_pad), jnp.float32),
        in_specs=[
            vmem,                                # z
            vmem,                                # w1
            vmem,                                # w2
            vmem,                                # w3
            pl.BlockSpec(memory_space=pl.ANY),   # w4 (stays in HBM, manual DMA)
            pl.BlockSpec(memory_space=pl.ANY),   # w5 (stays in HBM, manual DMA)
            vmem,                                # packed small params
        ],
        out_specs=vmem,
        scratch_shapes=[
            pltpu.VMEM(w4.shape, jnp.bfloat16),  # w4 prefetch buffer (~1.0 MiB)
            pltpu.VMEM(w5.shape, jnp.bfloat16),  # w5 prefetch buffer (~1.8 MiB)
            pltpu.SemaphoreType.DMA((2,)),
        ],
        compiler_params=pltpu.CompilerParams(vmem_limit_bytes=32 << 20),
    )(z, w1, w2, w3, w4, w5, packed)

    # Matches PyTorch: img.view(B, *self.img_shape) with img_shape = (C, W, H).
    return flat[:, :out_dim].reshape(batch, channels, width, height)


if __name__ == "__main__":
    key = jax.random.PRNGKey(0)
    k_params, k_z = jax.random.split(key)

    params = init_params(k_params)
    batch = 8  # small batch, aligned to the 8-row f32 sublane tile
    z = jax.random.normal(k_z, (batch, LATENT_DIM), jnp.float32)

    img = generator_forward(z, params)
    img = jax.block_until_ready(img)

    assert img.shape == (batch, CHANNELS, WIDTH, HEIGHT), img.shape
    assert bool(jnp.all(jnp.isfinite(img)))
    assert bool(jnp.all(jnp.abs(img) <= 1.0 + 1e-6))  # tanh range
    print("KERNEL_OK")
</pallas_src>

<mosaic_0001>
module attributes {stable_mosaic.version = 11 : i64} {
  func.func @generator_kernel(%arg0: memref<8x128xf32, #tpu.memory_space<vmem>>, %arg1: memref<128x128xbf16, #tpu.memory_space<vmem>>, %arg2: memref<128x256xbf16, #tpu.memory_space<vmem>>, %arg3: memref<256x512xbf16, #tpu.memory_space<vmem>>, %arg4: memref<512x1024xbf16, #tpu.memory_space<any>>, %arg5: memref<1024x896xbf16, #tpu.memory_space<any>>, %arg6: memref<1x4608xf32, #tpu.memory_space<vmem>>, %arg7: memref<8x896xf32, #tpu.memory_space<vmem>>, %arg8: memref<512x1024xbf16, #tpu.memory_space<vmem>>, %arg9: memref<1024x896xbf16, #tpu.memory_space<vmem>>, %arg10: memref<2x!tpu.dma_semaphore, #tpu.memory_space<semaphore_mem>>) attributes {dimension_semantics = [], scalar_prefetch = 0 : i64, scratch_operands = 3 : i64, tpu.core_type = #tpu.core_type<tc>} {
    %c0_i32 = arith.constant 0 : i32
    %0 = tpu.memref_slice %arg10[%c0_i32] : memref<2x!tpu.dma_semaphore, #tpu.memory_space<semaphore_mem>> -> memref<1x!tpu.dma_semaphore, #tpu.memory_space<semaphore_mem>>
    %1 = tpu.memref_squeeze %0 : memref<1x!tpu.dma_semaphore, #tpu.memory_space<semaphore_mem>> -> memref<!tpu.dma_semaphore, #tpu.memory_space<semaphore_mem>>
    tpu.enqueue_dma source(%arg4 : memref<512x1024xbf16, #tpu.memory_space<any>>) target(%arg8 : memref<512x1024xbf16, #tpu.memory_space<vmem>>) target_semaphore(%1 : memref<!tpu.dma_semaphore, #tpu.memory_space<semaphore_mem>>)
    %c1_i32 = arith.constant 1 : i32
    %2 = tpu.memref_slice %arg10[%c1_i32] : memref<2x!tpu.dma_semaphore, #tpu.memory_space<semaphore_mem>> -> memref<1x!tpu.dma_semaphore, #tpu.memory_space<semaphore_mem>>
    %3 = tpu.memref_squeeze %2 : memref<1x!tpu.dma_semaphore, #tpu.memory_space<semaphore_mem>> -> memref<!tpu.dma_semaphore, #tpu.memory_space<semaphore_mem>>
    tpu.enqueue_dma source(%arg5 : memref<1024x896xbf16, #tpu.memory_space<any>>) target(%arg9 : memref<1024x896xbf16, #tpu.memory_space<vmem>>) target_semaphore(%3 : memref<!tpu.dma_semaphore, #tpu.memory_space<semaphore_mem>>)
    %c0 = arith.constant 0 : index
    %c0_0 = arith.constant 0 : index
    %4 = vector.load %arg6[%c0, %c0_0] : memref<1x4608xf32, #tpu.memory_space<vmem>>, vector<1x128xf32>
    %c0_1 = arith.constant 0 : index
    %c128 = arith.constant 128 : index
    %5 = vector.load %arg6[%c0_1, %c128] : memref<1x4608xf32, #tpu.memory_space<vmem>>, vector<1x256xf32>
    %c0_2 = arith.constant 0 : index
    %c384 = arith.constant 384 : index
    %6 = vector.load %arg6[%c0_2, %c384] : memref<1x4608xf32, #tpu.memory_space<vmem>>, vector<1x256xf32>
    %c0_3 = arith.constant 0 : index
    %c640 = arith.constant 640 : index
    %7 = vector.load %arg6[%c0_3, %c640] : memref<1x4608xf32, #tpu.memory_space<vmem>>, vector<1x512xf32>
    %c0_4 = arith.constant 0 : index
    %c1152 = arith.constant 1152 : index
    %8 = vector.load %arg6[%c0_4, %c1152] : memref<1x4608xf32, #tpu.memory_space<vmem>>, vector<1x512xf32>
    %c0_5 = arith.constant 0 : index
    %c1664 = arith.constant 1664 : index
    %9 = vector.load %arg6[%c0_5, %c1664] : memref<1x4608xf32, #tpu.memory_space<vmem>>, vector<1x1024xf32>
    %c0_6 = arith.constant 0 : index
    %c2688 = arith.constant 2688 : index
    %10 = vector.load %arg6[%c0_6, %c2688] : memref<1x4608xf32, #tpu.memory_space<vmem>>, vector<1x1024xf32>
    %c0_7 = arith.constant 0 : index
    %c3712 = arith.constant 3712 : index
    %11 = vector.load %arg6[%c0_7, %c3712] : memref<1x4608xf32, #tpu.memory_space<vmem>>, vector<1x896xf32>
    %c0_8 = arith.constant 0 : index
    %c0_9 = arith.constant 0 : index
    %12 = vector.load %arg0[%c0_8, %c0_9] : memref<8x128xf32, #tpu.memory_space<vmem>>, vector<8x128xf32>
    %c0_10 = arith.constant 0 : index
    %c0_11 = arith.constant 0 : index
    %13 = vector.load %arg1[%c0_10, %c0_11] : memref<128x128xbf16, #tpu.memory_space<vmem>>, vector<128x128xbf16>
    %14 = arith.truncf %12 : vector<8x128xf32> to vector<8x128xbf16>
    %cst = arith.constant dense<0.000000e+00> : vector<8x128xf32>
    %15 = tpu.matmul %14, %13, %cst {dimension_numbers = #tpu.dot_dimension_numbers<[1], [0], [0], [1], [0, 0, 1, 1], [], []>} : vector<8x128xbf16>, vector<128x128xbf16>, vector<8x128xf32> -> vector<8x128xf32>
    %16 = vector.broadcast %4 : vector<1x128xf32> to vector<8x128xf32>
    %17 = arith.addf %15, %16 : vector<8x128xf32>
    %cst_12 = arith.constant 2.000000e-01 : f32
    %18 = vector.broadcast %cst_12 : f32 to vector<8x128xf32>
    %19 = arith.mulf %18, %17 : vector<8x128xf32>
    %20 = arith.maximumf %17, %19 : vector<8x128xf32>
    %c0_13 = arith.constant 0 : index
    %c0_14 = arith.constant 0 : index
    %21 = vector.load %arg2[%c0_13, %c0_14] : memref<128x256xbf16, #tpu.memory_space<vmem>>, vector<128x256xbf16>
    %22 = arith.truncf %20 : vector<8x128xf32> to vector<8x128xbf16>
    %cst_15 = arith.constant dense<0.000000e+00> : vector<8x256xf32>
    %23 = tpu.matmul %22, %21, %cst_15 {dimension_numbers = #tpu.dot_dimension_numbers<[1], [0], [0], [1], [0, 0, 1, 1], [], []>} : vector<8x128xbf16>, vector<128x256xbf16>, vector<8x256xf32> -> vector<8x256xf32>
    %cst_16 = arith.constant dense<0.000000e+00> : vector<256xf32>
    %24 = vector.multi_reduction <add>, %23, %cst_16 [0] : vector<8x256xf32> to vector<256xf32>
    %25 = vector.shape_cast %24 : vector<256xf32> to vector<1x256xf32>
    %cst_17 = arith.constant 8.000000e+00 : f32
    %26 = vector.broadcast %cst_17 : f32 to vector<1x256xf32>
    %27 = arith.divf %25, %26 : vector<1x256xf32>
    %28 = arith.mulf %23, %23 : vector<8x256xf32>
    %cst_18 = arith.constant dense<0.000000e+00> : vector<256xf32>
    %29 = vector.multi_reduction <add>, %28, %cst_18 [0] : vector<8x256xf32> to vector<256xf32>
    %30 = vector.shape_cast %29 : vector<256xf32> to vector<1x256xf32>
    %cst_19 = arith.constant 8.000000e+00 : f32
    %31 = vector.broadcast %cst_19 : f32 to vector<1x256xf32>
    %32 = arith.divf %30, %31 : vector<1x256xf32>
    %33 = arith.mulf %27, %27 : vector<1x256xf32>
    %34 = arith.subf %32, %33 : vector<1x256xf32>
    %cst_20 = arith.constant 0.000000e+00 : f32
    %35 = vector.broadcast %cst_20 : f32 to vector<1x256xf32>
    %36 = arith.maximumf %34, %35 : vector<1x256xf32>
    %37 = vector.broadcast %27 : vector<1x256xf32> to vector<8x256xf32>
    %38 = arith.subf %23, %37 : vector<8x256xf32>
    %cst_21 = arith.constant 8.000000e-01 : f32
    %39 = vector.broadcast %cst_21 : f32 to vector<1x256xf32>
    %40 = arith.addf %36, %39 : vector<1x256xf32>
    %41 = math.rsqrt %40 : vector<1x256xf32>
    %42 = vector.broadcast %41 : vector<1x256xf32> to vector<8x256xf32>
    %43 = arith.mulf %38, %42 : vector<8x256xf32>
    %44 = vector.broadcast %5 : vector<1x256xf32> to vector<8x256xf32>
    %45 = arith.mulf %43, %44 : vector<8x256xf32>
    %46 = vector.broadcast %6 : vector<1x256xf32> to vector<8x256xf32>
    %47 = arith.addf %45, %46 : vector<8x256xf32>
    %cst_22 = arith.constant 2.000000e-01 : f32
    %48 = vector.broadcast %cst_22 : f32 to vector<8x256xf32>
    %49 = arith.mulf %48, %47 : vector<8x256xf32>
    %50 = arith.maximumf %47, %49 : vector<8x256xf32>
    %c0_23 = arith.constant 0 : index
    %c0_24 = arith.constant 0 : index
    %51 = vector.load %arg3[%c0_23, %c0_24] : memref<256x512xbf16, #tpu.memory_space<vmem>>, vector<256x512xbf16>
    %52 = arith.truncf %50 : vector<8x256xf32> to vector<8x256xbf16>
    %cst_25 = arith.constant dense<0.000000e+00> : vector<8x512xf32>
    %53 = tpu.matmul %52, %51, %cst_25 {dimension_numbers = #tpu.dot_dimension_numbers<[1], [0], [0], [1], [0, 0, 1, 1], [], []>} : vector<8x256xbf16>, vector<256x512xbf16>, vector<8x512xf32> -> vector<8x512xf32>
    %cst_26 = arith.constant dense<0.000000e+00> : vector<512xf32>
    %54 = vector.multi_reduction <add>, %53, %cst_26 [0] : vector<8x512xf32> to vector<512xf32>
    %55 = vector.shape_cast %54 : vector<512xf32> to vector<1x512xf32>
    %cst_27 = arith.constant 8.000000e+00 : f32
    %56 = vector.broadcast %cst_27 : f32 to vector<1x512xf32>
    %57 = arith.divf %55, %56 : vector<1x512xf32>
    %58 = arith.mulf %53, %53 : vector<8x512xf32>
    %cst_28 = arith.constant dense<0.000000e+00> : vector<512xf32>
    %59 = vector.multi_reduction <add>, %58, %cst_28 [0] : vector<8x512xf32> to vector<512xf32>
    %60 = vector.shape_cast %59 : vector<512xf32> to vector<1x512xf32>
    %cst_29 = arith.constant 8.000000e+00 : f32
    %61 = vector.broadcast %cst_29 : f32 to vector<1x512xf32>
    %62 = arith.divf %60, %61 : vector<1x512xf32>
    %63 = arith.mulf %57, %57 : vector<1x512xf32>
    %64 = arith.subf %62, %63 : vector<1x512xf32>
    %cst_30 = arith.constant 0.000000e+00 : f32
    %65 = vector.broadcast %cst_30 : f32 to vector<1x512xf32>
    %66 = arith.maximumf %64, %65 : vector<1x512xf32>
    %67 = vector.broadcast %57 : vector<1x512xf32> to vector<8x512xf32>
    %68 = arith.subf %53, %67 : vector<8x512xf32>
    %cst_31 = arith.constant 8.000000e-01 : f32
    %69 = vector.broadcast %cst_31 : f32 to vector<1x512xf32>
    %70 = arith.addf %66, %69 : vector<1x512xf32>
    %71 = math.rsqrt %70 : vector<1x512xf32>
    %72 = vector.broadcast %71 : vector<1x512xf32> to vector<8x512xf32>
    %73 = arith.mulf %68, %72 : vector<8x512xf32>
    %74 = vector.broadcast %7 : vector<1x512xf32> to vector<8x512xf32>
    %75 = arith.mulf %73, %74 : vector<8x512xf32>
    %76 = vector.broadcast %8 : vector<1x512xf32> to vector<8x512xf32>
    %77 = arith.addf %75, %76 : vector<8x512xf32>
    %cst_32 = arith.constant 2.000000e-01 : f32
    %78 = vector.broadcast %cst_32 : f32 to vector<8x512xf32>
    %79 = arith.mulf %78, %77 : vector<8x512xf32>
    %80 = arith.maximumf %77, %79 : vector<8x512xf32>
    %c0_i32_33 = arith.constant 0 : i32
    %81 = tpu.memref_slice %arg10[%c0_i32_33] : memref<2x!tpu.dma_semaphore, #tpu.memory_space<semaphore_mem>> -> memref<1x!tpu.dma_semaphore, #tpu.memory_space<semaphore_mem>>
    %82 = tpu.memref_squeeze %81 : memref<1x!tpu.dma_semaphore, #tpu.memory_space<semaphore_mem>> -> memref<!tpu.dma_semaphore, #tpu.memory_space<semaphore_mem>>
    tpu.wait_dma2 semaphore(%82 : memref<!tpu.dma_semaphore, #tpu.memory_space<semaphore_mem>>) src(%arg4 : memref<512x1024xbf16, #tpu.memory_space<any>>) dst(%arg8 : memref<512x1024xbf16, #tpu.memory_space<vmem>>)
    %c0_34 = arith.constant 0 : index
    %c0_35 = arith.constant 0 : index
    %83 = vector.load %arg8[%c0_34, %c0_35] : memref<512x1024xbf16, #tpu.memory_space<vmem>>, vector<512x1024xbf16>
    %84 = arith.truncf %80 : vector<8x512xf32> to vector<8x512xbf16>
    %cst_36 = arith.constant dense<0.000000e+00> : vector<8x1024xf32>
    %85 = tpu.matmul %84, %83, %cst_36 {dimension_numbers = #tpu.dot_dimension_numbers<[1], [0], [0], [1], [0, 0, 1, 1], [], []>} : vector<8x512xbf16>, vector<512x1024xbf16>, vector<8x1024xf32> -> vector<8x1024xf32>
    %cst_37 = arith.constant dense<0.000000e+00> : vector<1024xf32>
    %86 = vector.multi_reduction <add>, %85, %cst_37 [0] : vector<8x1024xf32> to vector<1024xf32>
    %87 = vector.shape_cast %86 : vector<1024xf32> to vector<1x1024xf32>
    %cst_38 = arith.constant 8.000000e+00 : f32
    %88 = vector.broadcast %cst_38 : f32 to vector<1x1024xf32>
    %89 = arith.divf %87, %88 : vector<1x1024xf32>
    %90 = arith.mulf %85, %85 : vector<8x1024xf32>
    %cst_39 = arith.constant dense<0.000000e+00> : vector<1024xf32>
    %91 = vector.multi_reduction <add>, %90, %cst_39 [0] : vector<8x1024xf32> to vector<1024xf32>
    %92 = vector.shape_cast %91 : vector<1024xf32> to vector<1x1024xf32>
    %cst_40 = arith.constant 8.000000e+00 : f32
    %93 = vector.broadcast %cst_40 : f32 to vector<1x1024xf32>
    %94 = arith.divf %92, %93 : vector<1x1024xf32>
    %95 = arith.mulf %89, %89 : vector<1x1024xf32>
    %96 = arith.subf %94, %95 : vector<1x1024xf32>
    %cst_41 = arith.constant 0.000000e+00 : f32
    %97 = vector.broadcast %cst_41 : f32 to vector<1x1024xf32>
    %98 = arith.maximumf %96, %97 : vector<1x1024xf32>
    %99 = vector.broadcast %89 : vector<1x1024xf32> to vector<8x1024xf32>
    %100 = arith.subf %85, %99 : vector<8x1024xf32>
    %cst_42 = arith.constant 8.000000e-01 : f32
    %101 = vector.broadcast %cst_42 : f32 to vector<1x1024xf32>
    %102 = arith.addf %98, %101 : vector<1x1024xf32>
    %103 = math.rsqrt %102 : vector<1x1024xf32>
    %104 = vector.broadcast %103 : vector<1x1024xf32> to vector<8x1024xf32>
    %105 = arith.mulf %100, %104 : vector<8x1024xf32>
    %106 = vector.broadcast %9 : vector<1x1024xf32> to vector<8x1024xf32>
    %107 = arith.mulf %105, %106 : vector<8x1024xf32>
    %108 = vector.broadcast %10 : vector<1x1024xf32> to vector<8x1024xf32>
    %109 = arith.addf %107, %108 : vector<8x1024xf32>
    %cst_43 = arith.constant 2.000000e-01 : f32
    %110 = vector.broadcast %cst_43 : f32 to vector<8x1024xf32>
    %111 = arith.mulf %110, %109 : vector<8x1024xf32>
    %112 = arith.maximumf %109, %111 : vector<8x1024xf32>
    %c1_i32_44 = arith.constant 1 : i32
    %113 = tpu.memref_slice %arg10[%c1_i32_44] : memref<2x!tpu.dma_semaphore, #tpu.memory_space<semaphore_mem>> -> memref<1x!tpu.dma_semaphore, #tpu.memory_space<semaphore_mem>>
    %114 = tpu.memref_squeeze %113 : memref<1x!tpu.dma_semaphore, #tpu.memory_space<semaphore_mem>> -> memref<!tpu.dma_semaphore, #tpu.memory_space<semaphore_mem>>
    tpu.wait_dma2 semaphore(%114 : memref<!tpu.dma_semaphore, #tpu.memory_space<semaphore_mem>>) src(%arg5 : memref<1024x896xbf16, #tpu.memory_space<any>>) dst(%arg9 : memref<1024x896xbf16, #tpu.memory_space<vmem>>)
    %c0_45 = arith.constant 0 : index
    %c0_46 = arith.constant 0 : index
    %115 = vector.load %arg9[%c0_45, %c0_46] : memref<1024x896xbf16, #tpu.memory_space<vmem>>, vector<1024x896xbf16>
    %116 = arith.truncf %112 : vector<8x1024xf32> to vector<8x1024xbf16>
    %cst_47 = arith.constant dense<0.000000e+00> : vector<8x896xf32>
    %117 = tpu.matmul %116, %115, %cst_47 {dimension_numbers = #tpu.dot_dimension_numbers<[1], [0], [0], [1], [0, 0, 1, 1], [], []>} : vector<8x1024xbf16>, vector<1024x896xbf16>, vector<8x896xf32> -> vector<8x896xf32>
    %118 = vector.broadcast %11 : vector<1x896xf32> to vector<8x896xf32>
    %119 = arith.addf %117, %118 : vector<8x896xf32>
    %120 = math.tanh %119 : vector<8x896xf32>
    %c0_48 = arith.constant 0 : index
    %c0_49 = arith.constant 0 : index
    %121 = vector.load %arg7[%c0_48, %c0_49] : memref<8x896xf32, #tpu.memory_space<vmem>>, vector<8x896xf32>
    tpu.vector_store %arg7[%c0_48, %c0_49], %120 {strides = array<i32>} : memref<8x896xf32, #tpu.memory_space<vmem>>, vector<8x896xf32>,
    return
  }
}

</mosaic_0001>

<llo_original>
// kernel: generator_forward.1
$region0: #{generator_forward.1}
  #allocation0 [shape = 'u32[]', space=smem, size = 0x4, offset = 0x4, fixed_abs, tag = 'smem constant byte address 0x4 - core index']
  #allocation1 [shape = 'u32[144,128]{1,0:T(1,128)}', space=vmem, size = 0x12000, scoped, tag = 'internal scratch']
  #allocation2 [shape = 'bf16[512,1024]{1,0:T(8,128)(2,1)}', space=vmem, size = 0x100000, scoped, tag = 'scratch operand']
  #allocation3 [shape = 'bf16[1024,896]{1,0:T(8,128)(2,1)}', space=vmem, size = 0x1c0000, scoped, tag = 'scratch operand']
  #allocation4 [shape = 's32[2]{0}', space=sflag, size = 0x8, scoped, tag = 'scratch operand']
  #allocation12 [shape = 's32[]', space=sflag, size = 0x4, offset = 0, fixed_abs, tag = 'sflag constant byte address 0x0 - dummy sync flag']
  #allocation13 [shape = 's32[]', space=sflag, size = 0x4, offset = 0, fixed_abs, tag = 'sflag constant byte address 0x0 - dummy sync flag']
  #allocation14 [shape = 'u32[]', space=smem, size = 0x4, offset = 0x44, fixed_abs, tag = 'smem constant byte address 0x44 - assertion arg 0']
  #allocation15 [shape = 'u32[]', space=smem, size = 0x4, offset = 0x48, fixed_abs, tag = 'smem constant byte address 0x48 - assertion arg 1']
  #allocation16 [shape = 's32[]', space=sflag, size = 0x4, offset = 0, fixed_abs, tag = 'sflag constant byte address 0x0 - dummy sync flag']
  #allocation17 [shape = 's32[]', space=sflag, size = 0x4, offset = 0, fixed_abs, tag = 'sflag constant byte address 0x0 - dummy sync flag']
  %s0 = inlined_call_operand.vmem [shape: f32[8,128], index: 0, kind: input, shape index: {}]
  %s1 = inlined_call_operand.hbm [shape: bf16[128,128], index: 1, kind: input, shape index: {}]
  %s2 = inlined_call_operand.hbm [shape: bf16[128,256], index: 2, kind: input, shape index: {}]
  %s3 = inlined_call_operand.hbm [shape: bf16[256,512], index: 3, kind: input, shape index: {}]
  %s4 = inlined_call_operand.hbm [shape: bf16[512,1024], index: 4, kind: input, shape index: {}]
  %s5 = inlined_call_operand.hbm [shape: bf16[1024,896], index: 5, kind: input, shape index: {}]
  %s6 = inlined_call_operand.hbm [shape: f32[1,4608], index: 6, kind: input, shape index: {}]
  %s7 = inlined_call_operand.vmem [shape: f32[8,896], index: 7, kind: output, shape index: {}]
  %s8 = sld [smem:[#allocation0]]
  $region54: #{generator_forward.1} parent=0
    _
  %s10 = ssub.s32 1, %s8
  %s11 = scalar_select 0, %s10, %s8
  $region1: #{generator_forward.1} parent=0
    #allocation5 [shape = 'u8[32768]{0}', space=vmem, size = 0x8000, scoped, tag = 'input window, operand 1, single buffered']
    #allocation6 [shape = 's32[1]{0}', space=sflag, size = 0x4, scoped, tag = 'scoped memory for generator_forward.1']
    #allocation7 [shape = 'u8[65536]{0}', space=vmem, size = 0x10000, scoped, tag = 'input window, operand 2, single buffered']
    #allocation8 [shape = 's32[1]{0}', space=sflag, size = 0x4, scoped, tag = 'scoped memory for generator_forward.1']
    #allocation9 [shape = 'u8[262144]{0}', space=vmem, size = 0x40000, scoped, tag = 'input window, operand 3, single buffered']
    #allocation10 [shape = 'u8[18432]{0}', space=vmem, size = 0x4800, scoped, tag = 'input window, operand 6, single buffered']
    #allocation11 [shape = 's32[1]{0}', space=sflag, size = 0x4, scoped, tag = 'scoped memory for generator_forward.1']
    %12 = vsyncpa [#allocation6], 0
    %13 = vsyncpa [#allocation8], 0
    %14 = vsyncpa [#allocation11], 0
    // Predicated region
    $region2: #{generator_forward.1} parent=1 // pred_check
      _
    $region3: #{generator_forward.1} parent=1 // pred_check_branch
      %16 = sbr.rel (0) target = $region5
    $region4: #{generator_forward.1} parent=1 // pred_region
      _
    $region5: #{generator_forward.1} parent=1 // pred_fallthru
      _
    // Predicated region
    $region6: #{generator_forward.1} parent=1 // pred_check
      _
    $region7: #{generator_forward.1} parent=1 // pred_check_branch
      %18 = sbr.rel (0) target = $region9
    $region8: #{generator_forward.1} parent=1 // pred_region
      %s20 = ssub.s32 1024, 1024
      %21 = vsyncadd [#allocation6], %s20
      %s22 = sshll.u32 [#allocation5], 4
      %s23 = int_to_ptr.vmem [resolvable:$true] %s22
      %28 = dma.hbm_to_vmem [thread:$0]  %s1, 1024, %s23, [#allocation6], 64, 64, 4
    $region9: #{generator_forward.1} parent=1 // pred_fallthru
      _
    // Predicated region
    $region10: #{generator_forward.1} parent=1 // pred_check
      _
    $region11: #{generator_forward.1} parent=1 // pred_check_branch
      %30 = sbr.rel (0) target = $region13
    $region12: #{generator_forward.1} parent=1 // pred_region
      %s32 = ssub.s32 2048, 2048
      %33 = vsyncadd [#allocation8], %s32
      %s34 = sshll.u32 [#allocation7], 4
      %s35 = int_to_ptr.vmem [resolvable:$true] %s34
      %40 = dma.hbm_to_vmem [thread:$0]  %s2, 2048, %s35, [#allocation8], 128, 128, 8
    $region13: #{generator_forward.1} parent=1 // pred_fallthru
      _
    // Predicated region
    $region14: #{generator_forward.1} parent=1 // pred_check
      _
    $region15: #{generator_forward.1} parent=1 // pred_check_branch
      %42 = sbr.rel (0) target = $region17
    $region16: #{generator_forward.1} parent=1 // pred_region
      %s44 = ssub.s32 8192, 8192
      %45 = vsyncadd [#allocation8], %s44
      %s46 = sshll.u32 [#allocation9], 4
      %s47 = int_to_ptr.vmem [resolvable:$true] %s46
      %52 = dma.hbm_to_vmem [thread:$0]  %s3, 8192, %s47, [#allocation8], 256, 256, 16
    $region17: #{generator_forward.1} parent=1 // pred_fallthru
      _
    // Predicated region
    $region18: #{generator_forward.1} parent=1 // pred_check
      _
    $region19: #{generator_forward.1} parent=1 // pred_check_branch
      %54 = sbr.rel (0) target = $region21
    $region20: #{generator_forward.1} parent=1 // pred_region
      %s56 = ssub.s32 576, 576
      %57 = vsyncadd [#allocation11], %s56
      %s59 = sshll.u32 [#allocation10], 4
      %s60 = int_to_ptr.vmem [resolvable:$true] %s59
      %62 = dma.hbm_to_vmem [thread:$0]  %s6, 576, %s60, [#allocation11]
    $region21: #{generator_forward.1} parent=1 // pred_fallthru
      _
    // Predicated region
    $region22: #{generator_forward.1} parent=1 // pred_check
      _
    $region23: #{generator_forward.1} parent=1 // pred_check_branch
      %64 = sbr.rel (0) target = $region25
    $region24: #{generator_forward.1} parent=1 // pred_region
      %65 = dma.done [#allocation6], 1024
    $region25: #{generator_forward.1} parent=1 // pred_fallthru
      _
    // Predicated region
    $region26: #{generator_forward.1} parent=1 // pred_check
      _
    $region27: #{generator_forward.1} parent=1 // pred_check_branch
      %67 = sbr.rel (0) target = $region29
    $region28: #{generator_forward.1} parent=1 // pred_region
      %68 = dma.done [#allocation8], 2048
    $region29: #{generator_forward.1} parent=1 // pred_fallthru
      _
    // Predicated region
    $region30: #{generator_forward.1} parent=1 // pred_check
      _
    $region31: #{generator_forward.1} parent=1 // pred_check_branch
      %70 = sbr.rel (0) target = $region33
    $region32: #{generator_forward.1} parent=1 // pred_region
      %71 = dma.done [#allocation8], 8192
    $region33: #{generator_forward.1} parent=1 // pred_fallthru
      _
    // Predicated region
    $region34: #{generator_forward.1} parent=1 // pred_check
      _
    $region35: #{generator_forward.1} parent=1 // pred_check_branch
      %73 = sbr.rel (0) target = $region37
    $region36: #{generator_forward.1} parent=1 // pred_region
      %74 = dma.done [#allocation11], 576
    $region37: #{generator_forward.1} parent=1 // pred_fallthru
      _
    // Predicated region
    $region38: #{generator_forward.1} parent=1 // pred_check
      _
    $region39: #{generator_forward.1} parent=1 // pred_check_branch
      %77 = sbr.rel target = $region41
    $region40: #{generator_forward.1} parent=1 // pred_region
      %78 = sst [smem:[#allocation14]] [#allocation13]
      %79 = sst [smem:[#allocation15]] [#allocation12]
    $region41: #{generator_forward.1} parent=1 // pred_fallthru
      _
    %81 = shalt.err (0)
    %s83 = sshll.u32 [#allocation2], 4
    %s84 = int_to_ptr.vmem [resolvable:$true] %s83
    %86 = dma.hbm_to_vmem [thread:$0]  %s4, 32768, %s84, [#allocation4]
    %s87 = scalar_lea.sflag [#allocation4], 1
    // Predicated region
    $region42: #{generator_forward.1} parent=1 // pred_check
      _
    $region43: #{generator_forward.1} parent=1 // pred_check_branch
      %89 = sbr.rel target = $region45
    $region44: #{generator_forward.1} parent=1 // pred_region
      %90 = sst [smem:[#allocation14]] [#allocation17]
      %91 = sst [smem:[#allocation15]] [#allocation16]
    $region45: #{generator_forward.1} parent=1 // pred_fallthru
      _
    %93 = shalt.err (0)
    %s95 = sshll.u32 [#allocation3], 4
    %s96 = int_to_ptr.vmem [resolvable:$true] %s95
    %98 = dma.hbm_to_vmem [thread:$0]  %s5, 57344, %s96, %s87
    %v99 = vld [vmem:[#allocation10] sm:$0x1]
    %v100 = vld [vmem:[#allocation10 + $0x1] sm:$0x3]
    %v101 = vld [vmem:[#allocation10 + $0x3] sm:$0x3]
    %v102 = vld [vmem:[#allocation10 + $0x5] sm:$0xf]
    %v103 = vld [vmem:[#allocation10 + $0x9] sm:$0xf]
    %v104 = vld [vmem:[#allocation10 + $0xd] sm:$0xff]
    %v105 = vld [vmem:[#allocation10 + $0x15] sm:$0xff]
    %v106 = vld [vmem:[#allocation10 + $0x1d] sm:$0xff]
    %v107 = vld [vmem:[%s0] sm:$0xff]
    %v108 = vld [vmem:[#allocation5] sm:$0xf]
    %v109 = vld [vmem:[#allocation5 + $0x4] sm:$0xf]
    %v110 = vld [vmem:[#allocation5 + $0x8] sm:$0xf]
    %v111 = vld [vmem:[#allocation5 + $0xc] sm:$0xf]
    %v112 = vld [vmem:[#allocation5 + $0x10] sm:$0xf]
    %v113 = vld [vmem:[#allocation5 + $0x14] sm:$0xf]
    %v114 = vld [vmem:[#allocation5 + $0x18] sm:$0xf]
    %v115 = vld [vmem:[#allocation5 + $0x1c] sm:$0xf]
    %v116 = vld [vmem:[#allocation5 + $0x20] sm:$0xf]
    %v117 = vld [vmem:[#allocation5 + $0x24] sm:$0xf]
    %v118 = vld [vmem:[#allocation5 + $0x28] sm:$0xf]
    %v119 = vld [vmem:[#allocation5 + $0x2c] sm:$0xf]
    %v120 = vld [vmem:[#allocation5 + $0x30] sm:$0xf]
    %v121 = vld [vmem:[#allocation5 + $0x34] sm:$0xf]
    %v122 = vld [vmem:[#allocation5 + $0x38] sm:$0xf]
    %v123 = vld [vmem:[#allocation5 + $0x3c] sm:$0xf]
    %v124 = vpack.c.bf16 %v107, %v107
    %v126 = vlaneseq
    %v127 = vshrl.u32 %v126, 7
    %v128 = vsub.s32 0, %v127
    %v129 = vrot.slane %v99, %v128
    %v147 = vunpack.c.l.b16 %v108
    %v148 = vunpack.c.l.b16 %v109
    %v149 = vunpack.c.l.b16 %v110
    %v150 = vunpack.c.l.b16 %v111
    %v151 = vunpack.c.l.b16 %v112
    %v152 = vunpack.c.l.b16 %v113
    %v153 = vunpack.c.l.b16 %v114
    %v154 = vunpack.c.l.b16 %v115
    %v155 = vunpack.c.l.b16 %v116
    %v156 = vunpack.c.l.b16 %v117
    %v157 = vunpack.c.l.b16 %v118
    %v158 = vunpack.c.l.b16 %v119
    %v159 = vunpack.c.l.b16 %v120
    %v160 = vunpack.c.l.b16 %v121
    %v161 = vunpack.c.l.b16 %v122
    %v162 = vunpack.c.l.b16 %v123
    %v163 = vpack.c.b16 %v148, %v147
    %v164 = vpack.c.b16 %v150, %v149
    %v165 = vpack.c.b16 %v152, %v151
    %v166 = vpack.c.b16 %v154, %v153
    %v167 = vpack.c.b16 %v156, %v155
    %v168 = vpack.c.b16 %v158, %v157
    %v169 = vpack.c.b16 %v160, %v159
    %v170 = vpack.c.b16 %v162, %v161
    %179 = vmatprep.subr.bf16.mxu0 0
    %180 = vmatpush1.bf16.msra.mxu0 %v170
    %181 = vmatprep.subr.bf16.mxu0 0
    %182 = vmatpush1.bf16.msra.mxu0 %v169
    %183 = vmatprep.subr.bf16.mxu0 0
    %184 = vmatpush1.bf16.msra.mxu0 %v168
    %185 = vmatprep.subr.bf16.mxu0 0
    %186 = vmatpush1.bf16.msra.mxu0 %v167
    %187 = vmatprep.subr.bf16.mxu0 0
    %188 = vmatpush1.bf16.msra.mxu0 %v166
    %189 = vmatprep.subr.bf16.mxu0 0
    %190 = vmatpush1.bf16.msra.mxu0 %v165
    %191 = vmatprep.subr.bf16.mxu0 0
    %192 = vmatpush1.bf16.msra.mxu0 %v164
    %193 = vmatprep.subr.bf16.mxu0 0
    %194 = vmatpush1.bf16.msra.mxu0 %v163
    %195 = vmatprep.subr.bf16.mxu0 0
    %196 = vmatpush2.bf16.msra.mxu0 0
    %197 = vmatprep.subr.bf16.mxu0 0
    %198 = vmatpush2.bf16.msra.mxu0 0
    %199 = vmatprep.subr.bf16.mxu0 0
    %200 = vmatpush2.bf16.msra.mxu0 0
    %201 = vmatprep.subr.bf16.mxu0 0
    %202 = vmatpush2.bf16.msra.mxu0 0
    %203 = vmatprep.subr.bf16.mxu0 0
    %204 = vmatpush2.bf16.msra.mxu0 0
    %205 = vmatprep.subr.bf16.mxu0 0
    %206 = vmatpush2.bf16.msra.mxu0 0
    %207 = vmatprep.subr.bf16.mxu0 0
    %208 = vmatpush2.bf16.msra.mxu0 0
    %209 = vmatprep.subr.bf16.mxu0 0
    %210 = vmatpush2.bf16.msra.mxu0 0
    %211 = vmatprep.mubr.bf16.mxu0 0
    %212 = vmatmul.mubr.bf16.gmra.mxu0 %v124
    %v213 = vpop.f32.mrf.mxu0
    %v214 = vadd.f32 %v129, %v213
    %v215 = vpop.f32.mrf.mxu0
    %v216 = vpop.f32.mrf.mxu0
    %v217 = vpop.f32.mrf.mxu0
    %218 = vdwg.mxu0
    %v219 = vmul.f32 %v214, 0.2
    %v220 = vmax.f32 %v214, %v219
    %v221 = vld [vmem:[#allocation7] sm:$0xff]
    %v222 = vld [vmem:[#allocation7 + $0x8] sm:$0xff]
    %v223 = vld [vmem:[#allocation7 + $0x10] sm:$0xff]
    %v224 = vld [vmem:[#allocation7 + $0x18] sm:$0xff]
    %v225 = vld [vmem:[#allocation7 + $0x20] sm:$0xff]
    %v226 = vld [vmem:[#allocation7 + $0x28] sm:$0xff]
    %v227 = vld [vmem:[#allocation7 + $0x30] sm:$0xff]
    %v228 = vld [vmem:[#allocation7 + $0x38] sm:$0xff]
    %v229 = vld [vmem:[#allocation7 + $0x40] sm:$0xff]
    %v230 = vld [vmem:[#allocation7 + $0x48] sm:$0xff]
    %v231 = vld [vmem:[#allocation7 + $0x50] sm:$0xff]
    %v232 = vld [vmem:[#allocation7 + $0x58] sm:$0xff]
    %v233 = vld [vmem:[#allocation7 + $0x60] sm:$0xff]
    %v234 = vld [vmem:[#allocation7 + $0x68] sm:$0xff]
    %v235 = vld [vmem:[#allocation7 + $0x70] sm:$0xff]
    %v236 = vld [vmem:[#allocation7 + $0x78] sm:$0xff]
    %v237 = vpack.c.bf16 %v220, %v220
    %v254 = vunpack.c.l.b16 %v221
    %v255 = vunpack.c.h.b16 %v221
    %v256 = vunpack.c.l.b16 %v222
    %v257 = vunpack.c.h.b16 %v222
    %v258 = vunpack.c.l.b16 %v223
    %v259 = vunpack.c.h.b16 %v223
    %v260 = vunpack.c.l.b16 %v224
    %v261 = vunpack.c.h.b16 %v224
    %v262 = vunpack.c.l.b16 %v225
    %v263 = vunpack.c.h.b16 %v225
    %v264 = vunpack.c.l.b16 %v226
    %v265 = vunpack.c.h.b16 %v226
    %v266 = vunpack.c.l.b16 %v227
    %v267 = vunpack.c.h.b16 %v227
    %v268 = vunpack.c.l.b16 %v228
    %v269 = vunpack.c.h.b16 %v228
    %v270 = vunpack.c.l.b16 %v229
    %v271 = vunpack.c.h.b16 %v229
    %v272 = vunpack.c.l.b16 %v230
    %v273 = vunpack.c.h.b16 %v230
    %v274 = vunpack.c.l.b16 %v231
    %v275 = vunpack.c.h.b16 %v231
    %v276 = vunpack.c.l.b16 %v232
    %v277 = vunpack.c.h.b16 %v232
    %v278 = vunpack.c.l.b16 %v233
    %v279 = vunpack.c.h.b16 %v233
    %v280 = vunpack.c.l.b16 %v234
    %v281 = vunpack.c.h.b16 %v234
    %v282 = vunpack.c.l.b16 %v235
    %v283 = vunpack.c.h.b16 %v235
    %v284 = vunpack.c.l.b16 %v236
    %v285 = vunpack.c.h.b16 %v236
    %v286 = vpack.c.b16 %v256, %v254
    %v287 = vpack.c.b16 %v257, %v255
    %v288 = vpack.c.b16 %v260, %v258
    %v289 = vpack.c.b16 %v261, %v259
    %v290 = vpack.c.b16 %v264, %v262
    %v291 = vpack.c.b16 %v265, %v263
    %v292 = vpack.c.b16 %v268, %v266
    %v293 = vpack.c.b16 %v269, %v267
    %v294 = vpack.c.b16 %v272, %v270
    %v295 = vpack.c.b16 %v273, %v271
    %v296 = vpack.c.b16 %v276, %v274
    %v297 = vpack.c.b16 %v277, %v275
    %v298 = vpack.c.b16 %v280, %v278
    %v299 = vpack.c.b16 %v281, %v279
    %v300 = vpack.c.b16 %v284, %v282
    %v301 = vpack.c.b16 %v285, %v283
    %318 = vmatprep.subr.bf16.mxu0 %v301
    %319 = vmatpush1.bf16.msra.mxu0 %v300
    %320 = vmatprep.subr.bf16.mxu0 %v299
    %321 = vmatpush1.bf16.msra.mxu0 %v298
    %322 = vmatprep.subr.bf16.mxu0 %v297
    %323 = vmatpush1.bf16.msra.mxu0 %v296
    %324 = vmatprep.subr.bf16.mxu0 %v295
    %325 = vmatpush1.bf16.msra.mxu0 %v294
    %326 = vmatprep.subr.bf16.mxu0 %v293
    %327 = vmatpush1.bf16.msra.mxu0 %v292
    %328 = vmatprep.subr.bf16.mxu0 %v291
    %329 = vmatpush1.bf16.msra.mxu0 %v290
    %330 = vmatprep.subr.bf16.mxu0 %v289
    %331 = vmatpush1.bf16.msra.mxu0 %v288
    %332 = vmatprep.subr.bf16.mxu0 %v287
    %333 = vmatpush1.bf16.msra.mxu0 %v286
    %334 = vmatprep.subr.bf16.mxu0 0
    %335 = vmatpush2.bf16.msra.mxu0 0
    %336 = vmatprep.subr.bf16.mxu0 0
    %337 = vmatpush2.bf16.msra.mxu0 0
    %338 = vmatprep.subr.bf16.mxu0 0
    %339 = vmatpush2.bf16.msra.mxu0 0
    %340 = vmatprep.subr.bf16.mxu0 0
    %341 = vmatpush2.bf16.msra.mxu0 0
    %342 = vmatprep.subr.bf16.mxu0 0
    %343 = vmatpush2.bf16.msra.mxu0 0
    %344 = vmatprep.subr.bf16.mxu0 0
    %345 = vmatpush2.bf16.msra.mxu0 0
    %346 = vmatprep.subr.bf16.mxu0 0
    %347 = vmatpush2.bf16.msra.mxu0 0
    %348 = vmatprep.subr.bf16.mxu0 0
    %349 = vmatpush2.bf16.msra.mxu0 0
    %350 = vmatprep.mubr.bf16.mxu0 0
    %351 = vmatmul.mubr.bf16.gmra.mxu0 %v237
    %v352 = vpop.f32.mrf.mxu0
    %v353 = vadd.f32 0.0, %v352
    %v354 = vpop.f32.mrf.mxu0
    %v355 = vadd.f32 0.0, %v354
    %v356 = vpop.f32.mrf.mxu0
    %v357 = vpop.f32.mrf.mxu0
    %358 = vdwg.mxu0
    %v359 = vrot.slane %v353, 4
    %v360 = vadd.f32 %v353, %v359
    %v361 = vrot.slane %v360, 2
    %v362 = vadd.f32 %v360, %v361
    %v363 = vrot.slane %v362, 1
    %v364 = vadd.f32 %v362, %v363
    %v365 = vrot.slane %v355, 4
    %v366 = vadd.f32 %v355, %v365
    %v367 = vrot.slane %v366, 2
    %v368 = vadd.f32 %v366, %v367
    %v369 = vrot.slane %v368, 1
    %v370 = vadd.f32 %v368, %v369
    %v371 = vrcp.pop 8.0
    %v372 = vmul.f32 %v364, %v371
    %v373 = vmul.f32 %v370, %v371
    %v374 = vmul.f32 %v353, %v353
    %v375 = vmul.f32 %v355, %v355
    %v376 = vrot.slane %v374, 4
    %v377 = vadd.f32 %v374, %v376
    %v378 = vrot.slane %v377, 2
    %v379 = vadd.f32 %v377, %v378
    %v380 = vrot.slane %v379, 1
    %v381 = vadd.f32 %v379, %v380
    %v382 = vrot.slane %v375, 4
    %v383 = vadd.f32 %v375, %v382
    %v384 = vrot.slane %v383, 2
    %v385 = vadd.f32 %v383, %v384
    %v386 = vrot.slane %v385, 1
    %v387 = vadd.f32 %v385, %v386
    %v388 = vmul.f32 %v381, %v371
    %v389 = vmul.f32 %v387, %v371
    %v390 = vmul.f32 %v372, %v372
    %v391 = vmul.f32 %v373, %v373
    %v392 = vsub.f32 %v388, %v390
    %v393 = vsub.f32 %v389, %v391
    %v394 = vmax.f32 %v392, 0.0
    %v395 = vmax.f32 %v393, 0.0
    %v396 = vsub.f32 %v353, %v372
    %v397 = vsub.f32 %v355, %v373
    %v398 = vadd.f32 %v394, 0.8
    %v399 = vadd.f32 %v395, 0.8
    %v400 = vrsqrt.pop %v398
    %v401 = vrsqrt.pop %v399
    %v402 = vmul.f32 %v396, %v400
    %v403 = vmul.f32 %v397, %v401
    %v405 = vlaneseq
    %v406 = vshrl.u32 %v405, 7
    %v407 = vsub.s32 0, %v406
    %v408 = vrot.slane %v100, %v407
    %v409 = vlaneseq
    %v410 = vshrl.u32 %v409, 7
    %v411 = vsub.s32 1, %v410
    %v412 = vrot.slane %v100, %v411
    %v415 = vmul.f32 %v402, %v408
    %v416 = vmul.f32 %v403, %v412
    %v418 = vlaneseq
    %v419 = vshrl.u32 %v418, 7
    %v420 = vsub.s32 0, %v419
    %v421 = vrot.slane %v101, %v420
    %v422 = vlaneseq
    %v423 = vshrl.u32 %v422, 7
    %v424 = vsub.s32 1, %v423
    %v425 = vrot.slane %v101, %v424
    %v428 = vadd.f32 %v415, %v421
    %v429 = vadd.f32 %v416, %v425
    %v430 = vmul.f32 %v428, 0.2
    %v431 = vmul.f32 %v429, 0.2
    %v432 = vmax.f32 %v428, %v430
    %v433 = vmax.f32 %v429, %v431
    %v434 = vld [vmem:[#allocation9] sm:$0xff]
    %v435 = vld [vmem:[#allocation9 + $0x8] sm:$0xff]
    %v436 = vld [vmem:[#allocation9 + $0x10] sm:$0xff]
    %v437 = vld [vmem:[#allocation9 + $0x18] sm:$0xff]
    %v438 = vld [vmem:[#allocation9 + $0x20] sm:$0xff]
    %v439 = vld [vmem:[#allocation9 + $0x28] sm:$0xff]
    %v440 = vld [vmem:[#allocation9 + $0x30] sm:$0xff]
    %v441 = vld [vmem:[#allocation9 + $0x38] sm:$0xff]
    %v442 = vld [vmem:[#allocation9 + $0x40] sm:$0xff]
    %v443 = vld [vmem:[#allocation9 + $0x48] sm:$0xff]
    %v444 = vld [vmem:[#allocation9 + $0x50] sm:$0xff]
    %v445 = vld [vmem:[#allocation9 + $0x58] sm:$0xff]
    %v446 = vld [vmem:[#allocation9 + $0x60] sm:$0xff]
    %v447 = vld [vmem:[#allocation9 + $0x68] sm:$0xff]
    %v448 = vld [vmem:[#allocation9 + $0x70] sm:$0xff]
    %v449 = vld [vmem:[#allocation9 + $0x78] sm:$0xff]
    %v450 = vld [vmem:[#allocation9 + $0x80] sm:$0xff]
    %v451 = vld [vmem:[#allocation9 + $0x88] sm:$0xff]
    %v452 = vld [vmem:[#allocation9 + $0x90] sm:$0xff]
    %v453 = vld [vmem:[#allocation9 + $0x98] sm:$0xff]
    %v454 = vld [vmem:[#allocation9 + $0xa0] sm:$0xff]
    %v455 = vld [vmem:[#allocation9 + $0xa8] sm:$0xff]
    %v456 = vld [vmem:[#allocation9 + $0xb0] sm:$0xff]
    %v457 = vld [vmem:[#allocation9 + $0xb8] sm:$0xff]
    %v458 = vld [vmem:[#allocation9 + $0xc0] sm:$0xff]
    %v459 = vld [vmem:[#allocation9 + $0xc8] sm:$0xff]
    %v460 = vld [vmem:[#allocation9 + $0xd0] sm:$0xff]
    %v461 = vld [vmem:[#allocation9 + $0xd8] sm:$0xff]
    %v462 = vld [vmem:[#allocation9 + $0xe0] sm:$0xff]
    %v463 = vld [vmem:[#allocation9 + $0xe8] sm:$0xff]
    %v464 = vld [vmem:[#allocation9 + $0xf0] sm:$0xff]
    %v465 = vld [vmem:[#allocation9 + $0xf8] sm:$0xff]
    %v466 = vld [vmem:[#allocation9 + $0x100] sm:$0xff]
    %v467 = vld [vmem:[#allocation9 + $0x108] sm:$0xff]
    %v468 = vld [vmem:[#allocation9 + $0x110] sm:$0xff]
    %v469 = vld [vmem:[#allocation9 + $0x118] sm:$0xff]
    %v470 = vld [vmem:[#allocation9 + $0x120] sm:$0xff]
    %v471 = vld [vmem:[#allocation9 + $0x128] sm:$0xff]
    %v472 = vld [vmem:[#allocation9 + $0x130] sm:$0xff]
    %v473 = vld [vmem:[#allocation9 + $0x138] sm:$0xff]
    %v474 = vld [vmem:[#allocation9 + $0x140] sm:$0xff]
    %v475 = vld [vmem:[#allocation9 + $0x148] sm:$0xff]
    %v476 = vld [vmem:[#allocation9 + $0x150] sm:$0xff]
    %v477 = vld [vmem:[#allocation9 + $0x158] sm:$0xff]
    %v478 = vld [vmem:[#allocation9 + $0x160] sm:$0xff]
    %v479 = vld [vmem:[#allocation9 + $0x168] sm:$0xff]
    %v480 = vld [vmem:[#allocation9 + $0x170] sm:$0xff]
    %v481 = vld [vmem:[#allocation9 + $0x178] sm:$0xff]
    %v482 = vld [vmem:[#allocation9 + $0x180] sm:$0xff]
    %v483 = vld [vmem:[#allocation9 + $0x188] sm:$0xff]
    %v484 = vld [vmem:[#allocation9 + $0x190] sm:$0xff]
    %v485 = vld [vmem:[#allocation9 + $0x198] sm:$0xff]
    %v486 = vld [vmem:[#allocation9 + $0x1a0] sm:$0xff]
    %v487 = vld [vmem:[#allocation9 + $0x1a8] sm:$0xff]
    %v488 = vld [vmem:[#allocation9 + $0x1b0] sm:$0xff]
    %v489 = vld [vmem:[#allocation9 + $0x1b8] sm:$0xff]
    %v490 = vld [vmem:[#allocation9 + $0x1c0] sm:$0xff]
    %v491 = vld [vmem:[#allocation9 + $0x1c8] sm:$0xff]
    %v492 = vld [vmem:[#allocation9 + $0x1d0] sm:$0xff]
    %v493 = vld [vmem:[#allocation9 + $0x1d8] sm:$0xff]
    %v494 = vld [vmem:[#allocation9 + $0x1e0] sm:$0xff]
    %v495 = vld [vmem:[#allocation9 + $0x1e8] sm:$0xff]
    %v496 = vld [vmem:[#allocation9 + $0x1f0] sm:$0xff]
    %v497 = vld [vmem:[#allocation9 + $0x1f8] sm:$0xff]
    %v498 = vpack.c.bf16 %v432, %v432
    %v499 = vpack.c.bf16 %v433, %v433
    %v564 = vunpack.c.l.b16 %v434
    %v565 = vunpack.c.h.b16 %v434
    %v566 = vunpack.c.l.b16 %v435
    %v567 = vunpack.c.h.b16 %v435
    %v568 = vunpack.c.l.b16 %v436
    %v569 = vunpack.c.h.b16 %v436
    %v570 = vunpack.c.l.b16 %v437
    %v571 = vunpack.c.h.b16 %v437
    %v572 = vunpack.c.l.b16 %v438
    %v573 = vunpack.c.h.b16 %v438
    %v574 = vunpack.c.l.b16 %v439
    %v575 = vunpack.c.h.b16 %v439
    %v576 = vunpack.c.l.b16 %v440
    %v577 = vunpack.c.h.b16 %v440
    %v578 = vunpack.c.l.b16 %v441
    %v579 = vunpack.c.h.b16 %v441
    %v580 = vunpack.c.l.b16 %v442
    %v581 = vunpack.c.h.b16 %v442
    %v582 = vunpack.c.l.b16 %v443
    %v583 = vunpack.c.h.b16 %v443
    %v584 = vunpack.c.l.b16 %v444
    %v585 = vunpack.c.h.b16 %v444
    %v586 = vunpack.c.l.b16 %v445
    %v587 = vunpack.c.h.b16 %v445
    %v588 = vunpack.c.l.b16 %v446
    %v589 = vunpack.c.h.b16 %v446
    %v590 = vunpack.c.l.b16 %v447
    %v591 = vunpack.c.h.b16 %v447
    %v592 = vunpack.c.l.b16 %v448
    %v593 = vunpack.c.h.b16 %v448
    %v594 = vunpack.c.l.b16 %v449
    %v595 = vunpack.c.h.b16 %v449
    %v596 = vunpack.c.l.b16 %v450
    %v597 = vunpack.c.h.b16 %v450
    %v598 = vunpack.c.l.b16 %v451
    %v599 = vunpack.c.h.b16 %v451
    %v600 = vunpack.c.l.b16 %v452
    %v601 = vunpack.c.h.b16 %v452
    %v602 = vunpack.c.l.b16 %v453
    %v603 = vunpack.c.h.b16 %v453
    %v604 = vunpack.c.l.b16 %v454
    %v605 = vunpack.c.h.b16 %v454
    %v606 = vunpack.c.l.b16 %v455
    %v607 = vunpack.c.h.b16 %v455
    %v608 = vunpack.c.l.b16 %v456
    %v609 = vunpack.c.h.b16 %v456
    %v610 = vunpack.c.l.b16 %v457
    %v611 = vunpack.c.h.b16 %v457
    %v612 = vunpack.c.l.b16 %v458
    %v613 = vunpack.c.h.b16 %v458
    %v614 = vunpack.c.l.b16 %v459
    %v615 = vunpack.c.h.b16 %v459
    %v616 = vunpack.c.l.b16 %v460
    %v617 = vunpack.c.h.b16 %v460
    %v618 = vunpack.c.l.b16 %v461
    %v619 = vunpack.c.h.b16 %v461
    %v620 = vunpack.c.l.b16 %v462
    %v621 = vunpack.c.h.b16 %v462
    %v622 = vunpack.c.l.b16 %v463
    %v623 = vunpack.c.h.b16 %v463
    %v624 = vunpack.c.l.b16 %v464
    %v625 = vunpack.c.h.b16 %v464
    %v626 = vunpack.c.l.b16 %v465
    %v627 = vunpack.c.h.b16 %v465
    %v628 = vunpack.c.l.b16 %v466
    %v629 = vunpack.c.h.b16 %v466
    %v630 = vunpack.c.l.b16 %v467
    %v631 = vunpack.c.h.b16 %v467
    %v632 = vunpack.c.l.b16 %v468
    %v633 = vunpack.c.h.b16 %v468
    %v634 = vunpack.c.l.b16 %v469
    %v635 = vunpack.c.h.b16 %v469
    %v636 = vunpack.c.l.b16 %v470
    %v637 = vunpack.c.h.b16 %v470
    %v638 = vunpack.c.l.b16 %v471
    %v639 = vunpack.c.h.b16 %v471
    %v640 = vunpack.c.l.b16 %v472
    %v641 = vunpack.c.h.b16 %v472
    %v642 = vunpack.c.l.b16 %v473
    %v643 = vunpack.c.h.b16 %v473
    %v644 = vunpack.c.l.b16 %v474
    %v645 = vunpack.c.h.b16 %v474
    %v646 = vunpack.c.l.b16 %v475
    %v647 = vunpack.c.h.b16 %v475
    %v648 = vunpack.c.l.b16 %v476
    %v649 = vunpack.c.h.b16 %v476
    %v650 = vunpack.c.l.b16 %v477
    %v651 = vunpack.c.h.b16 %v477
    %v652 = vunpack.c.l.b16 %v478
    %v653 = vunpack.c.h.b16 %v478
    %v654 = vunpack.c.l.b16 %v479
    %v655 = vunpack.c.h.b16 %v479
    %v656 = vunpack.c.l.b16 %v480
    %v657 = vunpack.c.h.b16 %v480
    %v658 = vunpack.c.l.b16 %v481
    %v659 = vunpack.c.h.b16 %v481
    %v660 = vunpack.c.l.b16 %v482
    %v661 = vunpack.c.h.b16 %v482
    %v662 = vunpack.c.l.b16 %v483
    %v663 = vunpack.c.h.b16 %v483
    %v664 = vunpack.c.l.b16 %v484
    %v665 = vunpack.c.h.b16 %v484
    %v666 = vunpack.c.l.b16 %v485
    %v667 = vunpack.c.h.b16 %v485
    %v668 = vunpack.c.l.b16 %v486
    %v669 = vunpack.c.h.b16 %v486
    %v670 = vunpack.c.l.b16 %v487
    %v671 = vunpack.c.h.b16 %v487
    %v672 = vunpack.c.l.b16 %v488
    %v673 = vunpack.c.h.b16 %v488
    %v674 = vunpack.c.l.b16 %v489
    %v675 = vunpack.c.h.b16 %v489
    %v676 = vunpack.c.l.b16 %v490
    %v677 = vunpack.c.h.b16 %v490
    %v678 = vunpack.c.l.b16 %v491
    %v679 = vunpack.c.h.b16 %v491
    %v680 = vunpack.c.l.b16 %v492
    %v681 = vunpack.c.h.b16 %v492
    %v682 = vunpack.c.l.b16 %v493
    %v683 = vunpack.c.h.b16 %v493
    %v684 = vunpack.c.l.b16 %v494
    %v685 = vunpack.c.h.b16 %v494
    %v686 = vunpack.c.l.b16 %v495
    %v687 = vunpack.c.h.b16 %v495
    %v688 = vunpack.c.l.b16 %v496
    %v689 = vunpack.c.h.b16 %v496
    %v690 = vunpack.c.l.b16 %v497
    %v691 = vunpack.c.h.b16 %v497
    %v692 = vpack.c.b16 %v568, %v564
    %v693 = vpack.c.b16 %v569, %v565
    %v694 = vpack.c.b16 %v570, %v566
    %v695 = vpack.c.b16 %v571, %v567
    %v696 = vpack.c.b16 %v576, %v572
    %v697 = vpack.c.b16 %v577, %v573
    %v698 = vpack.c.b16 %v578, %v574
    %v699 = vpack.c.b16 %v579, %v575
    %v700 = vpack.c.b16 %v584, %v580
    %v701 = vpack.c.b16 %v585, %v581
    %v702 = vpack.c.b16 %v586, %v582
    %v703 = vpack.c.b16 %v587, %v583
    %v704 = vpack.c.b16 %v592, %v588
    %v705 = vpack.c.b16 %v593, %v589
    %v706 = vpack.c.b16 %v594, %v590
    %v707 = vpack.c.b16 %v595, %v591
    %v708 = vpack.c.b16 %v600, %v596
    %v709 = vpack.c.b16 %v601, %v597
    %v710 = vpack.c.b16 %v602, %v598
    %v711 = vpack.c.b16 %v603, %v599
    %v712 = vpack.c.b16 %v608, %v604
    %v713 = vpack.c.b16 %v609, %v605
    %v714 = vpack.c.b16 %v610, %v606
    %v715 = vpack.c.b16 %v611, %v607
    %v716 = vpack.c.b16 %v616, %v612
    %v717 = vpack.c.b16 %v617, %v613
    %v718 = vpack.c.b16 %v618, %v614
    %v719 = vpack.c.b16 %v619, %v615
    %v720 = vpack.c.b16 %v624, %v620
    %v721 = vpack.c.b16 %v625, %v621
    %v722 = vpack.c.b16 %v626, %v622
    %v723 = vpack.c.b16 %v627, %v623
    %v724 = vpack.c.b16 %v632, %v628
    %v725 = vpack.c.b16 %v633, %v629
    %v726 = vpack.c.b16 %v634, %v630
    %v727 = vpack.c.b16 %v635, %v631
    %v728 = vpack.c.b16 %v640, %v636
    %v729 = vpack.c.b16 %v641, %v637
    %v730 = vpack.c.b16 %v642, %v638
    %v731 = vpack.c.b16 %v643, %v639
    %v732 = vpack.c.b16 %v648, %v644
    %v733 = vpack.c.b16 %v649, %v645
    %v734 = vpack.c.b16 %v650, %v646
    %v735 = vpack.c.b16 %v651, %v647
    %v736 = vpack.c.b16 %v656, %v652
    %v737 = vpack.c.b16 %v657, %v653
    %v738 = vpack.c.b16 %v658, %v654
    %v739 = vpack.c.b16 %v659, %v655
    %v740 = vpack.c.b16 %v664, %v660
    %v741 = vpack.c.b16 %v665, %v661
    %v742 = vpack.c.b16 %v666, %v662
    %v743 = vpack.c.b16 %v667, %v663
    %v744 = vpack.c.b16 %v672, %v668
    %v745 = vpack.c.b16 %v673, %v669
    %v746 = vpack.c.b16 %v674, %v670
    %v747 = vpack.c.b16 %v675, %v671
    %v748 = vpack.c.b16 %v680, %v676
    %v749 = vpack.c.b16 %v681, %v677
    %v750 = vpack.c.b16 %v682, %v678
    %v751 = vpack.c.b16 %v683, %v679
    %v752 = vpack.c.b16 %v688, %v684
    %v753 = vpack.c.b16 %v689, %v685
    %v754 = vpack.c.b16 %v690, %v686
    %v755 = vpack.c.b16 %v691, %v687
    %820 = vmatprep.subr.bf16.mxu0 %v721
    %821 = vmatpush1.bf16.msra.mxu0 %v720
    %822 = vmatprep.subr.bf16.mxu0 %v717
    %823 = vmatpush1.bf16.msra.mxu0 %v716
    %824 = vmatprep.subr.bf16.mxu0 %v713
    %825 = vmatpush1.bf16.msra.mxu0 %v712
    %826 = vmatprep.subr.bf16.mxu0 %v709
    %827 = vmatpush1.bf16.msra.mxu0 %v708
    %828 = vmatprep.subr.bf16.mxu0 %v705
    %829 = vmatpush1.bf16.msra.mxu0 %v704
    %830 = vmatprep.subr.bf16.mxu0 %v701
    %831 = vmatpush1.bf16.msra.mxu0 %v700
    %832 = vmatprep.subr.bf16.mxu0 %v697
    %833 = vmatpush1.bf16.msra.mxu0 %v696
    %834 = vmatprep.subr.bf16.mxu0 %v693
    %835 = vmatpush1.bf16.msra.mxu0 %v692
    %836 = vmatprep.subr.bf16.mxu0 %v753
    %837 = vmatpush2.bf16.msra.mxu0 %v752
    %838 = vmatprep.subr.bf16.mxu0 %v749
    %839 = vmatpush2.bf16.msra.mxu0 %v748
    %840 = vmatprep.subr.bf16.mxu0 %v745
    %841 = vmatpush2.bf16.msra.mxu0 %v744
    %842 = vmatprep.subr.bf16.mxu0 %v741
    %843 = vmatpush2.bf16.msra.mxu0 %v740
    %844 = vmatprep.subr.bf16.mxu0 %v737
    %845 = vmatpush2.bf16.msra.mxu0 %v736
    %846 = vmatprep.subr.bf16.mxu0 %v733
    %847 = vmatpush2.bf16.msra.mxu0 %v732
    %848 = vmatprep.subr.bf16.mxu0 %v729
    %849 = vmatpush2.bf16.msra.mxu0 %v728
    %850 = vmatprep.subr.bf16.mxu0 %v725
    %851 = vmatpush2.bf16.msra.mxu0 %v724
    %852 = vmatprep.mubr.bf16.mxu0 %v499
    %853 = vmatmul.mubr.bf16.gmra.mxu0 %v498
    %v854 = vpop.f32.mrf.mxu0
    %v855 = vadd.f32 0.0, %v854
    %v856 = vpop.f32.mrf.mxu0
    %v857 = vadd.f32 0.0, %v856
    %v858 = vpop.f32.mrf.mxu0
    %v859 = vpop.f32.mrf.mxu0
    %860 = vdwg.mxu0
    %861 = vmatprep.subr.bf16.mxu0 %v723
    %862 = vmatpush1.bf16.msra.mxu0 %v722
    %863 = vmatprep.subr.bf16.mxu0 %v719
    %864 = vmatpush1.bf16.msra.mxu0 %v718
    %865 = vmatprep.subr.bf16.mxu0 %v715
    %866 = vmatpush1.bf16.msra.mxu0 %v714
    %867 = vmatprep.subr.bf16.mxu0 %v711
    %868 = vmatpush1.bf16.msra.mxu0 %v710
    %869 = vmatprep.subr.bf16.mxu0 %v707
    %870 = vmatpush1.bf16.msra.mxu0 %v706
    %871 = vmatprep.subr.bf16.mxu0 %v703
    %872 = vmatpush1.bf16.msra.mxu0 %v702
    %873 = vmatprep.subr.bf16.mxu0 %v699
    %874 = vmatpush1.bf16.msra.mxu0 %v698
    %875 = vmatprep.subr.bf16.mxu0 %v695
    %876 = vmatpush1.bf16.msra.mxu0 %v694
    %877 = vmatprep.subr.bf16.mxu0 %v755
    %878 = vmatpush2.bf16.msra.mxu0 %v754
    %879 = vmatprep.subr.bf16.mxu0 %v751
    %880 = vmatpush2.bf16.msra.mxu0 %v750
    %881 = vmatprep.subr.bf16.mxu0 %v747
    %882 = vmatpush2.bf16.msra.mxu0 %v746
    %883 = vmatprep.subr.bf16.mxu0 %v743
    %884 = vmatpush2.bf16.msra.mxu0 %v742
    %885 = vmatprep.subr.bf16.mxu0 %v739
    %886 = vmatpush2.bf16.msra.mxu0 %v738
    %887 = vmatprep.subr.bf16.mxu0 %v735
    %888 = vmatpush2.bf16.msra.mxu0 %v734
    %889 = vmatprep.subr.bf16.mxu0 %v731
    %890 = vmatpush2.bf16.msra.mxu0 %v730
    %891 = vmatprep.subr.bf16.mxu0 %v727
    %892 = vmatpush2.bf16.msra.mxu0 %v726
    %893 = vmatprep.mubr.bf16.mxu0 %v499
    %894 = vmatmul.mubr.bf16.gmra.mxu0 %v498
    %v895 = vpop.f32.mrf.mxu0
    %v896 = vadd.f32 0.0, %v895
    %v897 = vpop.f32.mrf.mxu0
    %v898 = vadd.f32 0.0, %v897
    %v899 = vpop.f32.mrf.mxu0
    %v900 = vpop.f32.mrf.mxu0
    %901 = vdwg.mxu0
    %v902 = vrot.slane %v855, 4
    %v903 = vadd.f32 %v855, %v902
    %v904 = vrot.slane %v903, 2
    %v905 = vadd.f32 %v903, %v904
    %v906 = vrot.slane %v905, 1
    %v907 = vadd.f32 %v905, %v906
    %v908 = vrot.slane %v857, 4
    %v909 = vadd.f32 %v857, %v908
    %v910 = vrot.slane %v909, 2
    %v911 = vadd.f32 %v909, %v910
    %v912 = vrot.slane %v911, 1
    %v913 = vadd.f32 %v911, %v912
    %v914 = vrot.slane %v896, 4
    %v915 = vadd.f32 %v896, %v914
    %v916 = vrot.slane %v915, 2
    %v917 = vadd.f32 %v915, %v916
    %v918 = vrot.slane %v917, 1
    %v919 = vadd.f32 %v917, %v918
    %v920 = vrot.slane %v898, 4
    %v921 = vadd.f32 %v898, %v920
    %v922 = vrot.slane %v921, 2
    %v923 = vadd.f32 %v921, %v922
    %v924 = vrot.slane %v923, 1
    %v925 = vadd.f32 %v923, %v924
    %v926 = vmul.f32 %v907, %v371
    %v927 = vmul.f32 %v913, %v371
    %v928 = vmul.f32 %v919, %v371
    %v929 = vmul.f32 %v925, %v371
    %v930 = vmul.f32 %v855, %v855
    %v931 = vmul.f32 %v857, %v857
    %v932 = vmul.f32 %v896, %v896
    %v933 = vmul.f32 %v898, %v898
    %v934 = vrot.slane %v930, 4
    %v935 = vadd.f32 %v930, %v934
    %v936 = vrot.slane %v935, 2
    %v937 = vadd.f32 %v935, %v936
    %v938 = vrot.slane %v937, 1
    %v939 = vadd.f32 %v937, %v938
    %v940 = vrot.slane %v931, 4
    %v941 = vadd.f32 %v931, %v940
    %v942 = vrot.slane %v941, 2
    %v943 = vadd.f32 %v941, %v942
    %v944 = vrot.slane %v943, 1
    %v945 = vadd.f32 %v943, %v944
    %v946 = vrot.slane %v932, 4
    %v947 = vadd.f32 %v932, %v946
    %v948 = vrot.slane %v947, 2
    %v949 = vadd.f32 %v947, %v948
    %v950 = vrot.slane %v949, 1
    %v951 = vadd.f32 %v949, %v950
    %v952 = vrot.slane %v933, 4
    %v953 = vadd.f32 %v933, %v952
    %v954 = vrot.slane %v953, 2
    %v955 = vadd.f32 %v953, %v954
    %v956 = vrot.slane %v955, 1
    %v957 = vadd.f32 %v955, %v956
    %v958 = vmul.f32 %v939, %v371
    %v959 = vmul.f32 %v945, %v371
    %v960 = vmul.f32 %v951, %v371
    %v961 = vmul.f32 %v957, %v371
    %v962 = vmul.f32 %v926, %v926
    %v963 = vmul.f32 %v927, %v927
    %v964 = vmul.f32 %v928, %v928
    %v965 = vmul.f32 %v929, %v929
    %v966 = vsub.f32 %v958, %v962
    %v967 = vsub.f32 %v959, %v963
    %v968 = vsub.f32 %v960, %v964
    %v969 = vsub.f32 %v961, %v965
    %v970 = vmax.f32 %v966, 0.0
    %v971 = vmax.f32 %v967, 0.0
    %v972 = vmax.f32 %v968, 0.0
    %v973 = vmax.f32 %v969, 0.0
    %v974 = vsub.f32 %v855, %v926
    %v975 = vsub.f32 %v857, %v927
    %v976 = vsub.f32 %v896, %v928
    %v977 = vsub.f32 %v898, %v929
    %v978 = vadd.f32 %v970, 0.8
    %v979 = vadd.f32 %v971, 0.8
    %v980 = vadd.f32 %v972, 0.8
    %v981 = vadd.f32 %v973, 0.8
    %v982 = vrsqrt.pop %v978
    %v983 = vrsqrt.pop %v979
    %v984 = vrsqrt.pop %v980
    %v985 = vrsqrt.pop %v981
    %v986 = vmul.f32 %v974, %v982
    %v987 = vmul.f32 %v975, %v983
    %v988 = vmul.f32 %v976, %v984
    %v989 = vmul.f32 %v977, %v985
    %v991 = vlaneseq
    %v992 = vshrl.u32 %v991, 7
    %v993 = vsub.s32 0, %v992
    %v994 = vrot.slane %v102, %v993
    %v995 = vlaneseq
    %v996 = vshrl.u32 %v995, 7
    %v997 = vsub.s32 1, %v996
    %v998 = vrot.slane %v102, %v997
    %v999 = vlaneseq
    %v1000 = vshrl.u32 %v999, 7
    %v1001 = vsub.s32 2, %v1000
    %v1002 = vrot.slane %v102, %v1001
    %v1003 = vlaneseq
    %v1004 = vshrl.u32 %v1003, 7
    %v1005 = vsub.s32 3, %v1004
    %v1006 = vrot.slane %v102, %v1005
    %v1011 = vmul.f32 %v986, %v994
    %v1012 = vmul.f32 %v987, %v998
    %v1013 = vmul.f32 %v988, %v1002
    %v1014 = vmul.f32 %v989, %v1006
    %v1016 = vlaneseq
    %v1017 = vshrl.u32 %v1016, 7
    %v1018 = vsub.s32 0, %v1017
    %v1019 = vrot.slane %v103, %v1018
    %v1020 = vlaneseq
    %v1021 = vshrl.u32 %v1020, 7
    %v1022 = vsub.s32 1, %v1021
    %v1023 = vrot.slane %v103, %v1022
    %v1024 = vlaneseq
    %v1025 = vshrl.u32 %v1024, 7
    %v1026 = vsub.s32 2, %v1025
    %v1027 = vrot.slane %v103, %v1026
    %v1028 = vlaneseq
    %v1029 = vshrl.u32 %v1028, 7
    %v1030 = vsub.s32 3, %v1029
    %v1031 = vrot.slane %v103, %v1030
    %v1036 = vadd.f32 %v1011, %v1019
    %v1037 = vadd.f32 %v1012, %v1023
    %v1038 = vadd.f32 %v1013, %v1027
    %v1039 = vadd.f32 %v1014, %v1031
    %v1040 = vmul.f32 %v1036, 0.2
    %v1041 = vmul.f32 %v1037, 0.2
    %v1042 = vmul.f32 %v1038, 0.2
    %v1043 = vmul.f32 %v1039, 0.2
    %v1044 = vmax.f32 %v1036, %v1040
    %v1045 = vmax.f32 %v1037, %v1041
    %v1046 = vmax.f32 %v1038, %v1042
    %v1047 = vmax.f32 %v1039, %v1043
    %s1048 = smul.u32 4, 64
    %s1049 = smul.u32 %s1048, 8
    %s1050 = sshll.u32 %s1049, 4
    %1051 = dma.done [#allocation4], %s1050
    %v1052 = vld [vmem:[#allocation2] sm:$0xff]
    %v1053 = vld [vmem:[#allocation2 + $0x8] sm:$0xff]
    %v1054 = vld [vmem:[#allocation2 + $0x10] sm:$0xff]
    %v1055 = vld [vmem:[#allocation2 + $0x18] sm:$0xff]
    %v1056 = vld [vmem:[#allocation2 + $0x20] sm:$0xff]
    %v1057 = vld [vmem:[#allocation2 + $0x28] sm:$0xff]
    %v1058 = vld [vmem:[#allocation2 + $0x30] sm:$0xff]
    %v1059 = vld [vmem:[#allocation2 + $0x38] sm:$0xff]
    %v1060 = vld [vmem:[#allocation2 + $0x40] sm:$0xff]
    %v1061 = vld [vmem:[#allocation2 + $0x48] sm:$0xff]
    %v1062 = vld [vmem:[#allocation2 + $0x50] sm:$0xff]
    %v1063 = vld [vmem:[#allocation2 + $0x58] sm:$0xff]
    %v1064 = vld [vmem:[#allocation2 + $0x60] sm:$0xff]
    %v1065 = vld [vmem:[#allocation2 + $0x68] sm:$0xff]
    %v1066 = vld [vmem:[#allocation2 + $0x70] sm:$0xff]
    %v1067 = vld [vmem:[#allocation2 + $0x78] sm:$0xff]
    %v1068 = vld [vmem:[#allocation2 + $0x80] sm:$0xff]
    %v1069 = vld [vmem:[#allocation2 + $0x88] sm:$0xff]
    %v1070 = vld [vmem:[#allocation2 + $0x90] sm:$0xff]
    %v1071 = vld [vmem:[#allocation2 + $0x98] sm:$0xff]
    %v1072 = vld [vmem:[#allocation2 + $0xa0] sm:$0xff]
    %v1073 = vld [vmem:[#allocation2 + $0xa8] sm:$0xff]
    %v1074 = vld [vmem:[#allocation2 + $0xb0] sm:$0xff]
    %v1075 = vld [vmem:[#allocation2 + $0xb8] sm:$0xff]
    %v1076 = vld [vmem:[#allocation2 + $0xc0] sm:$0xff]
    %v1077 = vld [vmem:[#allocation2 + $0xc8] sm:$0xff]
    %v1078 = vld [vmem:[#allocation2 + $0xd0] sm:$0xff]
    %v1079 = vld [vmem:[#allocation2 + $0xd8] sm:$0xff]
    %v1080 = vld [vmem:[#allocation2 + $0xe0] sm:$0xff]
    %v1081 = vld [vmem:[#allocation2 + $0xe8] sm:$0xff]
    %v1082 = vld [vmem:[#allocation2 + $0xf0] sm:$0xff]
    %v1083 = vld [vmem:[#allocation2 + $0xf8] sm:$0xff]
    %v1084 = vld [vmem:[#allocation2 + $0x100] sm:$0xff]
    %v1085 = vld [vmem:[#allocation2 + $0x108] sm:$0xff]
    %v1086 = vld [vmem:[#allocation2 + $0x110] sm:$0xff]
    %v1087 = vld [vmem:[#allocation2 + $0x118] sm:$0xff]
    %v1088 = vld [vmem:[#allocation2 + $0x120] sm:$0xff]
    %v1089 = vld [vmem:[#allocation2 + $0x128] sm:$0xff]
    %v1090 = vld [vmem:[#allocation2 + $0x130] sm:$0xff]
    %v1091 = vld [vmem:[#allocation2 + $0x138] sm:$0xff]
    %v1092 = vld [vmem:[#allocation2 + $0x140] sm:$0xff]
    %v1093 = vld [vmem:[#allocation2 + $0x148] sm:$0xff]
    %v1094 = vld [vmem:[#allocation2 + $0x150] sm:$0xff]
    %v1095 = vld [vmem:[#allocation2 + $0x158] sm:$0xff]
    %v1096 = vld [vmem:[#allocation2 + $0x160] sm:$0xff]
    %v1097 = vld [vmem:[#allocation2 + $0x168] sm:$0xff]
    %v1098 = vld [vmem:[#allocation2 + $0x170] sm:$0xff]
    %v1099 = vld [vmem:[#allocation2 + $0x178] sm:$0xff]
    %v1100 = vld [vmem:[#allocation2 + $0x180] sm:$0xff]
    %v1101 = vld [vmem:[#allocation2 + $0x188] sm:$0xff]
    %v1102 = vld [vmem:[#allocation2 + $0x190] sm:$0xff]
    %v1103 = vld [vmem:[#allocation2 + $0x198] sm:$0xff]
    %v1104 = vld [vmem:[#allocation2 + $0x1a0] sm:$0xff]
    %v1105 = vld [vmem:[#allocation2 + $0x1a8] sm:$0xff]
    %v1106 = vld [vmem:[#allocation2 + $0x1b0] sm:$0xff]
    %v1107 = vld [vmem:[#allocation2 + $0x1b8] sm:$0xff]
    %v1108 = vld [vmem:[#allocation2 + $0x1c0] sm:$0xff]
    %v1109 = vld [vmem:[#allocation2 + $0x1c8] sm:$0xff]
    %v1110 = vld [vmem:[#allocation2 + $0x1d0] sm:$0xff]
    %v1111 = vld [vmem:[#allocation2 + $0x1d8] sm:$0xff]
    %v1112 = vld [vmem:[#allocation2 + $0x1e0] sm:$0xff]
    %v1113 = vld [vmem:[#allocation2 + $0x1e8] sm:$0xff]
    %v1114 = vld [vmem:[#allocation2 + $0x1f0] sm:$0xff]
    %v1115 = vld [vmem:[#allocation2 + $0x1f8] sm:$0xff]
    %v1116 = vld [vmem:[#allocation2 + $0x200] sm:$0xff]
    %v1117 = vld [vmem:[#allocation2 + $0x208] sm:$0xff]
    %v1118 = vld [vmem:[#allocation2 + $0x210] sm:$0xff]
    %v1119 = vld [vmem:[#allocation2 + $0x218] sm:$0xff]
    %v1120 = vld [vmem:[#allocation2 + $0x220] sm:$0xff]
    %v1121 = vld [vmem:[#allocation2 + $0x228] sm:$0xff]
    %v1122 = vld [vmem:[#allocation2 + $0x230] sm:$0xff]
    %v1123 = vld [vmem:[#allocation2 + $0x238] sm:$0xff]
    %v1124 = vld [vmem:[#allocation2 + $0x240] sm:$0xff]
    %v1125 = vld [vmem:[#allocation2 + $0x248] sm:$0xff]
    %v1126 = vld [vmem:[#allocation2 + $0x250] sm:$0xff]
    %v1127 = vld [vmem:[#allocation2 + $0x258] sm:$0xff]
    %v1128 = vld [vmem:[#allocation2 + $0x260] sm:$0xff]
    %v1129 = vld [vmem:[#allocation2 + $0x268] sm:$0xff]
    %v1130 = vld [vmem:[#allocation2 + $0x270] sm:$0xff]
    %v1131 = vld [vmem:[#allocation2 + $0x278] sm:$0xff]
    %v1132 = vld [vmem:[#allocation2 + $0x280] sm:$0xff]
    %v1133 = vld [vmem:[#allocation2 + $0x288] sm:$0xff]
    %v1134 = vld [vmem:[#allocation2 + $0x290] sm:$0xff]
    %v1135 = vld [vmem:[#allocation2 + $0x298] sm:$0xff]
    %v1136 = vld [vmem:[#allocation2 + $0x2a0] sm:$0xff]
    %v1137 = vld [vmem:[#allocation2 + $0x2a8] sm:$0xff]
    %v1138 = vld [vmem:[#allocation2 + $0x2b0] sm:$0xff]
    %v1139 = vld [vmem:[#allocation2 + $0x2b8] sm:$0xff]
    %v1140 = vld [vmem:[#allocation2 + $0x2c0] sm:$0xff]
    %v1141 = vld [vmem:[#allocation2 + $0x2c8] sm:$0xff]
    %v1142 = vld [vmem:[#allocation2 + $0x2d0] sm:$0xff]
    %v1143 = vld [vmem:[#allocation2 + $0x2d8] sm:$0xff]
    %v1144 = vld [vmem:[#allocation2 + $0x2e0] sm:$0xff]
    %v1145 = vld [vmem:[#allocation2 + $0x2e8] sm:$0xff]
    %v1146 = vld [vmem:[#allocation2 + $0x2f0] sm:$0xff]
    %v1147 = vld [vmem:[#allocation2 + $0x2f8] sm:$0xff]
    %v1148 = vld [vmem:[#allocation2 + $0x300] sm:$0xff]
    %v1149 = vld [vmem:[#allocation2 + $0x308] sm:$0xff]
    %v1150 = vld [vmem:[#allocation2 + $0x310] sm:$0xff]
    %v1151 = vld [vmem:[#allocation2 + $0x318] sm:$0xff]
    %v1152 = vld [vmem:[#allocation2 + $0x320] sm:$0xff]
    %v1153 = vld [vmem:[#allocation2 + $0x328] sm:$0xff]
    %v1154 = vld [vmem:[#allocation2 + $0x330] sm:$0xff]
    %v1155 = vld [vmem:[#allocation2 + $0x338] sm:$0xff]
    %v1156 = vld [vmem:[#allocation2 + $0x340] sm:$0xff]
    %v1157 = vld [vmem:[#allocation2 + $0x348] sm:$0xff]
    %v1158 = vld [vmem:[#allocation2 + $0x350] sm:$0xff]
    %v1159 = vld [vmem:[#allocation2 + $0x358] sm:$0xff]
    %v1160 = vld [vmem:[#allocation2 + $0x360] sm:$0xff]
    %v1161 = vld [vmem:[#allocation2 + $0x368] sm:$0xff]
    %v1162 = vld [vmem:[#allocation2 + $0x370] sm:$0xff]
    %v1163 = vld [vmem:[#allocation2 + $0x378] sm:$0xff]
    %v1164 = vld [vmem:[#allocation2 + $0x380] sm:$0xff]
    %v1165 = vld [vmem:[#allocation2 + $0x388] sm:$0xff]
    %v1166 = vld [vmem:[#allocation2 + $0x390] sm:$0xff]
    %v1167 = vld [vmem:[#allocation2 + $0x398] sm:$0xff]
    %v1168 = vld [vmem:[#allocation2 + $0x3a0] sm:$0xff]
    %v1169 = vld [vmem:[#allocation2 + $0x3a8] sm:$0xff]
    %v1170 = vld [vmem:[#allocation2 + $0x3b0] sm:$0xff]
    %v1171 = vld [vmem:[#allocation2 + $0x3b8] sm:$0xff]
    %v1172 = vld [vmem:[#allocation2 + $0x3c0] sm:$0xff]
    %v1173 = vld [vmem:[#allocation2 + $0x3c8] sm:$0xff]
    %v1174 = vld [vmem:[#allocation2 + $0x3d0] sm:$0xff]
    %v1175 = vld [vmem:[#allocation2 + $0x3d8] sm:$0xff]
    %v1176 = vld [vmem:[#allocation2 + $0x3e0] sm:$0xff]
    %v1177 = vld [vmem:[#allocation2 + $0x3e8] sm:$0xff]
    %v1178 = vld [vmem:[#allocation2 + $0x3f0] sm:$0xff]
    %v1179 = vld [vmem:[#allocation2 + $0x3f8] sm:$0xff]
    %v1180 = vld [vmem:[#allocation2 + $0x400] sm:$0xff]
    %v1181 = vld [vmem:[#allocation2 + $0x408] sm:$0xff]
    %v1182 = vld [vmem:[#allocation2 + $0x410] sm:$0xff]
    %v1183 = vld [vmem:[#allocation2 + $0x418] sm:$0xff]
    %v1184 = vld [vmem:[#allocation2 + $0x420] sm:$0xff]
    %v1185 = vld [vmem:[#allocation2 + $0x428] sm:$0xff]
    %v1186 = vld [vmem:[#allocation2 + $0x430] sm:$0xff]
    %v1187 = vld [vmem:[#allocation2 + $0x438] sm:$0xff]
    %v1188 = vld [vmem:[#allocation2 + $0x440] sm:$0xff]
    %v1189 = vld [vmem:[#allocation2 + $0x448] sm:$0xff]
    %v1190 = vld [vmem:[#allocation2 + $0x450] sm:$0xff]
    %v1191 = vld [vmem:[#allocation2 + $0x458] sm:$0xff]
    %v1192 = vld [vmem:[#allocation2 + $0x460] sm:$0xff]
    %v1193 = vld [vmem:[#allocation2 + $0x468] sm:$0xff]
    %v1194 = vld [vmem:[#allocation2 + $0x470] sm:$0xff]
    %v1195 = vld [vmem:[#allocation2 + $0x478] sm:$0xff]
    %v1196 = vld [vmem:[#allocation2 + $0x480] sm:$0xff]
    %v1197 = vld [vmem:[#allocation2 + $0x488] sm:$0xff]
    %v1198 = vld [vmem:[#allocation2 + $0x490] sm:$0xff]
    %v1199 = vld [vmem:[#allocation2 + $0x498] sm:$0xff]
    %v1200 = vld [vmem:[#allocation2 + $0x4a0] sm:$0xff]
    %v1201 = vld [vmem:[#allocation2 + $0x4a8] sm:$0xff]
    %v1202 = vld [vmem:[#allocation2 + $0x4b0] sm:$0xff]
    %v1203 = vld [vmem:[#allocation2 + $0x4b8] sm:$0xff]
    %v1204 = vld [vmem:[#allocation2 + $0x4c0] sm:$0xff]
    %v1205 = vld [vmem:[#allocation2 + $0x4c8] sm:$0xff]
    %v1206 = vld [vmem:[#allocation2 + $0x4d0] sm:$0xff]
    %v1207 = vld [vmem:[#allocation2 + $0x4d8] sm:$0xff]
    %v1208 = vld [vmem:[#allocation2 + $0x4e0] sm:$0xff]
    %v1209 = vld [vmem:[#allocation2 + $0x4e8] sm:$0xff]
    %v1210 = vld [vmem:[#allocation2 + $0x4f0] sm:$0xff]
    %v1211 = vld [vmem:[#allocation2 + $0x4f8] sm:$0xff]
    %v1212 = vld [vmem:[#allocation2 + $0x500] sm:$0xff]
    %v1213 = vld [vmem:[#allocation2 + $0x508] sm:$0xff]
    %v1214 = vld [vmem:[#allocation2 + $0x510] sm:$0xff]
    %v1215 = vld [vmem:[#allocation2 + $0x518] sm:$0xff]
    %v1216 = vld [vmem:[#allocation2 + $0x520] sm:$0xff]
    %v1217 = vld [vmem:[#allocation2 + $0x528] sm:$0xff]
    %v1218 = vld [vmem:[#allocation2 + $0x530] sm:$0xff]
    %v1219 = vld [vmem:[#allocation2 + $0x538] sm:$0xff]
    %v1220 = vld [vmem:[#allocation2 + $0x540] sm:$0xff]
    %v1221 = vld [vmem:[#allocation2 + $0x548] sm:$0xff]
    %v1222 = vld [vmem:[#allocation2 + $0x550] sm:$0xff]
    %v1223 = vld [vmem:[#allocation2 + $0x558] sm:$0xff]
    %v1224 = vld [vmem:[#allocation2 + $0x560] sm:$0xff]
    %v1225 = vld [vmem:[#allocation2 + $0x568] sm:$0xff]
    %v1226 = vld [vmem:[#allocation2 + $0x570] sm:$0xff]
    %v1227 = vld [vmem:[#allocation2 + $0x578] sm:$0xff]
    %v1228 = vld [vmem:[#allocation2 + $0x580] sm:$0xff]
    %v1229 = vld [vmem:[#allocation2 + $0x588] sm:$0xff]
    %v1230 = vld [vmem:[#allocation2 + $0x590] sm:$0xff]
    %v1231 = vld [vmem:[#allocation2 + $0x598] sm:$0xff]
    %v1232 = vld [vmem:[#allocation2 + $0x5a0] sm:$0xff]
    %v1233 = vld [vmem:[#allocation2 + $0x5a8] sm:$0xff]
    %v1234 = vld [vmem:[#allocation2 + $0x5b0] sm:$0xff]
    %v1235 = vld [vmem:[#allocation2 + $0x5b8] sm:$0xff]
    %v1236 = vld [vmem:[#allocation2 + $0x5c0] sm:$0xff]
    %v1237 = vld [vmem:[#allocation2 + $0x5c8] sm:$0xff]
    %v1238 = vld [vmem:[#allocation2 + $0x5d0] sm:$0xff]
    %v1239 = vld [vmem:[#allocation2 + $0x5d8] sm:$0xff]
    %v1240 = vld [vmem:[#allocation2 + $0x5e0] sm:$0xff]
    %v1241 = vld [vmem:[#allocation2 + $0x5e8] sm:$0xff]
    %v1242 = vld [vmem:[#allocation2 + $0x5f0] sm:$0xff]
    %v1243 = vld [vmem:[#allocation2 + $0x5f8] sm:$0xff]
    %v1244 = vld [vmem:[#allocation2 + $0x600] sm:$0xff]
    %v1245 = vld [vmem:[#allocation2 + $0x608] sm:$0xff]
    %v1246 = vld [vmem:[#allocation2 + $0x610] sm:$0xff]
    %v1247 = vld [vmem:[#allocation2 + $0x618] sm:$0xff]
    %v1248 = vld [vmem:[#allocation2 + $0x620] sm:$0xff]
    %v1249 = vld [vmem:[#allocation2 + $0x628] sm:$0xff]
    %v1250 = vld [vmem:[#allocation2 + $0x630] sm:$0xff]
    %v1251 = vld [vmem:[#allocation2 + $0x638] sm:$0xff]
    %v1252 = vld [vmem:[#allocation2 + $0x640] sm:$0xff]
    %v1253 = vld [vmem:[#allocation2 + $0x648] sm:$0xff]
    %v1254 = vld [vmem:[#allocation2 + $0x650] sm:$0xff]
    %v1255 = vld [vmem:[#allocation2 + $0x658] sm:$0xff]
    %v1256 = vld [vmem:[#allocation2 + $0x660] sm:$0xff]
    %v1257 = vld [vmem:[#allocation2 + $0x668] sm:$0xff]
    %v1258 = vld [vmem:[#allocation2 + $0x670] sm:$0xff]
    %v1259 = vld [vmem:[#allocation2 + $0x678] sm:$0xff]
    %v1260 = vld [vmem:[#allocation2 + $0x680] sm:$0xff]
    %v1261 = vld [vmem:[#allocation2 + $0x688] sm:$0xff]
    %v1262 = vld [vmem:[#allocation2 + $0x690] sm:$0xff]
    %v1263 = vld [vmem:[#allocation2 + $0x698] sm:$0xff]
    %v1264 = vld [vmem:[#allocation2 + $0x6a0] sm:$0xff]
    %v1265 = vld [vmem:[#allocation2 + $0x6a8] sm:$0xff]
    %v1266 = vld [vmem:[#allocation2 + $0x6b0] sm:$0xff]
    %v1267 = vld [vmem:[#allocation2 + $0x6b8] sm:$0xff]
    %v1268 = vld [vmem:[#allocation2 + $0x6c0] sm:$0xff]
    %v1269 = vld [vmem:[#allocation2 + $0x6c8] sm:$0xff]
    %v1270 = vld [vmem:[#allocation2 + $0x6d0] sm:$0xff]
    %v1271 = vld [vmem:[#allocation2 + $0x6d8] sm:$0xff]
    %v1272 = vld [vmem:[#allocation2 + $0x6e0] sm:$0xff]
    %v1273 = vld [vmem:[#allocation2 + $0x6e8] sm:$0xff]
    %v1274 = vld [vmem:[#allocation2 + $0x6f0] sm:$0xff]
    %v1275 = vld [vmem:[#allocation2 + $0x6f8] sm:$0xff]
    %v1276 = vld [vmem:[#allocation2 + $0x700] sm:$0xff]
    %v1277 = vld [vmem:[#allocation2 + $0x708] sm:$0xff]
    %v1278 = vld [vmem:[#allocation2 + $0x710] sm:$0xff]
    %v1279 = vld [vmem:[#allocation2 + $0x718] sm:$0xff]
    %v1280 = vld [vmem:[#allocation2 + $0x720] sm:$0xff]
    %v1281 = vld [vmem:[#allocation2 + $0x728] sm:$0xff]
    %v1282 = vld [vmem:[#allocation2 + $0x730] sm:$0xff]
    %v1283 = vld [vmem:[#allocation2 + $0x738] sm:$0xff]
    %v1284 = vld [vmem:[#allocation2 + $0x740] sm:$0xff]
    %v1285 = vld [vmem:[#allocation2 + $0x748] sm:$0xff]
    %v1286 = vld [vmem:[#allocation2 + $0x750] sm:$0xff]
    %v1287 = vld [vmem:[#allocation2 + $0x758] sm:$0xff]
    %v1288 = vld [vmem:[#allocation2 + $0x760] sm:$0xff]
    %v1289 = vld [vmem:[#allocation2 + $0x768] sm:$0xff]
    %v1290 = vld [vmem:[#allocation2 + $0x770] sm:$0xff]
    %v1291 = vld [vmem:[#allocation2 + $0x778] sm:$0xff]
    %v1292 = vld [vmem:[#allocation2 + $0x780] sm:$0xff]
    %v1293 = vld [vmem:[#allocation2 + $0x788] sm:$0xff]
    %v1294 = vld [vmem:[#allocation2 + $0x790] sm:$0xff]
    %v1295 = vld [vmem:[#allocation2 + $0x798] sm:$0xff]
    %v1296 = vld [vmem:[#allocation2 + $0x7a0] sm:$0xff]
    %v1297 = vld [vmem:[#allocation2 + $0x7a8] sm:$0xff]
    %v1298 = vld [vmem:[#allocation2 + $0x7b0] sm:$0xff]
    %v1299 = vld [vmem:[#allocation2 + $0x7b8] sm:$0xff]
    %v1300 = vld [vmem:[#allocation2 + $0x7c0] sm:$0xff]
    %v1301 = vld [vmem:[#allocation2 + $0x7c8] sm:$0xff]
    %v1302 = vld [vmem:[#allocation2 + $0x7d0] sm:$0xff]
    %v1303 = vld [vmem:[#allocation2 + $0x7d8] sm:$0xff]
    %v1304 = vld [vmem:[#allocation2 + $0x7e0] sm:$0xff]
    %v1305 = vld [vmem:[#allocation2 + $0x7e8] sm:$0xff]
    %v1306 = vld [vmem:[#allocation2 + $0x7f0] sm:$0xff]
    %v1307 = vld [vmem:[#allocation2 + $0x7f8] sm:$0xff]
    %v1308 = vpack.c.bf16 %v1044, %v1044
    %v1309 = vpack.c.bf16 %v1045, %v1045
    %v1310 = vpack.c.bf16 %v1046, %v1046
    %v1311 = vpack.c.bf16 %v1047, %v1047
    %v1568 = vunpack.c.l.b16 %v1052
    %v1569 = vunpack.c.h.b16 %v1052
    %v1570 = vunpack.c.l.b16 %v1053
    %v1571 = vunpack.c.h.b16 %v1053
    %v1572 = vunpack.c.l.b16 %v1054
    %v1573 = vunpack.c.h.b16 %v1054
    %v1574 = vunpack.c.l.b16 %v1055
    %v1575 = vunpack.c.h.b16 %v1055
    %v1576 = vunpack.c.l.b16 %v1056
    %v1577 = vunpack.c.h.b16 %v1056
    %v1578 = vunpack.c.l.b16 %v1057
    %v1579 = vunpack.c.h.b16 %v1057
    %v1580 = vunpack.c.l.b16 %v1058
    %v1581 = vunpack.c.h.b16 %v1058
    %v1582 = vunpack.c.l.b16 %v1059
    %v1583 = vunpack.c.h.b16 %v1059
    %v1584 = vunpack.c.l.b16 %v1060
    %v1585 = vunpack.c.h.b16 %v1060
    %v1586 = vunpack.c.l.b16 %v1061
    %v1587 = vunpack.c.h.b16 %v1061
    %v1588 = vunpack.c.l.b16 %v1062
    %v1589 = vunpack.c.h.b16 %v1062
    %v1590 = vunpack.c.l.b16 %v1063
    %v1591 = vunpack.c.h.b16 %v1063
    %v1592 = vunpack.c.l.b16 %v1064
    %v1593 = vunpack.c.h.b16 %v1064
    %v1594 = vunpack.c.l.b16 %v1065
    %v1595 = vunpack.c.h.b16 %v1065
    %v1596 = vunpack.c.l.b16 %v1066
    %v1597 = vunpack.c.h.b16 %v1066
    %v1598 = vunpack.c.l.b16 %v1067
    %v1599 = vunpack.c.h.b16 %v1067
    %v1600 = vunpack.c.l.b16 %v1068
    %v1601 = vunpack.c.h.b16 %v1068
    %v1602 = vunpack.c.l.b16 %v1069
    %v1603 = vunpack.c.h.b16 %v1069
    %v1604 = vunpack.c.l.b16 %v1070
    %v1605 = vunpack.c.h.b16 %v1070
    %v1606 = vunpack.c.l.b16 %v1071
    %v1607 = vunpack.c.h.b16 %v1071
    %v1608 = vunpack.c.l.b16 %v1072
    %v1609 = vunpack.c.h.b16 %v1072
    %v1610 = vunpack.c.l.b16 %v1073
    %v1611 = vunpack.c.h.b16 %v1073
    %v1612 = vunpack.c.l.b16 %v1074
    %v1613 = vunpack.c.h.b16 %v1074
    %v1614 = vunpack.c.l.b16 %v1075
    %v1615 = vunpack.c.h.b16 %v1075
    %v1616 = vunpack.c.l.b16 %v1076
    %v1617 = vunpack.c.h.b16 %v1076
    %v1618 = vunpack.c.l.b16 %v1077
    %v1619 = vunpack.c.h.b16 %v1077
    %v1620 = vunpack.c.l.b16 %v1078
    %v1621 = vunpack.c.h.b16 %v1078
    %v1622 = vunpack.c.l.b16 %v1079
    %v1623 = vunpack.c.h.b16 %v1079
    %v1624 = vunpack.c.l.b16 %v1080
    %v1625 = vunpack.c.h.b16 %v1080
    %v1626 = vunpack.c.l.b16 %v1081
    %v1627 = vunpack.c.h.b16 %v1081
    %v1628 = vunpack.c.l.b16 %v1082
    %v1629 = vunpack.c.h.b16 %v1082
    %v1630 = vunpack.c.l.b16 %v1083
    %v1631 = vunpack.c.h.b16 %v1083
    %v1632 = vunpack.c.l.b16 %v1084
    %v1633 = vunpack.c.h.b16 %v1084
    %v1634 = vunpack.c.l.b16 %v1085
    %v1635 = vunpack.c.h.b16 %v1085
    %v1636 = vunpack.c.l.b16 %v1086
    %v1637 = vunpack.c.h.b16 %v1086
    %v1638 = vunpack.c.l.b16 %v1087
    %v1639 = vunpack.c.h.b16 %v1087
    %v1640 = vunpack.c.l.b16 %v1088
    %v1641 = vunpack.c.h.b16 %v1088
    %v1642 = vunpack.c.l.b16 %v1089
    %v1643 = vunpack.c.h.b16 %v1089
    %v1644 = vunpack.c.l.b16 %v1090
    %v1645 = vunpack.c.h.b16 %v1090
    %v1646 = vunpack.c.l.b16 %v1091
    %v1647 = vunpack.c.h.b16 %v1091
    %v1648 = vunpack.c.l.b16 %v1092
    %v1649 = vunpack.c.h.b16 %v1092
    %v1650 = vunpack.c.l.b16 %v1093
    %v1651 = vunpack.c.h.b16 %v1093
    %v1652 = vunpack.c.l.b16 %v1094
    %v1653 = vunpack.c.h.b16 %v1094
    %v1654 = vunpack.c.l.b16 %v1095
    %v1655 = vunpack.c.h.b16 %v1095
    %v1656 = vunpack.c.l.b16 %v1096
    %v1657 = vunpack.c.h.b16 %v1096
    %v1658 = vunpack.c.l.b16 %v1097
    %v1659 = vunpack.c.h.b16 %v1097
    %v1660 = vunpack.c.l.b16 %v1098
    %v1661 = vunpack.c.h.b16 %v1098
    %v1662 = vunpack.c.l.b16 %v1099
    %v1663 = vunpack.c.h.b16 %v1099
    %v1664 = vunpack.c.l.b16 %v1100
    %v1665 = vunpack.c.h.b16 %v1100
    %v1666 = vunpack.c.l.b16 %v1101
    %v1667 = vunpack.c.h.b16 %v1101
    %v1668 = vunpack.c.l.b16 %v1102
    %v1669 = vunpack.c.h.b16 %v1102
    %v1670 = vunpack.c.l.b16 %v1103
    %v1671 = vunpack.c.h.b16 %v1103
    %v1672 = vunpack.c.l.b16 %v1104
    %v1673 = vunpack.c.h.b16 %v1104
    %v1674 = vunpack.c.l.b16 %v1105
    %v1675 = vunpack.c.h.b16 %v1105
    %v1676 = vunpack.c.l.b16 %v1106
    %v1677 = vunpack.c.h.b16 %v1106
    %v1678 = vunpack.c.l.b16 %v1107
    %v1679 = vunpack.c.h.b16 %v1107
    %v1680 = vunpack.c.l.b16 %v1108
    %v1681 = vunpack.c.h.b16 %v1108
    %v1682 = vunpack.c.l.b16 %v1109
    %v1683 = vunpack.c.h.b16 %v1109
    %v1684 = vunpack.c.l.b16 %v1110
    %v1685 = vunpack.c.h.b16 %v1110
    %v1686 = vunpack.c.l.b16 %v1111
    %v1687 = vunpack.c.h.b16 %v1111
    %v1688 = vunpack.c.l.b16 %v1112
    %v1689 = vunpack.c.h.b16 %v1112
    %v1690 = vunpack.c.l.b16 %v1113
    %v1691 = vunpack.c.h.b16 %v1113
    %v1692 = vunpack.c.l.b16 %v1114
    %v1693 = vunpack.c.h.b16 %v1114
    %v1694 = vunpack.c.l.b16 %v1115
    %v1695 = vunpack.c.h.b16 %v1115
    %v1696 = vunpack.c.l.b16 %v1116
    %v1697 = vunpack.c.h.b16 %v1116
    %v1698 = vunpack.c.l.b16 %v1117
    %v1699 = vunpack.c.h.b16 %v1117
    %v1700 = vunpack.c.l.b16 %v1118
    %v1701 = vunpack.c.h.b16 %v1118
    %v1702 = vunpack.c.l.b16 %v1119
    %v1703 = vunpack.c.h.b16 %v1119
    %v1704 = vunpack.c.l.b16 %v1120
    %v1705 = vunpack.c.h.b16 %v1120
    %v1706 = vunpack.c.l.b16 %v1121
    %v1707 = vunpack.c.h.b16 %v1121
    %v1708 = vunpack.c.l.b16 %v1122
    %v1709 = vunpack.c.h.b16 %v1122
    %v1710 = vunpack.c.l.b16 %v1123
    %v1711 = vunpack.c.h.b16 %v1123
    %v1712 = vunpack.c.l.b16 %v1124
    %v1713 = vunpack.c.h.b16 %v1124
    %v1714 = vunpack.c.l.b16 %v1125
    %v1715 = vunpack.c.h.b16 %v1125
    %v1716 = vunpack.c.l.b16 %v1126
    %v1717 = vunpack.c.h.b16 %v1126
    %v1718 = vunpack.c.l.b16 %v1127
    %v1719 = vunpack.c.h.b16 %v1127
    %v1720 = vunpack.c.l.b16 %v1128
    %v1721 = vunpack.c.h.b16 %v1128
    %v1722 = vunpack.c.l.b16 %v1129
    %v1723 = vunpack.c.h.b16 %v1129
    %v1724 = vunpack.c.l.b16 %v1130
    %v1725 = vunpack.c.h.b16 %v1130
    %v1726 = vunpack.c.l.b16 %v1131
    %v1727 = vunpack.c.h.b16 %v1131
    %v1728 = vunpack.c.l.b16 %v1132
    %v1729 = vunpack.c.h.b16 %v1132
    %v1730 = vunpack.c.l.b16 %v1133
    %v1731 = vunpack.c.h.b16 %v1133
    %v1732 = vunpack.c.l.b16 %v1134
    %v1733 = vunpack.c.h.b16 %v1134
    %v1734 = vunpack.c.l.b16 %v1135
    %v1735 = vunpack.c.h.b16 %v1135
    %v1736 = vunpack.c.l.b16 %v1136
    %v1737 = vunpack.c.h.b16 %v1136
    %v1738 = vunpack.c.l.b16 %v1137
    %v1739 = vunpack.c.h.b16 %v1137
    %v1740 = vunpack.c.l.b16 %v1138
    %v1741 = vunpack.c.h.b16 %v1138
    %v1742 = vunpack.c.l.b16 %v1139
    %v1743 = vunpack.c.h.b16 %v1139
    %v1744 = vunpack.c.l.b16 %v1140
    %v1745 = vunpack.c.h.b16 %v1140
    %v1746 = vunpack.c.l.b16 %v1141
    %v1747 = vunpack.c.h.b16 %v1141
    %v1748 = vunpack.c.l.b16 %v1142
    %v1749 = vunpack.c.h.b16 %v1142
    %v1750 = vunpack.c.l.b16 %v1143
    %v1751 = vunpack.c.h.b16 %v1143
    %v1752 = vunpack.c.l.b16 %v1144
    %v1753 = vunpack.c.h.b16 %v1144
    %v1754 = vunpack.c.l.b16 %v1145
    %v1755 = vunpack.c.h.b16 %v1145
    %v1756 = vunpack.c.l.b16 %v1146
    %v1757 = vunpack.c.h.b16 %v1146
    %v1758 = vunpack.c.l.b16 %v1147
    %v1759 = vunpack.c.h.b16 %v1147
    %v1760 = vunpack.c.l.b16 %v1148
    %v1761 = vunpack.c.h.b16 %v1148
    %v1762 = vunpack.c.l.b16 %v1149
    %v1763 = vunpack.c.h.b16 %v1149
    %v1764 = vunpack.c.l.b16 %v1150
    %v1765 = vunpack.c.h.b16 %v1150
    %v1766 = vunpack.c.l.b16 %v1151
    %v1767 = vunpack.c.h.b16 %v1151
    %v1768 = vunpack.c.l.b16 %v1152
    %v1769 = vunpack.c.h.b16 %v1152
    %v1770 = vunpack.c.l.b16 %v1153
    %v1771 = vunpack.c.h.b16 %v1153
    %v1772 = vunpack.c.l.b16 %v1154
    %v1773 = vunpack.c.h.b16 %v1154
    %v1774 = vunpack.c.l.b16 %v1155
    %v1775 = vunpack.c.h.b16 %v1155
    %v1776 = vunpack.c.l.b16 %v1156
    %v1777 = vunpack.c.h.b16 %v1156
    %v1778 = vunpack.c.l.b16 %v1157
    %v1779 = vunpack.c.h.b16 %v1157
    %v1780 = vunpack.c.l.b16 %v1158
    %v1781 = vunpack.c.h.b16 %v1158
    %v1782 = vunpack.c.l.b16 %v1159
    %v1783 = vunpack.c.h.b16 %v1159
    %v1784 = vunpack.c.l.b16 %v1160
    %v1785 = vunpack.c.h.b16 %v1160
    %v1786 = vunpack.c.l.b16 %v1161
    %v1787 = vunpack.c.h.b16 %v1161
    %v1788 = vunpack.c.l.b16 %v1162
    %v1789 = vunpack.c.h.b16 %v1162
    %v1790 = vunpack.c.l.b16 %v1163
    %v1791 = vunpack.c.h.b16 %v1163
    %v1792 = vunpack.c.l.b16 %v1164
    %v1793 = vunpack.c.h.b16 %v1164
    %v1794 = vunpack.c.l.b16 %v1165
    %v1795 = vunpack.c.h.b16 %v1165
    %v1796 = vunpack.c.l.b16 %v1166
    %v1797 = vunpack.c.h.b16 %v1166
    %v1798 = vunpack.c.l.b16 %v1167
    %v1799 = vunpack.c.h.b16 %v1167
    %v1800 = vunpack.c.l.b16 %v1168
    %v1801 = vunpack.c.h.b16 %v1168
    %v1802 = vunpack.c.l.b16 %v1169
    %v1803 = vunpack.c.h.b16 %v1169
    %v1804 = vunpack.c.l.b16 %v1170
    %v1805 = vunpack.c.h.b16 %v1170
    %v1806 = vunpack.c.l.b16 %v1171
    %v1807 = vunpack.c.h.b16 %v1171
    %v1808 = vunpack.c.l.b16 %v1172
    %v1809 = vunpack.c.h.b16 %v1172
    %v1810 = vunpack.c.l.b16 %v1173
    %v1811 = vunpack.c.h.b16 %v1173
    %v1812 = vunpack.c.l.b16 %v1174
    %v1813 = vunpack.c.h.b16 %v1174
    %v1814 = vunpack.c.l.b16 %v1175
    %v1815 = vunpack.c.h.b16 %v1175
    %v1816 = vunpack.c.l.b16 %v1176
    %v1817 = vunpack.c.h.b16 %v1176
    %v1818 = vunpack.c.l.b16 %v1177
    %v1819 = vunpack.c.h.b16 %v1177
    %v1820 = vunpack.c.l.b16 %v1178
    %v1821 = vunpack.c.h.b16 %v1178
    %v1822 = vunpack.c.l.b16 %v1179
    %v1823 = vunpack.c.h.b16 %v1179
    %v1824 = vunpack.c.l.b16 %v1180
    %v1825 = vunpack.c.h.b16 %v1180
    %v1826 = vunpack.c.l.b16 %v1181
    %v1827 = vunpack.c.h.b16 %v1181
    %v1828 = vunpack.c.l.b16 %v1182
    %v1829 = vunpack.c.h.b16 %v1182
    %v1830 = vunpack.c.l.b16 %v1183
    %v1831 = vunpack.c.h.b16 %v1183
    %v1832 = vunpack.c.l.b16 %v1184
    %v1833 = vunpack.c.h.b16 %v1184
    %v1834 = vunpack.c.l.b16 %v1185
    %v1835 = vunpack.c.h.b16 %v1185
    %v1836 = vunpack.c.l.b16 %v1186
    %v1837 = vunpack.c.h.b16 %v1186
    %v1838 = vunpack.c.l.b16 %v1187
    %v1839 = vunpack.c.h.b16 %v1187
    %v1840 = vunpack.c.l.b16 %v1188
    %v1841 = vunpack.c.h.b16 %v1188
    %v1842 = vunpack.c.l.b16 %v1189
    %v1843 = vunpack.c.h.b16 %v1189
    %v1844 = vunpack.c.l.b16 %v1190
    %v1845 = vunpack.c.h.b16 %v1190
    %v1846 = vunpack.c.l.b16 %v1191
    %v1847 = vunpack.c.h.b16 %v1191
    %v1848 = vunpack.c.l.b16 %v1192
    %v1849 = vunpack.c.h.b16 %v1192
    %v1850 = vunpack.c.l.b16 %v1193
    %v1851 = vunpack.c.h.b16 %v1193
    %v1852 = vunpack.c.l.b16 %v1194
    %v1853 = vunpack.c.h.b16 %v1194
    %v1854 = vunpack.c.l.b16 %v1195
    %v1855 = vunpack.c.h.b16 %v1195
    %v1856 = vunpack.c.l.b16 %v1196
    %v1857 = vunpack.c.h.b16 %v1196
    %v1858 = vunpack.c.l.b16 %v1197
    %v1859 = vunpack.c.h.b16 %v1197
    %v1860 = vunpack.c.l.b16 %v1198
    %v1861 = vunpack.c.h.b16 %v1198
    %v1862 = vunpack.c.l.b16 %v1199
    %v1863 = vunpack.c.h.b16 %v1199
    %v1864 = vunpack.c.l.b16 %v1200
    %v1865 = vunpack.c.h.b16 %v1200
    %v1866 = vunpack.c.l.b16 %v1201
    %v1867 = vunpack.c.h.b16 %v1201
    %v1868 = vunpack.c.l.b16 %v1202
    %v1869 = vunpack.c.h.b16 %v1202
    %v1870 = vunpack.c.l.b16 %v1203
    %v1871 = vunpack.c.h.b16 %v1203
    %v1872 = vunpack.c.l.b16 %v1204
    %v1873 = vunpack.c.h.b16 %v1204
    %v1874 = vunpack.c.l.b16 %v1205
    %v1875 = vunpack.c.h.b16 %v1205
    %v1876 = vunpack.c.l.b16 %v1206
    %v1877 = vunpack.c.h.b16 %v1206
    %v1878 = vunpack.c.l.b16 %v1207
    %v1879 = vunpack.c.h.b16 %v1207
    %v1880 = vunpack.c.l.b16 %v1208
    %v1881 = vunpack.c.h.b16 %v1208
    %v1882 = vunpack.c.l.b16 %v1209
    %v1883 = vunpack.c.h.b16 %v1209
    %v1884 = vunpack.c.l.b16 %v1210
    %v1885 = vunpack.c.h.b16 %v1210
    %v1886 = vunpack.c.l.b16 %v1211
    %v1887 = vunpack.c.h.b16 %v1211
    %v1888 = vunpack.c.l.b16 %v1212
    %v1889 = vunpack.c.h.b16 %v1212
    %v1890 = vunpack.c.l.b16 %v1213
    %v1891 = vunpack.c.h.b16 %v1213
    %v1892 = vunpack.c.l.b16 %v1214
    %v1893 = vunpack.c.h.b16 %v1214
    %v1894 = vunpack.c.l.b16 %v1215
    %v1895 = vunpack.c.h.b16 %v1215
    %v1896 = vunpack.c.l.b16 %v1216
    %v1897 = vunpack.c.h.b16 %v1216
    %v1898 = vunpack.c.l.b16 %v1217
    %v1899 = vunpack.c.h.b16 %v1217
    %v1900 = vunpack.c.l.b16 %v1218
    %v1901 = vunpack.c.h.b16 %v1218
    %v1902 = vunpack.c.l.b16 %v1219
    %v1903 = vunpack.c.h.b16 %v1219
    %v1904 = vunpack.c.l.b16 %v1220
    %v1905 = vunpack.c.h.b16 %v1220
    %v1906 = vunpack.c.l.b16 %v1221
    %v1907 = vunpack.c.h.b16 %v1221
    %v1908 = vunpack.c.l.b16 %v1222
    %v1909 = vunpack.c.h.b16 %v1222
    %v1910 = vunpack.c.l.b16 %v1223
    %v1911 = vunpack.c.h.b16 %v1223
    %v1912 = vunpack.c.l.b16 %v1224
    %v1913 = vunpack.c.h.b16 %v1224
    %v1914 = vunpack.c.l.b16 %v1225
    %v1915 = vunpack.c.h.b16 %v1225
    %v1916 = vunpack.c.l.b16 %v1226
    %v1917 = vunpack.c.h.b16 %v1226
    %v1918 = vunpack.c.l.b16 %v1227
    %v1919 = vunpack.c.h.b16 %v1227
    %v1920 = vunpack.c.l.b16 %v1228
    %v1921 = vunpack.c.h.b16 %v1228
    %v1922 = vunpack.c.l.b16 %v1229
    %v1923 = vunpack.c.h.b16 %v1229
    %v1924 = vunpack.c.l.b16 %v1230
    %v1925 = vunpack.c.h.b16 %v1230
    %v1926 = vunpack.c.l.b16 %v1231
    %v1927 = vunpack.c.h.b16 %v1231
    %v1928 = vunpack.c.l.b16 %v1232
    %v1929 = vunpack.c.h.b16 %v1232
    %v1930 = vunpack.c.l.b16 %v1233
    %v1931 = vunpack.c.h.b16 %v1233
    %v1932 = vunpack.c.l.b16 %v1234
    %v1933 = vunpack.c.h.b16 %v1234
    %v1934 = vunpack.c.l.b16 %v1235
    %v1935 = vunpack.c.h.b16 %v1235
    %v1936 = vunpack.c.l.b16 %v1236
    %v1937 = vunpack.c.h.b16 %v1236
    %v1938 = vunpack.c.l.b16 %v1237
    %v1939 = vunpack.c.h.b16 %v1237
    %v1940 = vunpack.c.l.b16 %v1238
    %v1941 = vunpack.c.h.b16 %v1238
    %v1942 = vunpack.c.l.b16 %v1239
    %v1943 = vunpack.c.h.b16 %v1239
    %v1944 = vunpack.c.l.b16 %v1240
    %v1945 = vunpack.c.h.b16 %v1240
    %v1946 = vunpack.c.l.b16 %v1241
    %v1947 = vunpack.c.h.b16 %v1241
    %v1948 = vunpack.c.l.b16 %v1242
    %v1949 = vunpack.c.h.b16 %v1242
    %v1950 = vunpack.c.l.b16 %v1243
    %v1951 = vunpack.c.h.b16 %v1243
    %v1952 = vunpack.c.l.b16 %v1244
    %v1953 = vunpack.c.h.b16 %v1244
    %v1954 = vunpack.c.l.b16 %v1245
    %v1955 = vunpack.c.h.b16 %v1245
    %v1956 = vunpack.c.l.b16 %v1246
    %v1957 = vunpack.c.h.b16 %v1246
    %v1958 = vunpack.c.l.b16 %v1247
    %v1959 = vunpack.c.h.b16 %v1247
    %v1960 = vunpack.c.l.b16 %v1248
    %v1961 = vunpack.c.h.b16 %v1248
    %v1962 = vunpack.c.l.b16 %v1249
    %v1963 = vunpack.c.h.b16 %v1249
    %v1964 = vunpack.c.l.b16 %v1250
    %v1965 = vunpack.c.h.b16 %v1250
    %v1966 = vunpack.c.l.b16 %v1251
    %v1967 = vunpack.c.h.b16 %v1251
    %v1968 = vunpack.c.l.b16 %v1252
    %v1969 = vunpack.c.h.b16 %v1252
    %v1970 = vunpack.c.l.b16 %v1253
    %v1971 = vunpack.c.h.b16 %v1253
    %v1972 = vunpack.c.l.b16 %v1254
    %v1973 = vunpack.c.h.b16 %v1254
    %v1974 = vunpack.c.l.b16 %v1255
    %v1975 = vunpack.c.h.b16 %v1255
    %v1976 = vunpack.c.l.b16 %v1256
    %v1977 = vunpack.c.h.b16 %v1256
    %v1978 = vunpack.c.l.b16 %v1257
    %v1979 = vunpack.c.h.b16 %v1257
    %v1980 = vunpack.c.l.b16 %v1258
    %v1981 = vunpack.c.h.b16 %v1258
    %v1982 = vunpack.c.l.b16 %v1259
    %v1983 = vunpack.c.h.b16 %v1259
    %v1984 = vunpack.c.l.b16 %v1260
    %v1985 = vunpack.c.h.b16 %v1260
    %v1986 = vunpack.c.l.b16 %v1261
    %v1987 = vunpack.c.h.b16 %v1261
    %v1988 = vunpack.c.l.b16 %v1262
    %v1989 = vunpack.c.h.b16 %v1262
    %v1990 = vunpack.c.l.b16 %v1263
    %v1991 = vunpack.c.h.b16 %v1263
    %v1992 = vunpack.c.l.b16 %v1264
    %v1993 = vunpack.c.h.b16 %v1264
    %v1994 = vunpack.c.l.b16 %v1265
    %v1995 = vunpack.c.h.b16 %v1265
    %v1996 = vunpack.c.l.b16 %v1266
    %v1997 = vunpack.c.h.b16 %v1266
    %v1998 = vunpack.c.l.b16 %v1267
    %v1999 = vunpack.c.h.b16 %v1267
    %v2000 = vunpack.c.l.b16 %v1268
    %v2001 = vunpack.c.h.b16 %v1268
    %v2002 = vunpack.c.l.b16 %v1269
    %v2003 = vunpack.c.h.b16 %v1269
    %v2004 = vunpack.c.l.b16 %v1270
    %v2005 = vunpack.c.h.b16 %v1270
    %v2006 = vunpack.c.l.b16 %v1271
    %v2007 = vunpack.c.h.b16 %v1271
    %v2008 = vunpack.c.l.b16 %v1272
    %v2009 = vunpack.c.h.b16 %v1272
    %v2010 = vunpack.c.l.b16 %v1273
    %v2011 = vunpack.c.h.b16 %v1273
    %v2012 = vunpack.c.l.b16 %v1274
    %v2013 = vunpack.c.h.b16 %v1274
    %v2014 = vunpack.c.l.b16 %v1275
    %v2015 = vunpack.c.h.b16 %v1275
    %v2016 = vunpack.c.l.b16 %v1276
    %v2017 = vunpack.c.h.b16 %v1276
    %v2018 = vunpack.c.l.b16 %v1277
    %v2019 = vunpack.c.h.b16 %v1277
    %v2020 = vunpack.c.l.b16 %v1278
    %v2021 = vunpack.c.h.b16 %v1278
    %v2022 = vunpack.c.l.b16 %v1279
    %v2023 = vunpack.c.h.b16 %v1279
    %v2024 = vunpack.c.l.b16 %v1280
    %v2025 = vunpack.c.h.b16 %v1280
    %v2026 = vunpack.c.l.b16 %v1281
    %v2027 = vunpack.c.h.b16 %v1281
    %v2028 = vunpack.c.l.b16 %v1282
    %v2029 = vunpack.c.h.b16 %v1282
    %v2030 = vunpack.c.l.b16 %v1283
    %v2031 = vunpack.c.h.b16 %v1283
    %v2032 = vunpack.c.l.b16 %v1284
    %v2033 = vunpack.c.h.b16 %v1284
    %v2034 = vunpack.c.l.b16 %v1285
    %v2035 = vunpack.c.h.b16 %v1285
    %v2036 = vunpack.c.l.b16 %v1286
    %v2037 = vunpack.c.h.b16 %v1286
    %v2038 = vunpack.c.l.b16 %v1287
    %v2039 = vunpack.c.h.b16 %v1287
    %v2040 = vunpack.c.l.b16 %v1288
    %v2041 = vunpack.c.h.b16 %v1288
    %v2042 = vunpack.c.l.b16 %v1289
    %v2043 = vunpack.c.h.b16 %v1289
    %v2044 = vunpack.c.l.b16 %v1290
    %v2045 = vunpack.c.h.b16 %v1290
    %v2046 = vunpack.c.l.b16 %v1291
    %v2047 = vunpack.c.h.b16 %v1291
    %v2048 = vunpack.c.l.b16 %v1292
    %v2049 = vunpack.c.h.b16 %v1292
    %v2050 = vunpack.c.l.b16 %v1293
    %v2051 = vunpack.c.h.b16 %v1293
    %v2052 = vunpack.c.l.b16 %v1294
    %v2053 = vunpack.c.h.b16 %v1294
    %v2054 = vunpack.c.l.b16 %v1295
    %v2055 = vunpack.c.h.b16 %v1295
    %v2056 = vunpack.c.l.b16 %v1296
    %v2057 = vunpack.c.h.b16 %v1296
    %v2058 = vunpack.c.l.b16 %v1297
    %v2059 = vunpack.c.h.b16 %v1297
    %v2060 = vunpack.c.l.b16 %v1298
    %v2061 = vunpack.c.h.b16 %v1298
    %v2062 = vunpack.c.l.b16 %v1299
    %v2063 = vunpack.c.h.b16 %v1299
    %v2064 = vunpack.c.l.b16 %v1300
    %v2065 = vunpack.c.h.b16 %v1300
    %v2066 = vunpack.c.l.b16 %v1301
    %v2067 = vunpack.c.h.b16 %v1301
    %v2068 = vunpack.c.l.b16 %v1302
    %v2069 = vunpack.c.h.b16 %v1302
    %v2070 = vunpack.c.l.b16 %v1303
    %v2071 = vunpack.c.h.b16 %v1303
    %v2072 = vunpack.c.l.b16 %v1304
    %v2073 = vunpack.c.h.b16 %v1304
    %v2074 = vunpack.c.l.b16 %v1305
    %v2075 = vunpack.c.h.b16 %v1305
    %v2076 = vunpack.c.l.b16 %v1306
    %v2077 = vunpack.c.h.b16 %v1306
    %v2078 = vunpack.c.l.b16 %v1307
    %v2079 = vunpack.c.h.b16 %v1307
    %v2080 = vpack.c.b16 %v1576, %v1568
    %v2081 = vpack.c.b16 %v1577, %v1569
    %v2082 = vpack.c.b16 %v1578, %v1570
    %v2083 = vpack.c.b16 %v1579, %v1571
    %v2084 = vpack.c.b16 %v1580, %v1572
    %v2085 = vpack.c.b16 %v1581, %v1573
    %v2086 = vpack.c.b16 %v1582, %v1574
    %v2087 = vpack.c.b16 %v1583, %v1575
    %v2088 = vpack.c.b16 %v1592, %v1584
    %v2089 = vpack.c.b16 %v1593, %v1585
    %v2090 = vpack.c.b16 %v1594, %v1586
    %v2091 = vpack.c.b16 %v1595, %v1587
    %v2092 = vpack.c.b16 %v1596, %v1588
    %v2093 = vpack.c.b16 %v1597, %v1589
    %v2094 = vpack.c.b16 %v1598, %v1590
    %v2095 = vpack.c.b16 %v1599, %v1591
    %v2096 = vpack.c.b16 %v1608, %v1600
    %v2097 = vpack.c.b16 %v1609, %v1601
    %v2098 = vpack.c.b16 %v1610, %v1602
    %v2099 = vpack.c.b16 %v1611, %v1603
    %v2100 = vpack.c.b16 %v1612, %v1604
    %v2101 = vpack.c.b16 %v1613, %v1605
    %v2102 = vpack.c.b16 %v1614, %v1606
    %v2103 = vpack.c.b16 %v1615, %v1607
    %v2104 = vpack.c.b16 %v1624, %v1616
    %v2105 = vpack.c.b16 %v1625, %v1617
    %v2106 = vpack.c.b16 %v1626, %v1618
    %v2107 = vpack.c.b16 %v1627, %v1619
    %v2108 = vpack.c.b16 %v1628, %v1620
    %v2109 = vpack.c.b16 %v1629, %v1621
    %v2110 = vpack.c.b16 %v1630, %v1622
    %v2111 = vpack.c.b16 %v1631, %v1623
    %v2112 = vpack.c.b16 %v1640, %v1632
    %v2113 = vpack.c.b16 %v1641, %v1633
    %v2114 = vpack.c.b16 %v1642, %v1634
    %v2115 = vpack.c.b16 %v1643, %v1635
    %v2116 = vpack.c.b16 %v1644, %v1636
    %v2117 = vpack.c.b16 %v1645, %v1637
    %v2118 = vpack.c.b16 %v1646, %v1638
    %v2119 = vpack.c.b16 %v1647, %v1639
    %v2120 = vpack.c.b16 %v1656, %v1648
    %v2121 = vpack.c.b16 %v1657, %v1649
    %v2122 = vpack.c.b16 %v1658, %v1650
    %v2123 = vpack.c.b16 %v1659, %v1651
    %v2124 = vpack.c.b16 %v1660, %v1652
    %v2125 = vpack.c.b16 %v1661, %v1653
    %v2126 = vpack.c.b16 %v1662, %v1654
    %v2127 = vpack.c.b16 %v1663, %v1655
    %v2128 = vpack.c.b16 %v1672, %v1664
    %v2129 = vpack.c.b16 %v1673, %v1665
    %v2130 = vpack.c.b16 %v1674, %v1666
    %v2131 = vpack.c.b16 %v1675, %v1667
    %v2132 = vpack.c.b16 %v1676, %v1668
    %v2133 = vpack.c.b16 %v1677, %v1669
    %v2134 = vpack.c.b16 %v1678, %v1670
    %v2135 = vpack.c.b16 %v1679, %v1671
    %v2136 = vpack.c.b16 %v1688, %v1680
    %v2137 = vpack.c.b16 %v1689, %v1681
    %v2138 = vpack.c.b16 %v1690, %v1682
    %v2139 = vpack.c.b16 %v1691, %v1683
    %v2140 = vpack.c.b16 %v1692, %v1684
    %v2141 = vpack.c.b16 %v1693, %v1685
    %v2142 = vpack.c.b16 %v1694, %v1686
    %v2143 = vpack.c.b16 %v1695, %v1687
    %v2144 = vpack.c.b16 %v1704, %v1696
    %v2145 = vpack.c.b16 %v1705, %v1697
    %v2146 = vpack.c.b16 %v1706, %v1698
    %v2147 = vpack.c.b16 %v1707, %v1699
    %v2148 = vpack.c.b16 %v1708, %v1700
    %v2149 = vpack.c.b16 %v1709, %v1701
    %v2150 = vpack.c.b16 %v1710, %v1702
    %v2151 = vpack.c.b16 %v1711, %v1703
    %v2152 = vpack.c.b16 %v1720, %v1712
    %v2153 = vpack.c.b16 %v1721, %v1713
    %v2154 = vpack.c.b16 %v1722, %v1714
    %v2155 = vpack.c.b16 %v1723, %v1715
    %v2156 = vpack.c.b16 %v1724, %v1716
    %v2157 = vpack.c.b16 %v1725, %v1717
    %v2158 = vpack.c.b16 %v1726, %v1718
    %v2159 = vpack.c.b16 %v1727, %v1719
    %v2160 = vpack.c.b16 %v1736, %v1728
    %v2161 = vpack.c.b16 %v1737, %v1729
    %v2162 = vpack.c.b16 %v1738, %v1730
    %v2163 = vpack.c.b16 %v1739, %v1731
    %v2164 = vpack.c.b16 %v1740, %v1732
    %v2165 = vpack.c.b16 %v1741, %v1733
    %v2166 = vpack.c.b16 %v1742, %v1734
    %v2167 = vpack.c.b16 %v1743, %v1735
    %v2168 = vpack.c.b16 %v1752, %v1744
    %v2169 = vpack.c.b16 %v1753, %v1745
    %v2170 = vpack.c.b16 %v1754, %v1746
    %v2171 = vpack.c.b16 %v1755, %v1747
    %v2172 = vpack.c.b16 %v1756, %v1748
    %v2173 = vpack.c.b16 %v1757, %v1749
    %v2174 = vpack.c.b16 %v1758, %v1750
    %v2175 = vpack.c.b16 %v1759, %v1751
    %v2176 = vpack.c.b16 %v1768, %v1760
    %v2177 = vpack.c.b16 %v1769, %v1761
    %v2178 = vpack.c.b16 %v1770, %v1762
    %v2179 = vpack.c.b16 %v1771, %v1763
    %v2180 = vpack.c.b16 %v1772, %v1764
    %v2181 = vpack.c.b16 %v1773, %v1765
    %v2182 = vpack.c.b16 %v1774, %v1766
    %v2183 = vpack.c.b16 %v1775, %v1767
    %v2184 = vpack.c.b16 %v1784, %v1776
    %v2185 = vpack.c.b16 %v1785, %v1777
    %v2186 = vpack.c.b16 %v1786, %v1778
    %v2187 = vpack.c.b16 %v1787, %v1779
    %v2188 = vpack.c.b16 %v1788, %v1780
    %v2189 = vpack.c.b16 %v1789, %v1781
    %v2190 = vpack.c.b16 %v1790, %v1782
    %v2191 = vpack.c.b16 %v1791, %v1783
    %v2192 = vpack.c.b16 %v1800, %v1792
    %v2193 = vpack.c.b16 %v1801, %v1793
    %v2194 = vpack.c.b16 %v1802, %v1794
    %v2195 = vpack.c.b16 %v1803, %v1795
    %v2196 = vpack.c.b16 %v1804, %v1796
    %v2197 = vpack.c.b16 %v1805, %v1797
    %v2198 = vpack.c.b16 %v1806, %v1798
    %v2199 = vpack.c.b16 %v1807, %v1799
    %v2200 = vpack.c.b16 %v1816, %v1808
    %v2201 = vpack.c.b16 %v1817, %v1809
    %v2202 = vpack.c.b16 %v1818, %v1810
    %v2203 = vpack.c.b16 %v1819, %v1811
    %v2204 = vpack.c.b16 %v1820, %v1812
    %v2205 = vpack.c.b16 %v1821, %v1813
    %v2206 = vpack.c.b16 %v1822, %v1814
    %v2207 = vpack.c.b16 %v1823, %v1815
    %v2208 = vpack.c.b16 %v1832, %v1824
    %v2209 = vpack.c.b16 %v1833, %v1825
    %v2210 = vpack.c.b16 %v1834, %v1826
    %v2211 = vpack.c.b16 %v1835, %v1827
    %v2212 = vpack.c.b16 %v1836, %v1828
    %v2213 = vpack.c.b16 %v1837, %v1829
    %v2214 = vpack.c.b16 %v1838, %v1830
    %v2215 = vpack.c.b16 %v1839, %v1831
    %v2216 = vpack.c.b16 %v1848, %v1840
    %v2217 = vpack.c.b16 %v1849, %v1841
    %v2218 = vpack.c.b16 %v1850, %v1842
    %v2219 = vpack.c.b16 %v1851, %v1843
    %v2220 = vpack.c.b16 %v1852, %v1844
    %v2221 = vpack.c.b16 %v1853, %v1845
    %v2222 = vpack.c.b16 %v1854, %v1846
    %v2223 = vpack.c.b16 %v1855, %v1847
    %v2224 = vpack.c.b16 %v1864, %v1856
    %v2225 = vpack.c.b16 %v1865, %v1857
    %v2226 = vpack.c.b16 %v1866, %v1858
    %v2227 = vpack.c.b16 %v1867, %v1859
    %v2228 = vpack.c.b16 %v1868, %v1860
    %v2229 = vpack.c.b16 %v1869, %v1861
    %v2230 = vpack.c.b16 %v1870, %v1862
    %v2231 = vpack.c.b16 %v1871, %v1863
    %v2232 = vpack.c.b16 %v1880, %v1872
    %v2233 = vpack.c.b16 %v1881, %v1873
    %v2234 = vpack.c.b16 %v1882, %v1874
    %v2235 = vpack.c.b16 %v1883, %v1875
    %v2236 = vpack.c.b16 %v1884, %v1876
    %v2237 = vpack.c.b16 %v1885, %v1877
    %v2238 = vpack.c.b16 %v1886, %v1878
    %v2239 = vpack.c.b16 %v1887, %v1879
    %v2240 = vpack.c.b16 %v1896, %v1888
    %v2241 = vpack.c.b16 %v1897, %v1889
    %v2242 = vpack.c.b16 %v1898, %v1890
    %v2243 = vpack.c.b16 %v1899, %v1891
    %v2244 = vpack.c.b16 %v1900, %v1892
    %v2245 = vpack.c.b16 %v1901, %v1893
    %v2246 = vpack.c.b16 %v1902, %v1894
    %v2247 = vpack.c.b16 %v1903, %v1895
    %v2248 = vpack.c.b16 %v1912, %v1904
    %v2249 = vpack.c.b16 %v1913, %v1905
    %v2250 = vpack.c.b16 %v1914, %v1906
    %v2251 = vpack.c.b16 %v1915, %v1907
    %v2252 = vpack.c.b16 %v1916, %v1908
    %v2253 = vpack.c.b16 %v1917, %v1909
    %v2254 = vpack.c.b16 %v1918, %v1910
    %v2255 = vpack.c.b16 %v1919, %v1911
    %v2256 = vpack.c.b16 %v1928, %v1920
    %v2257 = vpack.c.b16 %v1929, %v1921
    %v2258 = vpack.c.b16 %v1930, %v1922
    %v2259 = vpack.c.b16 %v1931, %v1923
    %v2260 = vpack.c.b16 %v1932, %v1924
    %v2261 = vpack.c.b16 %v1933, %v1925
    %v2262 = vpack.c.b16 %v1934, %v1926
    %v2263 = vpack.c.b16 %v1935, %v1927
    %v2264 = vpack.c.b16 %v1944, %v1936
    %v2265 = vpack.c.b16 %v1945, %v1937
    %v2266 = vpack.c.b16 %v1946, %v1938
    %v2267 = vpack.c.b16 %v1947, %v1939
    %v2268 = vpack.c.b16 %v1948, %v1940
    %v2269 = vpack.c.b16 %v1949, %v1941
    %v2270 = vpack.c.b16 %v1950, %v1942
    %v2271 = vpack.c.b16 %v1951, %v1943
    %v2272 = vpack.c.b16 %v1960, %v1952
    %v2273 = vpack.c.b16 %v1961, %v1953
    %v2274 = vpack.c.b16 %v1962, %v1954
    %v2275 = vpack.c.b16 %v1963, %v1955
    %v2276 = vpack.c.b16 %v1964, %v1956
    %v2277 = vpack.c.b16 %v1965, %v1957
    %v2278 = vpack.c.b16 %v1966, %v1958
    %v2279 = vpack.c.b16 %v1967, %v1959
    %v2280 = vpack.c.b16 %v1976, %v1968
    %v2281 = vpack.c.b16 %v1977, %v1969
    %v2282 = vpack.c.b16 %v1978, %v1970
    %v2283 = vpack.c.b16 %v1979, %v1971
    %v2284 = vpack.c.b16 %v1980, %v1972
    %v2285 = vpack.c.b16 %v1981, %v1973
    %v2286 = vpack.c.b16 %v1982, %v1974
    %v2287 = vpack.c.b16 %v1983, %v1975
    %v2288 = vpack.c.b16 %v1992, %v1984
    %v2289 = vpack.c.b16 %v1993, %v1985
    %v2290 = vpack.c.b16 %v1994, %v1986
    %v2291 = vpack.c.b16 %v1995, %v1987
    %v2292 = vpack.c.b16 %v1996, %v1988
    %v2293 = vpack.c.b16 %v1997, %v1989
    %v2294 = vpack.c.b16 %v1998, %v1990
    %v2295 = vpack.c.b16 %v1999, %v1991
    %v2296 = vpack.c.b16 %v2008, %v2000
    %v2297 = vpack.c.b16 %v2009, %v2001
    %v2298 = vpack.c.b16 %v2010, %v2002
    %v2299 = vpack.c.b16 %v2011, %v2003
    %v2300 = vpack.c.b16 %v2012, %v2004
    %v2301 = vpack.c.b16 %v2013, %v2005
    %v2302 = vpack.c.b16 %v2014, %v2006
    %v2303 = vpack.c.b16 %v2015, %v2007
    %v2304 = vpack.c.b16 %v2024, %v2016
    %v2305 = vpack.c.b16 %v2025, %v2017
    %v2306 = vpack.c.b16 %v2026, %v2018
    %v2307 = vpack.c.b16 %v2027, %v2019
    %v2308 = vpack.c.b16 %v2028, %v2020
    %v2309 = vpack.c.b16 %v2029, %v2021
    %v2310 = vpack.c.b16 %v2030, %v2022
    %v2311 = vpack.c.b16 %v2031, %v2023
    %v2312 = vpack.c.b16 %v2040, %v2032
    %v2313 = vpack.c.b16 %v2041, %v2033
    %v2314 = vpack.c.b16 %v2042, %v2034
    %v2315 = vpack.c.b16 %v2043, %v2035
    %v2316 = vpack.c.b16 %v2044, %v2036
    %v2317 = vpack.c.b16 %v2045, %v2037
    %v2318 = vpack.c.b16 %v2046, %v2038
    %v2319 = vpack.c.b16 %v2047, %v2039
    %v2320 = vpack.c.b16 %v2056, %v2048
    %v2321 = vpack.c.b16 %v2057, %v2049
    %v2322 = vpack.c.b16 %v2058, %v2050
    %v2323 = vpack.c.b16 %v2059, %v2051
    %v2324 = vpack.c.b16 %v2060, %v2052
    %v2325 = vpack.c.b16 %v2061, %v2053
    %v2326 = vpack.c.b16 %v2062, %v2054
    %v2327 = vpack.c.b16 %v2063, %v2055
    %v2328 = vpack.c.b16 %v2072, %v2064
    %v2329 = vpack.c.b16 %v2073, %v2065
    %v2330 = vpack.c.b16 %v2074, %v2066
    %v2331 = vpack.c.b16 %v2075, %v2067
    %v2332 = vpack.c.b16 %v2076, %v2068
    %v2333 = vpack.c.b16 %v2077, %v2069
    %v2334 = vpack.c.b16 %v2078, %v2070
    %v2335 = vpack.c.b16 %v2079, %v2071
    %2592 = vmatprep.subr.bf16.mxu0 %v2137
    %2593 = vmatpush1.bf16.msra.mxu0 %v2136
    %2594 = vmatprep.subr.bf16.mxu0 %v2129
    %2595 = vmatpush1.bf16.msra.mxu0 %v2128
    %2596 = vmatprep.subr.bf16.mxu0 %v2121
    %2597 = vmatpush1.bf16.msra.mxu0 %v2120
    %2598 = vmatprep.subr.bf16.mxu0 %v2113
    %2599 = vmatpush1.bf16.msra.mxu0 %v2112
    %2600 = vmatprep.subr.bf16.mxu0 %v2105
    %2601 = vmatpush1.bf16.msra.mxu0 %v2104
    %2602 = vmatprep.subr.bf16.mxu0 %v2097
    %2603 = vmatpush1.bf16.msra.mxu0 %v2096
    %2604 = vmatprep.subr.bf16.mxu0 %v2089
    %2605 = vmatpush1.bf16.msra.mxu0 %v2088
    %2606 = vmatprep.subr.bf16.mxu0 %v2081
    %2607 = vmatpush1.bf16.msra.mxu0 %v2080
    %2608 = vmatprep.subr.bf16.mxu0 %v2201
    %2609 = vmatpush2.bf16.msra.mxu0 %v2200
    %2610 = vmatprep.subr.bf16.mxu0 %v2193
    %2611 = vmatpush2.bf16.msra.mxu0 %v2192
    %2612 = vmatprep.subr.bf16.mxu0 %v2185
    %2613 = vmatpush2.bf16.msra.mxu0 %v2184
    %2614 = vmatprep.subr.bf16.mxu0 %v2177
    %2615 = vmatpush2.bf16.msra.mxu0 %v2176
    %2616 = vmatprep.subr.bf16.mxu0 %v2169
    %2617 = vmatpush2.bf16.msra.mxu0 %v2168
    %2618 = vmatprep.subr.bf16.mxu0 %v2161
    %2619 = vmatpush2.bf16.msra.mxu0 %v2160
    %2620 = vmatprep.subr.bf16.mxu0 %v2153
    %2621 = vmatpush2.bf16.msra.mxu0 %v2152
    %2622 = vmatprep.subr.bf16.mxu0 %v2145
    %2623 = vmatpush2.bf16.msra.mxu0 %v2144
    %2624 = vmatprep.mubr.bf16.mxu0 %v1309
    %2625 = vmatmul.mubr.bf16.gmra.mxu0 %v1308
    %v2626 = vpop.f32.mrf.mxu0
    %v2627 = vadd.f32 0.0, %v2626
    %v2628 = vpop.f32.mrf.mxu0
    %v2629 = vadd.f32 0.0, %v2628
    %v2630 = vpop.f32.mrf.mxu0
    %v2631 = vpop.f32.mrf.mxu0
    %2632 = vdwg.mxu0
    %2633 = vmatprep.subr.bf16.mxu0 %v2265
    %2634 = vmatpush1.bf16.msra.mxu0 %v2264
    %2635 = vmatprep.subr.bf16.mxu0 %v2257
    %2636 = vmatpush1.bf16.msra.mxu0 %v2256
    %2637 = vmatprep.subr.bf16.mxu0 %v2249
    %2638 = vmatpush1.bf16.msra.mxu0 %v2248
    %2639 = vmatprep.subr.bf16.mxu0 %v2241
    %2640 = vmatpush1.bf16.msra.mxu0 %v2240
    %2641 = vmatprep.subr.bf16.mxu0 %v2233
    %2642 = vmatpush1.bf16.msra.mxu0 %v2232
    %2643 = vmatprep.subr.bf16.mxu0 %v2225
    %2644 = vmatpush1.bf16.msra.mxu0 %v2224
    %2645 = vmatprep.subr.bf16.mxu0 %v2217
    %2646 = vmatpush1.bf16.msra.mxu0 %v2216
    %2647 = vmatprep.subr.bf16.mxu0 %v2209
    %2648 = vmatpush1.bf16.msra.mxu0 %v2208
    %2649 = vmatprep.subr.bf16.mxu0 %v2329
    %2650 = vmatpush2.bf16.msra.mxu0 %v2328
    %2651 = vmatprep.subr.bf16.mxu0 %v2321
    %2652 = vmatpush2.bf16.msra.mxu0 %v2320
    %2653 = vmatprep.subr.bf16.mxu0 %v2313
    %2654 = vmatpush2.bf16.msra.mxu0 %v2312
    %2655 = vmatprep.subr.bf16.mxu0 %v2305
    %2656 = vmatpush2.bf16.msra.mxu0 %v2304
    %2657 = vmatprep.subr.bf16.mxu0 %v2297
    %2658 = vmatpush2.bf16.msra.mxu0 %v2296
    %2659 = vmatprep.subr.bf16.mxu0 %v2289
    %2660 = vmatpush2.bf16.msra.mxu0 %v2288
    %2661 = vmatprep.subr.bf16.mxu0 %v2281
    %2662 = vmatpush2.bf16.msra.mxu0 %v2280
    %2663 = vmatprep.subr.bf16.mxu0 %v2273
    %2664 = vmatpush2.bf16.msra.mxu0 %v2272
    %2665 = vmatprep.mubr.bf16.mxu0 %v1311
    %2666 = vmatmul.mubr.bf16.gmra.mxu0 %v1310
    %v2667 = vpop.f32.mrf.mxu0
    %v2668 = vadd.f32 %v2627, %v2667
    %v2669 = vpop.f32.mrf.mxu0
    %v2670 = vadd.f32 %v2629, %v2669
    %v2671 = vpop.f32.mrf.mxu0
    %v2672 = vpop.f32.mrf.mxu0
    %2673 = vdwg.mxu0
    %2674 = vmatprep.subr.bf16.mxu0 %v2139
    %2675 = vmatpush1.bf16.msra.mxu0 %v2138
    %2676 = vmatprep.subr.bf16.mxu0 %v2131
    %2677 = vmatpush1.bf16.msra.mxu0 %v2130
    %2678 = vmatprep.subr.bf16.mxu0 %v2123
    %2679 = vmatpush1.bf16.msra.mxu0 %v2122
    %2680 = vmatprep.subr.bf16.mxu0 %v2115
    %2681 = vmatpush1.bf16.msra.mxu0 %v2114
    %2682 = vmatprep.subr.bf16.mxu0 %v2107
    %2683 = vmatpush1.bf16.msra.mxu0 %v2106
    %2684 = vmatprep.subr.bf16.mxu0 %v2099
    %2685 = vmatpush1.bf16.msra.mxu0 %v2098
    %2686 = vmatprep.subr.bf16.mxu0 %v2091
    %2687 = vmatpush1.bf16.msra.mxu0 %v2090
    %2688 = vmatprep.subr.bf16.mxu0 %v2083
    %2689 = vmatpush1.bf16.msra.mxu0 %v2082
    %2690 = vmatprep.subr.bf16.mxu0 %v2203
    %2691 = vmatpush2.bf16.msra.mxu0 %v2202
    %2692 = vmatprep.subr.bf16.mxu0 %v2195
    %2693 = vmatpush2.bf16.msra.mxu0 %v2194
    %2694 = vmatprep.subr.bf16.mxu0 %v2187
    %2695 = vmatpush2.bf16.msra.mxu0 %v2186
    %2696 = vmatprep.subr.bf16.mxu0 %v2179
    %2697 = vmatpush2.bf16.msra.mxu0 %v2178
    %2698 = vmatprep.subr.bf16.mxu0 %v2171
    %2699 = vmatpush2.bf16.msra.mxu0 %v2170
    %2700 = vmatprep.subr.bf16.mxu0 %v2163
    %2701 = vmatpush2.bf16.msra.mxu0 %v2162
    %2702 = vmatprep.subr.bf16.mxu0 %v2155
    %2703 = vmatpush2.bf16.msra.mxu0 %v2154
    %2704 = vmatprep.subr.bf16.mxu0 %v2147
    %2705 = vmatpush2.bf16.msra.mxu0 %v2146
    %2706 = vmatprep.mubr.bf16.mxu0 %v1309
    %2707 = vmatmul.mubr.bf16.gmra.mxu0 %v1308
    %v2708 = vpop.f32.mrf.mxu0
    %v2709 = vadd.f32 0.0, %v2708
    %v2710 = vpop.f32.mrf.mxu0
    %v2711 = vadd.f32 0.0, %v2710
    %v2712 = vpop.f32.mrf.mxu0
    %v2713 = vpop.f32.mrf.mxu0
    %2714 = vdwg.mxu0
    %2715 = vmatprep.subr.bf16.mxu0 %v2267
    %2716 = vmatpush1.bf16.msra.mxu0 %v2266
    %2717 = vmatprep.subr.bf16.mxu0 %v2259
    %2718 = vmatpush1.bf16.msra.mxu0 %v2258
    %2719 = vmatprep.subr.bf16.mxu0 %v2251
    %2720 = vmatpush1.bf16.msra.mxu0 %v2250
    %2721 = vmatprep.subr.bf16.mxu0 %v2243
    %2722 = vmatpush1.bf16.msra.mxu0 %v2242
    %2723 = vmatprep.subr.bf16.mxu0 %v2235
    %2724 = vmatpush1.bf16.msra.mxu0 %v2234
    %2725 = vmatprep.subr.bf16.mxu0 %v2227
    %2726 = vmatpush1.bf16.msra.mxu0 %v2226
    %2727 = vmatprep.subr.bf16.mxu0 %v2219
    %2728 = vmatpush1.bf16.msra.mxu0 %v2218
    %2729 = vmatprep.subr.bf16.mxu0 %v2211
    %2730 = vmatpush1.bf16.msra.mxu0 %v2210
    %2731 = vmatprep.subr.bf16.mxu0 %v2331
    %2732 = vmatpush2.bf16.msra.mxu0 %v2330
    %2733 = vmatprep.subr.bf16.mxu0 %v2323
    %2734 = vmatpush2.bf16.msra.mxu0 %v2322
    %2735 = vmatprep.subr.bf16.mxu0 %v2315
    %2736 = vmatpush2.bf16.msra.mxu0 %v2314
    %2737 = vmatprep.subr.bf16.mxu0 %v2307
    %2738 = vmatpush2.bf16.msra.mxu0 %v2306
    %2739 = vmatprep.subr.bf16.mxu0 %v2299
    %2740 = vmatpush2.bf16.msra.mxu0 %v2298
    %2741 = vmatprep.subr.bf16.mxu0 %v2291
    %2742 = vmatpush2.bf16.msra.mxu0 %v2290
    %2743 = vmatprep.subr.bf16.mxu0 %v2283
    %2744 = vmatpush2.bf16.msra.mxu0 %v2282
    %2745 = vmatprep.subr.bf16.mxu0 %v2275
    %2746 = vmatpush2.bf16.msra.mxu0 %v2274
    %2747 = vmatprep.mubr.bf16.mxu0 %v1311
    %2748 = vmatmul.mubr.bf16.gmra.mxu0 %v1310
    %v2749 = vpop.f32.mrf.mxu0
    %v2750 = vadd.f32 %v2709, %v2749
    %v2751 = vpop.f32.mrf.mxu0
    %v2752 = vadd.f32 %v2711, %v2751
    %v2753 = vpop.f32.mrf.mxu0
    %v2754 = vpop.f32.mrf.mxu0
    %2755 = vdwg.mxu0
    %2756 = vmatprep.subr.bf16.mxu0 %v2141
    %2757 = vmatpush1.bf16.msra.mxu0 %v2140
    %2758 = vmatprep.subr.bf16.mxu0 %v2133
    %2759 = vmatpush1.bf16.msra.mxu0 %v2132
    %2760 = vmatprep.subr.bf16.mxu0 %v2125
    %2761 = vmatpush1.bf16.msra.mxu0 %v2124
    %2762 = vmatprep.subr.bf16.mxu0 %v2117
    %2763 = vmatpush1.bf16.msra.mxu0 %v2116
    %2764 = vmatprep.subr.bf16.mxu0 %v2109
    %2765 = vmatpush1.bf16.msra.mxu0 %v2108
    %2766 = vmatprep.subr.bf16.mxu0 %v2101
    %2767 = vmatpush1.bf16.msra.mxu0 %v2100
    %2768 = vmatprep.subr.bf16.mxu0 %v2093
    %2769 = vmatpush1.bf16.msra.mxu0 %v2092
    %2770 = vmatprep.subr.bf16.mxu0 %v2085
    %2771 = vmatpush1.bf16.msra.mxu0 %v2084
    %2772 = vmatprep.subr.bf16.mxu0 %v2205
    %2773 = vmatpush2.bf16.msra.mxu0 %v2204
    %2774 = vmatprep.subr.bf16.mxu0 %v2197
    %2775 = vmatpush2.bf16.msra.mxu0 %v2196
    %2776 = vmatprep.subr.bf16.mxu0 %v2189
    %2777 = vmatpush2.bf16.msra.mxu0 %v2188
    %2778 = vmatprep.subr.bf16.mxu0 %v2181
    %2779 = vmatpush2.bf16.msra.mxu0 %v2180
    %2780 = vmatprep.subr.bf16.mxu0 %v2173
    %2781 = vmatpush2.bf16.msra.mxu0 %v2172
    %2782 = vmatprep.subr.bf16.mxu0 %v2165
    %2783 = vmatpush2.bf16.msra.mxu0 %v2164
    %2784 = vmatprep.subr.bf16.mxu0 %v2157
    %2785 = vmatpush2.bf16.msra.mxu0 %v2156
    %2786 = vmatprep.subr.bf16.mxu0 %v2149
    %2787 = vmatpush2.bf16.msra.mxu0 %v2148
    %2788 = vmatprep.mubr.bf16.mxu0 %v1309
    %2789 = vmatmul.mubr.bf16.gmra.mxu0 %v1308
    %v2790 = vpop.f32.mrf.mxu0
    %v2791 = vadd.f32 0.0, %v2790
    %v2792 = vpop.f32.mrf.mxu0
    %v2793 = vadd.f32 0.0, %v2792
    %v2794 = vpop.f32.mrf.mxu0
    %v2795 = vpop.f32.mrf.mxu0
    %2796 = vdwg.mxu0
    %2797 = vmatprep.subr.bf16.mxu0 %v2269
    %2798 = vmatpush1.bf16.msra.mxu0 %v2268
    %2799 = vmatprep.subr.bf16.mxu0 %v2261
    %2800 = vmatpush1.bf16.msra.mxu0 %v2260
    %2801 = vmatprep.subr.bf16.mxu0 %v2253
    %2802 = vmatpush1.bf16.msra.mxu0 %v2252
    %2803 = vmatprep.subr.bf16.mxu0 %v2245
    %2804 = vmatpush1.bf16.msra.mxu0 %v2244
    %2805 = vmatprep.subr.bf16.mxu0 %v2237
    %2806 = vmatpush1.bf16.msra.mxu0 %v2236
    %2807 = vmatprep.subr.bf16.mxu0 %v2229
    %2808 = vmatpush1.bf16.msra.mxu0 %v2228
    %2809 = vmatprep.subr.bf16.mxu0 %v2221
    %2810 = vmatpush1.bf16.msra.mxu0 %v2220
    %2811 = vmatprep.subr.bf16.mxu0 %v2213
    %2812 = vmatpush1.bf16.msra.mxu0 %v2212
    %2813 = vmatprep.subr.bf16.mxu0 %v2333
    %2814 = vmatpush2.bf16.msra.mxu0 %v2332
    %2815 = vmatprep.subr.bf16.mxu0 %v2325
    %2816 = vmatpush2.bf16.msra.mxu0 %v2324
    %2817 = vmatprep.subr.bf16.mxu0 %v2317
    %2818 = vmatpush2.bf16.msra.mxu0 %v2316
    %2819 = vmatprep.subr.bf16.mxu0 %v2309
    %2820 = vmatpush2.bf16.msra.mxu0 %v2308
    %2821 = vmatprep.subr.bf16.mxu0 %v2301
    %2822 = vmatpush2.bf16.msra.mxu0 %v2300
    %2823 = vmatprep.subr.bf16.mxu0 %v2293
    %2824 = vmatpush2.bf16.msra.mxu0 %v2292
    %2825 = vmatprep.subr.bf16.mxu0 %v2285
    %2826 = vmatpush2.bf16.msra.mxu0 %v2284
    %2827 = vmatprep.subr.bf16.mxu0 %v2277
    %2828 = vmatpush2.bf16.msra.mxu0 %v2276
    %2829 = vmatprep.mubr.bf16.mxu0 %v1311
    %2830 = vmatmul.mubr.bf16.gmra.mxu0 %v1310
    %v2831 = vpop.f32.mrf.mxu0
    %v2832 = vadd.f32 %v2791, %v2831
    %v2833 = vpop.f32.mrf.mxu0
    %v2834 = vadd.f32 %v2793, %v2833
    %v2835 = vpop.f32.mrf.mxu0
    %v2836 = vpop.f32.mrf.mxu0
    %2837 = vdwg.mxu0
    %2838 = vmatprep.subr.bf16.mxu0 %v2143
    %2839 = vmatpush1.bf16.msra.mxu0 %v2142
    %2840 = vmatprep.subr.bf16.mxu0 %v2135
    %2841 = vmatpush1.bf16.msra.mxu0 %v2134
    %2842 = vmatprep.subr.bf16.mxu0 %v2127
    %2843 = vmatpush1.bf16.msra.mxu0 %v2126
    %2844 = vmatprep.subr.bf16.mxu0 %v2119
    %2845 = vmatpush1.bf16.msra.mxu0 %v2118
    %2846 = vmatprep.subr.bf16.mxu0 %v2111
    %2847 = vmatpush1.bf16.msra.mxu0 %v2110
    %2848 = vmatprep.subr.bf16.mxu0 %v2103
    %2849 = vmatpush1.bf16.msra.mxu0 %v2102
    %2850 = vmatprep.subr.bf16.mxu0 %v2095
    %2851 = vmatpush1.bf16.msra.mxu0 %v2094
    %2852 = vmatprep.subr.bf16.mxu0 %v2087
    %2853 = vmatpush1.bf16.msra.mxu0 %v2086
    %2854 = vmatprep.subr.bf16.mxu0 %v2207
    %2855 = vmatpush2.bf16.msra.mxu0 %v2206
    %2856 = vmatprep.subr.bf16.mxu0 %v2199
    %2857 = vmatpush2.bf16.msra.mxu0 %v2198
    %2858 = vmatprep.subr.bf16.mxu0 %v2191
    %2859 = vmatpush2.bf16.msra.mxu0 %v2190
    %2860 = vmatprep.subr.bf16.mxu0 %v2183
    %2861 = vmatpush2.bf16.msra.mxu0 %v2182
    %2862 = vmatprep.subr.bf16.mxu0 %v2175
    %2863 = vmatpush2.bf16.msra.mxu0 %v2174
    %2864 = vmatprep.subr.bf16.mxu0 %v2167
    %2865 = vmatpush2.bf16.msra.mxu0 %v2166
    %2866 = vmatprep.subr.bf16.mxu0 %v2159
    %2867 = vmatpush2.bf16.msra.mxu0 %v2158
    %2868 = vmatprep.subr.bf16.mxu0 %v2151
    %2869 = vmatpush2.bf16.msra.mxu0 %v2150
    %2870 = vmatprep.mubr.bf16.mxu0 %v1309
    %2871 = vmatmul.mubr.bf16.gmra.mxu0 %v1308
    %v2872 = vpop.f32.mrf.mxu0
    %v2873 = vadd.f32 0.0, %v2872
    %v2874 = vpop.f32.mrf.mxu0
    %v2875 = vadd.f32 0.0, %v2874
    %v2876 = vpop.f32.mrf.mxu0
    %v2877 = vpop.f32.mrf.mxu0
    %2878 = vdwg.mxu0
    %2879 = vmatprep.subr.bf16.mxu0 %v2271
    %2880 = vmatpush1.bf16.msra.mxu0 %v2270
    %2881 = vmatprep.subr.bf16.mxu0 %v2263
    %2882 = vmatpush1.bf16.msra.mxu0 %v2262
    %2883 = vmatprep.subr.bf16.mxu0 %v2255
    %2884 = vmatpush1.bf16.msra.mxu0 %v2254
    %2885 = vmatprep.subr.bf16.mxu0 %v2247
    %2886 = vmatpush1.bf16.msra.mxu0 %v2246
    %2887 = vmatprep.subr.bf16.mxu0 %v2239
    %2888 = vmatpush1.bf16.msra.mxu0 %v2238
    %2889 = vmatprep.subr.bf16.mxu0 %v2231
    %2890 = vmatpush1.bf16.msra.mxu0 %v2230
    %2891 = vmatprep.subr.bf16.mxu0 %v2223
    %2892 = vmatpush1.bf16.msra.mxu0 %v2222
    %2893 = vmatprep.subr.bf16.mxu0 %v2215
    %2894 = vmatpush1.bf16.msra.mxu0 %v2214
    %2895 = vmatprep.subr.bf16.mxu0 %v2335
    %2896 = vmatpush2.bf16.msra.mxu0 %v2334
    %2897 = vmatprep.subr.bf16.mxu0 %v2327
    %2898 = vmatpush2.bf16.msra.mxu0 %v2326
    %2899 = vmatprep.subr.bf16.mxu0 %v2319
    %2900 = vmatpush2.bf16.msra.mxu0 %v2318
    %2901 = vmatprep.subr.bf16.mxu0 %v2311
    %2902 = vmatpush2.bf16.msra.mxu0 %v2310
    %2903 = vmatprep.subr.bf16.mxu0 %v2303
    %2904 = vmatpush2.bf16.msra.mxu0 %v2302
    %2905 = vmatprep.subr.bf16.mxu0 %v2295
    %2906 = vmatpush2.bf16.msra.mxu0 %v2294
    %2907 = vmatprep.subr.bf16.mxu0 %v2287
    %2908 = vmatpush2.bf16.msra.mxu0 %v2286
    %2909 = vmatprep.subr.bf16.mxu0 %v2279
    %2910 = vmatpush2.bf16.msra.mxu0 %v2278
    %2911 = vmatprep.mubr.bf16.mxu0 %v1311
    %2912 = vmatmul.mubr.bf16.gmra.mxu0 %v1310
    %v2913 = vpop.f32.mrf.mxu0
    %v2914 = vadd.f32 %v2873, %v2913
    %v2915 = vpop.f32.mrf.mxu0
    %v2916 = vadd.f32 %v2875, %v2915
    %v2917 = vpop.f32.mrf.mxu0
    %v2918 = vpop.f32.mrf.mxu0
    %2919 = vdwg.mxu0
    %v2920 = vrot.slane %v2668, 4
    %v2921 = vadd.f32 %v2668, %v2920
    %v2922 = vrot.slane %v2921, 2
    %v2923 = vadd.f32 %v2921, %v2922
    %v2924 = vrot.slane %v2923, 1
    %v2925 = vadd.f32 %v2923, %v2924
    %v2926 = vrot.slane %v2670, 4
    %v2927 = vadd.f32 %v2670, %v2926
    %v2928 = vrot.slane %v2927, 2
    %v2929 = vadd.f32 %v2927, %v2928
    %v2930 = vrot.slane %v2929, 1
    %v2931 = vadd.f32 %v2929, %v2930
    %v2932 = vrot.slane %v2750, 4
    %v2933 = vadd.f32 %v2750, %v2932
    %v2934 = vrot.slane %v2933, 2
    %v2935 = vadd.f32 %v2933, %v2934
    %v2936 = vrot.slane %v2935, 1
    %v2937 = vadd.f32 %v2935, %v2936
    %v2938 = vrot.slane %v2752, 4
    %v2939 = vadd.f32 %v2752, %v2938
    %v2940 = vrot.slane %v2939, 2
    %v2941 = vadd.f32 %v2939, %v2940
    %v2942 = vrot.slane %v2941, 1
    %v2943 = vadd.f32 %v2941, %v2942
    %v2944 = vrot.slane %v2832, 4
    %v2945 = vadd.f32 %v2832, %v2944
    %v2946 = vrot.slane %v2945, 2
    %v2947 = vadd.f32 %v2945, %v2946
    %v2948 = vrot.slane %v2947, 1
    %v2949 = vadd.f32 %v2947, %v2948
    %v2950 = vrot.slane %v2834, 4
    %v2951 = vadd.f32 %v2834, %v2950
    %v2952 = vrot.slane %v2951, 2
    %v2953 = vadd.f32 %v2951, %v2952
    %v2954 = vrot.slane %v2953, 1
    %v2955 = vadd.f32 %v2953, %v2954
    %v2956 = vrot.slane %v2914, 4
    %v2957 = vadd.f32 %v2914, %v2956
    %v2958 = vrot.slane %v2957, 2
    %v2959 = vadd.f32 %v2957, %v2958
    %v2960 = vrot.slane %v2959, 1
    %v2961 = vadd.f32 %v2959, %v2960
    %v2962 = vrot.slane %v2916, 4
    %v2963 = vadd.f32 %v2916, %v2962
    %v2964 = vrot.slane %v2963, 2
    %v2965 = vadd.f32 %v2963, %v2964
    %v2966 = vrot.slane %v2965, 1
    %v2967 = vadd.f32 %v2965, %v2966
    %v2968 = vmul.f32 %v2925, %v371
    %v2969 = vmul.f32 %v2931, %v371
    %v2970 = vmul.f32 %v2937, %v371
    %v2971 = vmul.f32 %v2943, %v371
    %v2972 = vmul.f32 %v2949, %v371
    %v2973 = vmul.f32 %v2955, %v371
    %v2974 = vmul.f32 %v2961, %v371
    %v2975 = vmul.f32 %v2967, %v371
    %v2976 = vmul.f32 %v2668, %v2668
    %v2977 = vmul.f32 %v2670, %v2670
    %v2978 = vmul.f32 %v2750, %v2750
    %v2979 = vmul.f32 %v2752, %v2752
    %v2980 = vmul.f32 %v2832, %v2832
    %v2981 = vmul.f32 %v2834, %v2834
    %v2982 = vmul.f32 %v2914, %v2914
    %v2983 = vmul.f32 %v2916, %v2916
    %v2984 = vrot.slane %v2976, 4
    %v2985 = vadd.f32 %v2976, %v2984
    %v2986 = vrot.slane %v2985, 2
    %v2987 = vadd.f32 %v2985, %v2986
    %v2988 = vrot.slane %v2987, 1
    %v2989 = vadd.f32 %v2987, %v2988
    %v2990 = vrot.slane %v2977, 4
    %v2991 = vadd.f32 %v2977, %v2990
    %v2992 = vrot.slane %v2991, 2
    %v2993 = vadd.f32 %v2991, %v2992
    %v2994 = vrot.slane %v2993, 1
    %v2995 = vadd.f32 %v2993, %v2994
    %v2996 = vrot.slane %v2978, 4
    %v2997 = vadd.f32 %v2978, %v2996
    %v2998 = vrot.slane %v2997, 2
    %v2999 = vadd.f32 %v2997, %v2998
    %v3000 = vrot.slane %v2999, 1
    %v3001 = vadd.f32 %v2999, %v3000
    %v3002 = vrot.slane %v2979, 4
    %v3003 = vadd.f32 %v2979, %v3002
    %v3004 = vrot.slane %v3003, 2
    %v3005 = vadd.f32 %v3003, %v3004
    %v3006 = vrot.slane %v3005, 1
    %v3007 = vadd.f32 %v3005, %v3006
    %v3008 = vrot.slane %v2980, 4
    %v3009 = vadd.f32 %v2980, %v3008
    %v3010 = vrot.slane %v3009, 2
    %v3011 = vadd.f32 %v3009, %v3010
    %v3012 = vrot.slane %v3011, 1
    %v3013 = vadd.f32 %v3011, %v3012
    %v3014 = vrot.slane %v2981, 4
    %v3015 = vadd.f32 %v2981, %v3014
    %v3016 = vrot.slane %v3015, 2
    %v3017 = vadd.f32 %v3015, %v3016
    %v3018 = vrot.slane %v3017, 1
    %v3019 = vadd.f32 %v3017, %v3018
    %v3020 = vrot.slane %v2982, 4
    %v3021 = vadd.f32 %v2982, %v3020
    %v3022 = vrot.slane %v3021, 2
    %v3023 = vadd.f32 %v3021, %v3022
    %v3024 = vrot.slane %v3023, 1
    %v3025 = vadd.f32 %v3023, %v3024
    %v3026 = vrot.slane %v2983, 4
    %v3027 = vadd.f32 %v2983, %v3026
    %v3028 = vrot.slane %v3027, 2
    %v3029 = vadd.f32 %v3027, %v3028
    %v3030 = vrot.slane %v3029, 1
    %v3031 = vadd.f32 %v3029, %v3030
    %v3032 = vmul.f32 %v2989, %v371
    %v3033 = vmul.f32 %v2995, %v371
    %v3034 = vmul.f32 %v3001, %v371
    %v3035 = vmul.f32 %v3007, %v371
    %v3036 = vmul.f32 %v3013, %v371
    %v3037 = vmul.f32 %v3019, %v371
    %v3038 = vmul.f32 %v3025, %v371
    %v3039 = vmul.f32 %v3031, %v371
    %v3040 = vmul.f32 %v2968, %v2968
    %v3041 = vmul.f32 %v2969, %v2969
    %v3042 = vmul.f32 %v2970, %v2970
    %v3043 = vmul.f32 %v2971, %v2971
    %v3044 = vmul.f32 %v2972, %v2972
    %v3045 = vmul.f32 %v2973, %v2973
    %v3046 = vmul.f32 %v2974, %v2974
    %v3047 = vmul.f32 %v2975, %v2975
    %v3048 = vsub.f32 %v3032, %v3040
    %v3049 = vsub.f32 %v3033, %v3041
    %v3050 = vsub.f32 %v3034, %v3042
    %v3051 = vsub.f32 %v3035, %v3043
    %v3052 = vsub.f32 %v3036, %v3044
    %v3053 = vsub.f32 %v3037, %v3045
    %v3054 = vsub.f32 %v3038, %v3046
    %v3055 = vsub.f32 %v3039, %v3047
    %v3056 = vmax.f32 %v3048, 0.0
    %v3057 = vmax.f32 %v3049, 0.0
    %v3058 = vmax.f32 %v3050, 0.0
    %v3059 = vmax.f32 %v3051, 0.0
    %v3060 = vmax.f32 %v3052, 0.0
    %v3061 = vmax.f32 %v3053, 0.0
    %v3062 = vmax.f32 %v3054, 0.0
    %v3063 = vmax.f32 %v3055, 0.0
    %v3064 = vsub.f32 %v2668, %v2968
    %v3065 = vsub.f32 %v2670, %v2969
    %v3066 = vsub.f32 %v2750, %v2970
    %v3067 = vsub.f32 %v2752, %v2971
    %v3068 = vsub.f32 %v2832, %v2972
    %v3069 = vsub.f32 %v2834, %v2973
    %v3070 = vsub.f32 %v2914, %v2974
    %v3071 = vsub.f32 %v2916, %v2975
    %v3072 = vadd.f32 %v3056, 0.8
    %v3073 = vadd.f32 %v3057, 0.8
    %v3074 = vadd.f32 %v3058, 0.8
    %v3075 = vadd.f32 %v3059, 0.8
    %v3076 = vadd.f32 %v3060, 0.8
    %v3077 = vadd.f32 %v3061, 0.8
    %v3078 = vadd.f32 %v3062, 0.8
    %v3079 = vadd.f32 %v3063, 0.8
    %v3080 = vrsqrt.pop %v3072
    %v3081 = vrsqrt.pop %v3073
    %v3082 = vrsqrt.pop %v3074
    %v3083 = vrsqrt.pop %v3075
    %v3084 = vrsqrt.pop %v3076
    %v3085 = vrsqrt.pop %v3077
    %v3086 = vrsqrt.pop %v3078
    %v3087 = vrsqrt.pop %v3079
    %v3088 = vmul.f32 %v3064, %v3080
    %v3089 = vmul.f32 %v3065, %v3081
    %v3090 = vmul.f32 %v3066, %v3082
    %v3091 = vmul.f32 %v3067, %v3083
    %v3092 = vmul.f32 %v3068, %v3084
    %v3093 = vmul.f32 %v3069, %v3085
    %v3094 = vmul.f32 %v3070, %v3086
    %v3095 = vmul.f32 %v3071, %v3087
    %v3097 = vlaneseq
    %v3098 = vshrl.u32 %v3097, 7
    %v3099 = vsub.s32 0, %v3098
    %v3100 = vrot.slane %v104, %v3099
    %v3101 = vlaneseq
    %v3102 = vshrl.u32 %v3101, 7
    %v3103 = vsub.s32 1, %v3102
    %v3104 = vrot.slane %v104, %v3103
    %v3105 = vlaneseq
    %v3106 = vshrl.u32 %v3105, 7
    %v3107 = vsub.s32 2, %v3106
    %v3108 = vrot.slane %v104, %v3107
    %v3109 = vlaneseq
    %v3110 = vshrl.u32 %v3109, 7
    %v3111 = vsub.s32 3, %v3110
    %v3112 = vrot.slane %v104, %v3111
    %v3113 = vlaneseq
    %v3114 = vshrl.u32 %v3113, 7
    %v3115 = vsub.s32 4, %v3114
    %v3116 = vrot.slane %v104, %v3115
    %v3117 = vlaneseq
    %v3118 = vshrl.u32 %v3117, 7
    %v3119 = vsub.s32 5, %v3118
    %v3120 = vrot.slane %v104, %v3119
    %v3121 = vlaneseq
    %v3122 = vshrl.u32 %v3121, 7
    %v3123 = vsub.s32 6, %v3122
    %v3124 = vrot.slane %v104, %v3123
    %v3125 = vlaneseq
    %v3126 = vshrl.u32 %v3125, 7
    %v3127 = vsub.s32 7, %v3126
    %v3128 = vrot.slane %v104, %v3127
    %v3137 = vmul.f32 %v3088, %v3100
    %v3138 = vmul.f32 %v3089, %v3104
    %v3139 = vmul.f32 %v3090, %v3108
    %v3140 = vmul.f32 %v3091, %v3112
    %v3141 = vmul.f32 %v3092, %v3116
    %v3142 = vmul.f32 %v3093, %v3120
    %v3143 = vmul.f32 %v3094, %v3124
    %v3144 = vmul.f32 %v3095, %v3128
    %v3146 = vlaneseq
    %v3147 = vshrl.u32 %v3146, 7
    %v3148 = vsub.s32 0, %v3147
    %v3149 = vrot.slane %v105, %v3148
    %v3150 = vlaneseq
    %v3151 = vshrl.u32 %v3150, 7
    %v3152 = vsub.s32 1, %v3151
    %v3153 = vrot.slane %v105, %v3152
    %v3154 = vlaneseq
    %v3155 = vshrl.u32 %v3154, 7
    %v3156 = vsub.s32 2, %v3155
    %v3157 = vrot.slane %v105, %v3156
    %v3158 = vlaneseq
    %v3159 = vshrl.u32 %v3158, 7
    %v3160 = vsub.s32 3, %v3159
    %v3161 = vrot.slane %v105, %v3160
    %v3162 = vlaneseq
    %v3163 = vshrl.u32 %v3162, 7
    %v3164 = vsub.s32 4, %v3163
    %v3165 = vrot.slane %v105, %v3164
    %v3166 = vlaneseq
    %v3167 = vshrl.u32 %v3166, 7
    %v3168 = vsub.s32 5, %v3167
    %v3169 = vrot.slane %v105, %v3168
    %v3170 = vlaneseq
    %v3171 = vshrl.u32 %v3170, 7
    %v3172 = vsub.s32 6, %v3171
    %v3173 = vrot.slane %v105, %v3172
    %v3174 = vlaneseq
    %v3175 = vshrl.u32 %v3174, 7
    %v3176 = vsub.s32 7, %v3175
    %v3177 = vrot.slane %v105, %v3176
    %v3186 = vadd.f32 %v3137, %v3149
    %v3187 = vadd.f32 %v3138, %v3153
    %v3188 = vadd.f32 %v3139, %v3157
    %v3189 = vadd.f32 %v3140, %v3161
    %v3190 = vadd.f32 %v3141, %v3165
    %v3191 = vadd.f32 %v3142, %v3169
    %v3192 = vadd.f32 %v3143, %v3173
    %v3193 = vadd.f32 %v3144, %v3177
    %v3194 = vmul.f32 %v3186, 0.2
    %v3195 = vmul.f32 %v3187, 0.2
    %v3196 = vmul.f32 %v3188, 0.2
    %v3197 = vmul.f32 %v3189, 0.2
    %v3198 = vmul.f32 %v3190, 0.2
    %v3199 = vmul.f32 %v3191, 0.2
    %v3200 = vmul.f32 %v3192, 0.2
    %v3201 = vmul.f32 %v3193, 0.2
    %v3202 = vmax.f32 %v3186, %v3194
    %v3203 = vmax.f32 %v3187, %v3195
    %v3204 = vmax.f32 %v3188, %v3196
    %v3205 = vmax.f32 %v3189, %v3197
    %v3206 = vmax.f32 %v3190, %v3198
    %v3207 = vmax.f32 %v3191, %v3199
    %v3208 = vmax.f32 %v3192, %v3200
    %v3209 = vmax.f32 %v3193, %v3201
    %s3210 = smul.u32 4, 128
    %s3211 = smul.u32 %s3210, 7
    %s3212 = sshll.u32 %s3211, 4
    %3213 = dma.done %s87, %s3212
    %v3214 = vld [vmem:[#allocation3] sm:$0xff]
    %v3215 = vld [vmem:[#allocation3 + $0x8] sm:$0xff]
    %v3216 = vld [vmem:[#allocation3 + $0x10] sm:$0xff]
    %v3217 = vld [vmem:[#allocation3 + $0x18] sm:$0xf]
    %v3218 = vld [vmem:[#allocation3 + $0x1c] sm:$0xff]
    %v3219 = vld [vmem:[#allocation3 + $0x24] sm:$0xff]
    %v3220 = vld [vmem:[#allocation3 + $0x2c] sm:$0xff]
    %v3221 = vld [vmem:[#allocation3 + $0x34] sm:$0xf]
    %v3222 = vld [vmem:[#allocation3 + $0x38] sm:$0xff]
    %v3223 = vld [vmem:[#allocation3 + $0x40] sm:$0xff]
    %v3224 = vld [vmem:[#allocation3 + $0x48] sm:$0xff]
    %v3225 = vld [vmem:[#allocation3 + $0x50] sm:$0xf]
    %v3226 = vld [vmem:[#allocation3 + $0x54] sm:$0xff]
    %v3227 = vld [vmem:[#allocation3 + $0x5c] sm:$0xff]
    %v3228 = vld [vmem:[#allocation3 + $0x64] sm:$0xff]
    %v3229 = vld [vmem:[#allocation3 + $0x6c] sm:$0xf]
    %v3230 = vld [vmem:[#allocation3 + $0x70] sm:$0xff]
    %v3231 = vld [vmem:[#allocation3 + $0x78] sm:$0xff]
    %v3232 = vld [vmem:[#allocation3 + $0x80] sm:$0xff]
    %v3233 = vld [vmem:[#allocation3 + $0x88] sm:$0xf]
    %v3234 = vld [vmem:[#allocation3 + $0x8c] sm:$0xff]
    %v3235 = vld [vmem:[#allocation3 + $0x94] sm:$0xff]
    %v3236 = vld [vmem:[#allocation3 + $0x9c] sm:$0xff]
    %v3237 = vld [vmem:[#allocation3 + $0xa4] sm:$0xf]
    %v3238 = vld [vmem:[#allocation3 + $0xa8] sm:$0xff]
    %v3239 = vld [vmem:[#allocation3 + $0xb0] sm:$0xff]
    %v3240 = vld [vmem:[#allocation3 + $0xb8] sm:$0xff]
    %v3241 = vld [vmem:[#allocation3 + $0xc0] sm:$0xf]
    %v3242 = vld [vmem:[#allocation3 + $0xc4] sm:$0xff]
    %v3243 = vld [vmem:[#allocation3 + $0xcc] sm:$0xff]
    %v3244 = vld [vmem:[#allocation3 + $0xd4] sm:$0xff]
    %v3245 = vld [vmem:[#allocation3 + $0xdc] sm:$0xf]
    %v3246 = vld [vmem:[#allocation3 + $0xe0] sm:$0xff]
    %v3247 = vld [vmem:[#allocation3 + $0xe8] sm:$0xff]
    %v3248 = vld [vmem:[#allocation3 + $0xf0] sm:$0xff]
    %v3249 = vld [vmem:[#allocation3 + $0xf8] sm:$0xf]
    %v3250 = vld [vmem:[#allocation3 + $0xfc] sm:$0xff]
    %v3251 = vld [vmem:[#allocation3 + $0x104] sm:$0xff]
    %v3252 = vld [vmem:[#allocation3 + $0x10c] sm:$0xff]
    %v3253 = vld [vmem:[#allocation3 + $0x114] sm:$0xf]
    %v3254 = vld [vmem:[#allocation3 + $0x118] sm:$0xff]
    %v3255 = vld [vmem:[#allocation3 + $0x120] sm:$0xff]
    %v3256 = vld [vmem:[#allocation3 + $0x128] sm:$0xff]
    %v3257 = vld [vmem:[#allocation3 + $0x130] sm:$0xf]
    %v3258 = vld [vmem:[#allocation3 + $0x134] sm:$0xff]
    %v3259 = vld [vmem:[#allocation3 + $0x13c] sm:$0xff]
    %v3260 = vld [vmem:[#allocation3 + $0x144] sm:$0xff]
    %v3261 = vld [vmem:[#allocation3 + $0x14c] sm:$0xf]
    %v3262 = vld [vmem:[#allocation3 + $0x150] sm:$0xff]
    %v3263 = vld [vmem:[#allocation3 + $0x158] sm:$0xff]
    %v3264 = vld [vmem:[#allocation3 + $0x160] sm:$0xff]
    %v3265 = vld [vmem:[#allocation3 + $0x168] sm:$0xf]
    %v3266 = vld [vmem:[#allocation3 + $0x16c] sm:$0xff]
    %v3267 = vld [vmem:[#allocation3 + $0x174] sm:$0xff]
    %v3268 = vld [vmem:[#allocation3 + $0x17c] sm:$0xff]
    %v3269 = vld [vmem:[#allocation3 + $0x184] sm:$0xf]
    %v3270 = vld [vmem:[#allocation3 + $0x188] sm:$0xff]
    %v3271 = vld [vmem:[#allocation3 + $0x190] sm:$0xff]
    %v3272 = vld [vmem:[#allocation3 + $0x198] sm:$0xff]
    %v3273 = vld [vmem:[#allocation3 + $0x1a0] sm:$0xf]
    %v3274 = vld [vmem:[#allocation3 + $0x1a4] sm:$0xff]
    %v3275 = vld [vmem:[#allocation3 + $0x1ac] sm:$0xff]
    %v3276 = vld [vmem:[#allocation3 + $0x1b4] sm:$0xff]
    %v3277 = vld [vmem:[#allocation3 + $0x1bc] sm:$0xf]
    %v3278 = vld [vmem:[#allocation3 + $0x1c0] sm:$0xff]
    %v3279 = vld [vmem:[#allocation3 + $0x1c8] sm:$0xff]
    %v3280 = vld [vmem:[#allocation3 + $0x1d0] sm:$0xff]
    %v3281 = vld [vmem:[#allocation3 + $0x1d8] sm:$0xf]
    %v3282 = vld [vmem:[#allocation3 + $0x1dc] sm:$0xff]
    %v3283 = vld [vmem:[#allocation3 + $0x1e4] sm:$0xff]
    %v3284 = vld [vmem:[#allocation3 + $0x1ec] sm:$0xff]
    %v3285 = vld [vmem:[#allocation3 + $0x1f4] sm:$0xf]
    %v3286 = vld [vmem:[#allocation3 + $0x1f8] sm:$0xff]
    %v3287 = vld [vmem:[#allocation3 + $0x200] sm:$0xff]
    %v3288 = vld [vmem:[#allocation3 + $0x208] sm:$0xff]
    %v3289 = vld [vmem:[#allocation3 + $0x210] sm:$0xf]
    %v3290 = vld [vmem:[#allocation3 + $0x214] sm:$0xff]
    %v3291 = vld [vmem:[#allocation3 + $0x21c] sm:$0xff]
    %v3292 = vld [vmem:[#allocation3 + $0x224] sm:$0xff]
    %v3293 = vld [vmem:[#allocation3 + $0x22c] sm:$0xf]
    %v3294 = vld [vmem:[#allocation3 + $0x230] sm:$0xff]
    %v3295 = vld [vmem:[#allocation3 + $0x238] sm:$0xff]
    %v3296 = vld [vmem:[#allocation3 + $0x240] sm:$0xff]
    %v3297 = vld [vmem:[#allocation3 + $0x248] sm:$0xf]
    %v3298 = vld [vmem:[#allocation3 + $0x24c] sm:$0xff]
    %v3299 = vld [vmem:[#allocation3 + $0x254] sm:$0xff]
    %v3300 = vld [vmem:[#allocation3 + $0x25c] sm:$0xff]
    %v3301 = vld [vmem:[#allocation3 + $0x264] sm:$0xf]
    %v3302 = vld [vmem:[#allocation3 + $0x268] sm:$0xff]
    %v3303 = vld [vmem:[#allocation3 + $0x270] sm:$0xff]
    %v3304 = vld [vmem:[#allocation3 + $0x278] sm:$0xff]
    %v3305 = vld [vmem:[#allocation3 + $0x280] sm:$0xf]
    %v3306 = vld [vmem:[#allocation3 + $0x284] sm:$0xff]
    %v3307 = vld [vmem:[#allocation3 + $0x28c] sm:$0xff]
    %v3308 = vld [vmem:[#allocation3 + $0x294] sm:$0xff]
    %v3309 = vld [vmem:[#allocation3 + $0x29c] sm:$0xf]
    %v3310 = vld [vmem:[#allocation3 + $0x2a0] sm:$0xff]
    %v3311 = vld [vmem:[#allocation3 + $0x2a8] sm:$0xff]
    %v3312 = vld [vmem:[#allocation3 + $0x2b0] sm:$0xff]
    %v3313 = vld [vmem:[#allocation3 + $0x2b8] sm:$0xf]
    %v3314 = vld [vmem:[#allocation3 + $0x2bc] sm:$0xff]
    %v3315 = vld [vmem:[#allocation3 + $0x2c4] sm:$0xff]
    %v3316 = vld [vmem:[#allocation3 + $0x2cc] sm:$0xff]
    %v3317 = vld [vmem:[#allocation3 + $0x2d4] sm:$0xf]
    %v3318 = vld [vmem:[#allocation3 + $0x2d8] sm:$0xff]
    %v3319 = vld [vmem:[#allocation3 + $0x2e0] sm:$0xff]
    %v3320 = vld [vmem:[#allocation3 + $0x2e8] sm:$0xff]
    %v3321 = vld [vmem:[#allocation3 + $0x2f0] sm:$0xf]
    %v3322 = vld [vmem:[#allocation3 + $0x2f4] sm:$0xff]
    %v3323 = vld [vmem:[#allocation3 + $0x2fc] sm:$0xff]
    %v3324 = vld [vmem:[#allocation3 + $0x304] sm:$0xff]
    %v3325 = vld [vmem:[#allocation3 + $0x30c] sm:$0xf]
    %v3326 = vld [vmem:[#allocation3 + $0x310] sm:$0xff]
    %v3327 = vld [vmem:[#allocation3 + $0x318] sm:$0xff]
    %v3328 = vld [vmem:[#allocation3 + $0x320] sm:$0xff]
    %v3329 = vld [vmem:[#allocation3 + $0x328] sm:$0xf]
    %v3330 = vld [vmem:[#allocation3 + $0x32c] sm:$0xff]
    %v3331 = vld [vmem:[#allocation3 + $0x334] sm:$0xff]
    %v3332 = vld [vmem:[#allocation3 + $0x33c] sm:$0xff]
    %v3333 = vld [vmem:[#allocation3 + $0x344] sm:$0xf]
    %v3334 = vld [vmem:[#allocation3 + $0x348] sm:$0xff]
    %v3335 = vld [vmem:[#allocation3 + $0x350] sm:$0xff]
    %v3336 = vld [vmem:[#allocation3 + $0x358] sm:$0xff]
    %v3337 = vld [vmem:[#allocation3 + $0x360] sm:$0xf]
    %v3338 = vld [vmem:[#allocation3 + $0x364] sm:$0xff]
    %v3339 = vld [vmem:[#allocation3 + $0x36c] sm:$0xff]
    %v3340 = vld [vmem:[#allocation3 + $0x374] sm:$0xff]
    %v3341 = vld [vmem:[#allocation3 + $0x37c] sm:$0xf]
    %v3342 = vld [vmem:[#allocation3 + $0x380] sm:$0xff]
    %v3343 = vld [vmem:[#allocation3 + $0x388] sm:$0xff]
    %v3344 = vld [vmem:[#allocation3 + $0x390] sm:$0xff]
    %v3345 = vld [vmem:[#allocation3 + $0x398] sm:$0xf]
    %v3346 = vld [vmem:[#allocation3 + $0x39c] sm:$0xff]
    %v3347 = vld [vmem:[#allocation3 + $0x3a4] sm:$0xff]
    %v3348 = vld [vmem:[#allocation3 + $0x3ac] sm:$0xff]
    %v3349 = vld [vmem:[#allocation3 + $0x3b4] sm:$0xf]
    %v3350 = vld [vmem:[#allocation3 + $0x3b8] sm:$0xff]
    %v3351 = vld [vmem:[#allocation3 + $0x3c0] sm:$0xff]
    %v3352 = vld [vmem:[#allocation3 + $0x3c8] sm:$0xff]
    %v3353 = vld [vmem:[#allocation3 + $0x3d0] sm:$0xf]
    %v3354 = vld [vmem:[#allocation3 + $0x3d4] sm:$0xff]
    %v3355 = vld [vmem:[#allocation3 + $0x3dc] sm:$0xff]
    %v3356 = vld [vmem:[#allocation3 + $0x3e4] sm:$0xff]
    %v3357 = vld [vmem:[#allocation3 + $0x3ec] sm:$0xf]
    %v3358 = vld [vmem:[#allocation3 + $0x3f0] sm:$0xff]
    %v3359 = vld [vmem:[#allocation3 + $0x3f8] sm:$0xff]
    %v3360 = vld [vmem:[#allocation3 + $0x400] sm:$0xff]
    %v3361 = vld [vmem:[#allocation3 + $0x408] sm:$0xf]
    %v3362 = vld [vmem:[#allocation3 + $0x40c] sm:$0xff]
    %v3363 = vld [vmem:[#allocation3 + $0x414] sm:$0xff]
    %v3364 = vld [vmem:[#allocation3 + $0x41c] sm:$0xff]
    %v3365 = vld [vmem:[#allocation3 + $0x424] sm:$0xf]
    %v3366 = vld [vmem:[#allocation3 + $0x428] sm:$0xff]
    %v3367 = vld [vmem:[#allocation3 + $0x430] sm:$0xff]
    %v3368 = vld [vmem:[#allocation3 + $0x438] sm:$0xff]
    %v3369 = vld [vmem:[#allocation3 + $0x440] sm:$0xf]
    %v3370 = vld [vmem:[#allocation3 + $0x444] sm:$0xff]
    %v3371 = vld [vmem:[#allocation3 + $0x44c] sm:$0xff]
    %v3372 = vld [vmem:[#allocation3 + $0x454] sm:$0xff]
    %v3373 = vld [vmem:[#allocation3 + $0x45c] sm:$0xf]
    %v3374 = vld [vmem:[#allocation3 + $0x460] sm:$0xff]
    %v3375 = vld [vmem:[#allocation3 + $0x468] sm:$0xff]
    %v3376 = vld [vmem:[#allocation3 + $0x470] sm:$0xff]
    %v3377 = vld [vmem:[#allocation3 + $0x478] sm:$0xf]
    %v3378 = vld [vmem:[#allocation3 + $0x47c] sm:$0xff]
    %v3379 = vld [vmem:[#allocation3 + $0x484] sm:$0xff]
    %v3380 = vld [vmem:[#allocation3 + $0x48c] sm:$0xff]
    %v3381 = vld [vmem:[#allocation3 + $0x494] sm:$0xf]
    %v3382 = vld [vmem:[#allocation3 + $0x498] sm:$0xff]
    %v3383 = vld [vmem:[#allocation3 + $0x4a0] sm:$0xff]
    %v3384 = vld [vmem:[#allocation3 + $0x4a8] sm:$0xff]
    %v3385 = vld [vmem:[#allocation3 + $0x4b0] sm:$0xf]
    %v3386 = vld [vmem:[#allocation3 + $0x4b4] sm:$0xff]
    %v3387 = vld [vmem:[#allocation3 + $0x4bc] sm:$0xff]
    %v3388 = vld [vmem:[#allocation3 + $0x4c4] sm:$0xff]
    %v3389 = vld [vmem:[#allocation3 + $0x4cc] sm:$0xf]
    %v3390 = vld [vmem:[#allocation3 + $0x4d0] sm:$0xff]
    %v3391 = vld [vmem:[#allocation3 + $0x4d8] sm:$0xff]
    %v3392 = vld [vmem:[#allocation3 + $0x4e0] sm:$0xff]
    %v3393 = vld [vmem:[#allocation3 + $0x4e8] sm:$0xf]
    %v3394 = vld [vmem:[#allocation3 + $0x4ec] sm:$0xff]
    %v3395 = vld [vmem:[#allocation3 + $0x4f4] sm:$0xff]
    %v3396 = vld [vmem:[#allocation3 + $0x4fc] sm:$0xff]
    %v3397 = vld [vmem:[#allocation3 + $0x504] sm:$0xf]
    %v3398 = vld [vmem:[#allocation3 + $0x508] sm:$0xff]
    %v3399 = vld [vmem:[#allocation3 + $0x510] sm:$0xff]
    %v3400 = vld [vmem:[#allocation3 + $0x518] sm:$0xff]
    %v3401 = vld [vmem:[#allocation3 + $0x520] sm:$0xf]
    %v3402 = vld [vmem:[#allocation3 + $0x524] sm:$0xff]
    %v3403 = vld [vmem:[#allocation3 + $0x52c] sm:$0xff]
    %v3404 = vld [vmem:[#allocation3 + $0x534] sm:$0xff]
    %v3405 = vld [vmem:[#allocation3 + $0x53c] sm:$0xf]
    %v3406 = vld [vmem:[#allocation3 + $0x540] sm:$0xff]
    %v3407 = vld [vmem:[#allocation3 + $0x548] sm:$0xff]
    %v3408 = vld [vmem:[#allocation3 + $0x550] sm:$0xff]
    %v3409 = vld [vmem:[#allocation3 + $0x558] sm:$0xf]
    %v3410 = vld [vmem:[#allocation3 + $0x55c] sm:$0xff]
    %v3411 = vld [vmem:[#allocation3 + $0x564] sm:$0xff]
    %v3412 = vld [vmem:[#allocation3 + $0x56c] sm:$0xff]
    %v3413 = vld [vmem:[#allocation3 + $0x574] sm:$0xf]
    %v3414 = vld [vmem:[#allocation3 + $0x578] sm:$0xff]
    %v3415 = vld [vmem:[#allocation3 + $0x580] sm:$0xff]
    %v3416 = vld [vmem:[#allocation3 + $0x588] sm:$0xff]
    %v3417 = vld [vmem:[#allocation3 + $0x590] sm:$0xf]
    %v3418 = vld [vmem:[#allocation3 + $0x594] sm:$0xff]
    %v3419 = vld [vmem:[#allocation3 + $0x59c] sm:$0xff]
    %v3420 = vld [vmem:[#allocation3 + $0x5a4] sm:$0xff]
    %v3421 = vld [vmem:[#allocation3 + $0x5ac] sm:$0xf]
    %v3422 = vld [vmem:[#allocation3 + $0x5b0] sm:$0xff]
    %v3423 = vld [vmem:[#allocation3 + $0x5b8] sm:$0xff]
    %v3424 = vld [vmem:[#allocation3 + $0x5c0] sm:$0xff]
    %v3425 = vld [vmem:[#allocation3 + $0x5c8] sm:$0xf]
    %v3426 = vld [vmem:[#allocation3 + $0x5cc] sm:$0xff]
    %v3427 = vld [vmem:[#allocation3 + $0x5d4] sm:$0xff]
    %v3428 = vld [vmem:[#allocation3 + $0x5dc] sm:$0xff]
    %v3429 = vld [vmem:[#allocation3 + $0x5e4] sm:$0xf]
    %v3430 = vld [vmem:[#allocation3 + $0x5e8] sm:$0xff]
    %v3431 = vld [vmem:[#allocation3 + $0x5f0] sm:$0xff]
    %v3432 = vld [vmem:[#allocation3 + $0x5f8] sm:$0xff]
    %v3433 = vld [vmem:[#allocation3 + $0x600] sm:$0xf]
    %v3434 = vld [vmem:[#allocation3 + $0x604] sm:$0xff]
    %v3435 = vld [vmem:[#allocation3 + $0x60c] sm:$0xff]
    %v3436 = vld [vmem:[#allocation3 + $0x614] sm:$0xff]
    %v3437 = vld [vmem:[#allocation3 + $0x61c] sm:$0xf]
    %v3438 = vld [vmem:[#allocation3 + $0x620] sm:$0xff]
    %v3439 = vld [vmem:[#allocation3 + $0x628] sm:$0xff]
    %v3440 = vld [vmem:[#allocation3 + $0x630] sm:$0xff]
    %v3441 = vld [vmem:[#allocation3 + $0x638] sm:$0xf]
    %v3442 = vld [vmem:[#allocation3 + $0x63c] sm:$0xff]
    %v3443 = vld [vmem:[#allocation3 + $0x644] sm:$0xff]
    %v3444 = vld [vmem:[#allocation3 + $0x64c] sm:$0xff]
    %v3445 = vld [vmem:[#allocation3 + $0x654] sm:$0xf]
    %v3446 = vld [vmem:[#allocation3 + $0x658] sm:$0xff]
    %v3447 = vld [vmem:[#allocation3 + $0x660] sm:$0xff]
    %v3448 = vld [vmem:[#allocation3 + $0x668] sm:$0xff]
    %v3449 = vld [vmem:[#allocation3 + $0x670] sm:$0xf]
    %v3450 = vld [vmem:[#allocation3 + $0x674] sm:$0xff]
    %v3451 = vld [vmem:[#allocation3 + $0x67c] sm:$0xff]
    %v3452 = vld [vmem:[#allocation3 + $0x684] sm:$0xff]
    %v3453 = vld [vmem:[#allocation3 + $0x68c] sm:$0xf]
    %v3454 = vld [vmem:[#allocation3 + $0x690] sm:$0xff]
    %v3455 = vld [vmem:[#allocation3 + $0x698] sm:$0xff]
    %v3456 = vld [vmem:[#allocation3 + $0x6a0] sm:$0xff]
    %v3457 = vld [vmem:[#allocation3 + $0x6a8] sm:$0xf]
    %v3458 = vld [vmem:[#allocation3 + $0x6ac] sm:$0xff]
    %v3459 = vld [vmem:[#allocation3 + $0x6b4] sm:$0xff]
    %v3460 = vld [vmem:[#allocation3 + $0x6bc] sm:$0xff]
    %v3461 = vld [vmem:[#allocation3 + $0x6c4] sm:$0xf]
    %v3462 = vld [vmem:[#allocation3 + $0x6c8] sm:$0xff]
    %v3463 = vld [vmem:[#allocation3 + $0x6d0] sm:$0xff]
    %v3464 = vld [vmem:[#allocation3 + $0x6d8] sm:$0xff]
    %v3465 = vld [vmem:[#allocation3 + $0x6e0] sm:$0xf]
    %v3466 = vld [vmem:[#allocation3 + $0x6e4] sm:$0xff]
    %v3467 = vld [vmem:[#allocation3 + $0x6ec] sm:$0xff]
    %v3468 = vld [vmem:[#allocation3 + $0x6f4] sm:$0xff]
    %v3469 = vld [vmem:[#allocation3 + $0x6fc] sm:$0xf]
    %v3470 = vld [vmem:[#allocation3 + $0x700] sm:$0xff]
    %v3471 = vld [vmem:[#allocation3 + $0x708] sm:$0xff]
    %v3472 = vld [vmem:[#allocation3 + $0x710] sm:$0xff]
    %v3473 = vld [vmem:[#allocation3 + $0x718] sm:$0xf]
    %v3474 = vld [vmem:[#allocation3 + $0x71c] sm:$0xff]
    %v3475 = vld [vmem:[#allocation3 + $0x724] sm:$0xff]
    %v3476 = vld [vmem:[#allocation3 + $0x72c] sm:$0xff]
    %v3477 = vld [vmem:[#allocation3 + $0x734] sm:$0xf]
    %v3478 = vld [vmem:[#allocation3 + $0x738] sm:$0xff]
    %v3479 = vld [vmem:[#allocation3 + $0x740] sm:$0xff]
    %v3480 = vld [vmem:[#allocation3 + $0x748] sm:$0xff]
    %v3481 = vld [vmem:[#allocation3 + $0x750] sm:$0xf]
    %v3482 = vld [vmem:[#allocation3 + $0x754] sm:$0xff]
    %v3483 = vld [vmem:[#allocation3 + $0x75c] sm:$0xff]
    %v3484 = vld [vmem:[#allocation3 + $0x764] sm:$0xff]
    %v3485 = vld [vmem:[#allocation3 + $0x76c] sm:$0xf]
    %v3486 = vld [vmem:[#allocation3 + $0x770] sm:$0xff]
    %v3487 = vld [vmem:[#allocation3 + $0x778] sm:$0xff]
    %v3488 = vld [vmem:[#allocation3 + $0x780] sm:$0xff]
    %v3489 = vld [vmem:[#allocation3 + $0x788] sm:$0xf]
    %v3490 = vld [vmem:[#allocation3 + $0x78c] sm:$0xff]
    %v3491 = vld [vmem:[#allocation3 + $0x794] sm:$0xff]
    %v3492 = vld [vmem:[#allocation3 + $0x79c] sm:$0xff]
    %v3493 = vld [vmem:[#allocation3 + $0x7a4] sm:$0xf]
    %v3494 = vld [vmem:[#allocation3 + $0x7a8] sm:$0xff]
    %v3495 = vld [vmem:[#allocation3 + $0x7b0] sm:$0xff]
    %v3496 = vld [vmem:[#allocation3 + $0x7b8] sm:$0xff]
    %v3497 = vld [vmem:[#allocation3 + $0x7c0] sm:$0xf]
    %v3498 = vld [vmem:[#allocation3 + $0x7c4] sm:$0xff]
    %v3499 = vld [vmem:[#allocation3 + $0x7cc] sm:$0xff]
    %v3500 = vld [vmem:[#allocation3 + $0x7d4] sm:$0xff]
    %v3501 = vld [vmem:[#allocation3 + $0x7dc] sm:$0xf]
    %v3502 = vld [vmem:[#allocation3 + $0x7e0] sm:$0xff]
    %v3503 = vld [vmem:[#allocation3 + $0x7e8] sm:$0xff]
    %v3504 = vld [vmem:[#allocation3 + $0x7f0] sm:$0xff]
    %v3505 = vld [vmem:[#allocation3 + $0x7f8] sm:$0xf]
    %v3506 = vld [vmem:[#allocation3 + $0x7fc] sm:$0xff]
    %v3507 = vld [vmem:[#allocation3 + $0x804] sm:$0xff]
    %v3508 = vld [vmem:[#allocation3 + $0x80c] sm:$0xff]
    %v3509 = vld [vmem:[#allocation3 + $0x814] sm:$0xf]
    %v3510 = vld [vmem:[#allocation3 + $0x818] sm:$0xff]
    %v3511 = vld [vmem:[#allocation3 + $0x820] sm:$0xff]
    %v3512 = vld [vmem:[#allocation3 + $0x828] sm:$0xff]
    %v3513 = vld [vmem:[#allocation3 + $0x830] sm:$0xf]
    %v3514 = vld [vmem:[#allocation3 + $0x834] sm:$0xff]
    %v3515 = vld [vmem:[#allocation3 + $0x83c] sm:$0xff]
    %v3516 = vld [vmem:[#allocation3 + $0x844] sm:$0xff]
    %v3517 = vld [vmem:[#allocation3 + $0x84c] sm:$0xf]
    %v3518 = vld [vmem:[#allocation3 + $0x850] sm:$0xff]
    %v3519 = vld [vmem:[#allocation3 + $0x858] sm:$0xff]
    %v3520 = vld [vmem:[#allocation3 + $0x860] sm:$0xff]
    %v3521 = vld [vmem:[#allocation3 + $0x868] sm:$0xf]
    %v3522 = vld [vmem:[#allocation3 + $0x86c] sm:$0xff]
    %v3523 = vld [vmem:[#allocation3 + $0x874] sm:$0xff]
    %v3524 = vld [vmem:[#allocation3 + $0x87c] sm:$0xff]
    %v3525 = vld [vmem:[#allocation3 + $0x884] sm:$0xf]
    %v3526 = vld [vmem:[#allocation3 + $0x888] sm:$0xff]
    %v3527 = vld [vmem:[#allocation3 + $0x890] sm:$0xff]
    %v3528 = vld [vmem:[#allocation3 + $0x898] sm:$0xff]
    %v3529 = vld [vmem:[#allocation3 + $0x8a0] sm:$0xf]
    %v3530 = vld [vmem:[#allocation3 + $0x8a4] sm:$0xff]
    %v3531 = vld [vmem:[#allocation3 + $0x8ac] sm:$0xff]
    %v3532 = vld [vmem:[#allocation3 + $0x8b4] sm:$0xff]
    %v3533 = vld [vmem:[#allocation3 + $0x8bc] sm:$0xf]
    %v3534 = vld [vmem:[#allocation3 + $0x8c0] sm:$0xff]
    %v3535 = vld [vmem:[#allocation3 + $0x8c8] sm:$0xff]
    %v3536 = vld [vmem:[#allocation3 + $0x8d0] sm:$0xff]
    %v3537 = vld [vmem:[#allocation3 + $0x8d8] sm:$0xf]
    %v3538 = vld [vmem:[#allocation3 + $0x8dc] sm:$0xff]
    %v3539 = vld [vmem:[#allocation3 + $0x8e4] sm:$0xff]
    %v3540 = vld [vmem:[#allocation3 + $0x8ec] sm:$0xff]
    %v3541 = vld [vmem:[#allocation3 + $0x8f4] sm:$0xf]
    %v3542 = vld [vmem:[#allocation3 + $0x8f8] sm:$0xff]
    %v3543 = vld [vmem:[#allocation3 + $0x900] sm:$0xff]
    %v3544 = vld [vmem:[#allocation3 + $0x908] sm:$0xff]
    %v3545 = vld [vmem:[#allocation3 + $0x910] sm:$0xf]
    %v3546 = vld [vmem:[#allocation3 + $0x914] sm:$0xff]
    %v3547 = vld [vmem:[#allocation3 + $0x91c] sm:$0xff]
    %v3548 = vld [vmem:[#allocation3 + $0x924] sm:$0xff]
    %v3549 = vld [vmem:[#allocation3 + $0x92c] sm:$0xf]
    %v3550 = vld [vmem:[#allocation3 + $0x930] sm:$0xff]
    %v3551 = vld [vmem:[#allocation3 + $0x938] sm:$0xff]
    %v3552 = vld [vmem:[#allocation3 + $0x940] sm:$0xff]
    %v3553 = vld [vmem:[#allocation3 + $0x948] sm:$0xf]
    %v3554 = vld [vmem:[#allocation3 + $0x94c] sm:$0xff]
    %v3555 = vld [vmem:[#allocation3 + $0x954] sm:$0xff]
    %v3556 = vld [vmem:[#allocation3 + $0x95c] sm:$0xff]
    %v3557 = vld [vmem:[#allocation3 + $0x964] sm:$0xf]
    %v3558 = vld [vmem:[#allocation3 + $0x968] sm:$0xff]
    %v3559 = vld [vmem:[#allocation3 + $0x970] sm:$0xff]
    %v3560 = vld [vmem:[#allocation3 + $0x978] sm:$0xff]
    %v3561 = vld [vmem:[#allocation3 + $0x980] sm:$0xf]
    %v3562 = vld [vmem:[#allocation3 + $0x984] sm:$0xff]
    %v3563 = vld [vmem:[#allocation3 + $0x98c] sm:$0xff]
    %v3564 = vld [vmem:[#allocation3 + $0x994] sm:$0xff]
    %v3565 = vld [vmem:[#allocation3 + $0x99c] sm:$0xf]
    %v3566 = vld [vmem:[#allocation3 + $0x9a0] sm:$0xff]
    %v3567 = vld [vmem:[#allocation3 + $0x9a8] sm:$0xff]
    %v3568 = vld [vmem:[#allocation3 + $0x9b0] sm:$0xff]
    %v3569 = vld [vmem:[#allocation3 + $0x9b8] sm:$0xf]
    %v3570 = vld [vmem:[#allocation3 + $0x9bc] sm:$0xff]
    %v3571 = vld [vmem:[#allocation3 + $0x9c4] sm:$0xff]
    %v3572 = vld [vmem:[#allocation3 + $0x9cc] sm:$0xff]
    %v3573 = vld [vmem:[#allocation3 + $0x9d4] sm:$0xf]
    %v3574 = vld [vmem:[#allocation3 + $0x9d8] sm:$0xff]
    %v3575 = vld [vmem:[#allocation3 + $0x9e0] sm:$0xff]
    %v3576 = vld [vmem:[#allocation3 + $0x9e8] sm:$0xff]
    %v3577 = vld [vmem:[#allocation3 + $0x9f0] sm:$0xf]
    %v3578 = vld [vmem:[#allocation3 + $0x9f4] sm:$0xff]
    %v3579 = vld [vmem:[#allocation3 + $0x9fc] sm:$0xff]
    %v3580 = vld [vmem:[#allocation3 + $0xa04] sm:$0xff]
    %v3581 = vld [vmem:[#allocation3 + $0xa0c] sm:$0xf]
    %v3582 = vld [vmem:[#allocation3 + $0xa10] sm:$0xff]
    %v3583 = vld [vmem:[#allocation3 + $0xa18] sm:$0xff]
    %v3584 = vld [vmem:[#allocation3 + $0xa20] sm:$0xff]
    %v3585 = vld [vmem:[#allocation3 + $0xa28] sm:$0xf]
    %v3586 = vld [vmem:[#allocation3 + $0xa2c] sm:$0xff]
    %v3587 = vld [vmem:[#allocation3 + $0xa34] sm:$0xff]
    %v3588 = vld [vmem:[#allocation3 + $0xa3c] sm:$0xff]
    %v3589 = vld [vmem:[#allocation3 + $0xa44] sm:$0xf]
    %v3590 = vld [vmem:[#allocation3 + $0xa48] sm:$0xff]
    %v3591 = vld [vmem:[#allocation3 + $0xa50] sm:$0xff]
    %v3592 = vld [vmem:[#allocation3 + $0xa58] sm:$0xff]
    %v3593 = vld [vmem:[#allocation3 + $0xa60] sm:$0xf]
    %v3594 = vld [vmem:[#allocation3 + $0xa64] sm:$0xff]
    %v3595 = vld [vmem:[#allocation3 + $0xa6c] sm:$0xff]
    %v3596 = vld [vmem:[#allocation3 + $0xa74] sm:$0xff]
    %v3597 = vld [vmem:[#allocation3 + $0xa7c] sm:$0xf]
    %v3598 = vld [vmem:[#allocation3 + $0xa80] sm:$0xff]
    %v3599 = vld [vmem:[#allocation3 + $0xa88] sm:$0xff]
    %v3600 = vld [vmem:[#allocation3 + $0xa90] sm:$0xff]
    %v3601 = vld [vmem:[#allocation3 + $0xa98] sm:$0xf]
    %v3602 = vld [vmem:[#allocation3 + $0xa9c] sm:$0xff]
    %v3603 = vld [vmem:[#allocation3 + $0xaa4] sm:$0xff]
    %v3604 = vld [vmem:[#allocation3 + $0xaac] sm:$0xff]
    %v3605 = vld [vmem:[#allocation3 + $0xab4] sm:$0xf]
    %v3606 = vld [vmem:[#allocation3 + $0xab8] sm:$0xff]
    %v3607 = vld [vmem:[#allocation3 + $0xac0] sm:$0xff]
    %v3608 = vld [vmem:[#allocation3 + $0xac8] sm:$0xff]
    %v3609 = vld [vmem:[#allocation3 + $0xad0] sm:$0xf]
    %v3610 = vld [vmem:[#allocation3 + $0xad4] sm:$0xff]
    %v3611 = vld [vmem:[#allocation3 + $0xadc] sm:$0xff]
    %v3612 = vld [vmem:[#allocation3 + $0xae4] sm:$0xff]
    %v3613 = vld [vmem:[#allocation3 + $0xaec] sm:$0xf]
    %v3614 = vld [vmem:[#allocation3 + $0xaf0] sm:$0xff]
    %v3615 = vld [vmem:[#allocation3 + $0xaf8] sm:$0xff]
    %v3616 = vld [vmem:[#allocation3 + $0xb00] sm:$0xff]
    %v3617 = vld [vmem:[#allocation3 + $0xb08] sm:$0xf]
    %v3618 = vld [vmem:[#allocation3 + $0xb0c] sm:$0xff]
    %v3619 = vld [vmem:[#allocation3 + $0xb14] sm:$0xff]
    %v3620 = vld [vmem:[#allocation3 + $0xb1c] sm:$0xff]
    %v3621 = vld [vmem:[#allocation3 + $0xb24] sm:$0xf]
    %v3622 = vld [vmem:[#allocation3 + $0xb28] sm:$0xff]
    %v3623 = vld [vmem:[#allocation3 + $0xb30] sm:$0xff]
    %v3624 = vld [vmem:[#allocation3 + $0xb38] sm:$0xff]
    %v3625 = vld [vmem:[#allocation3 + $0xb40] sm:$0xf]
    %v3626 = vld [vmem:[#allocation3 + $0xb44] sm:$0xff]
    %v3627 = vld [vmem:[#allocation3 + $0xb4c] sm:$0xff]
    %v3628 = vld [vmem:[#allocation3 + $0xb54] sm:$0xff]
    %v3629 = vld [vmem:[#allocation3 + $0xb5c] sm:$0xf]
    %v3630 = vld [vmem:[#allocation3 + $0xb60] sm:$0xff]
    %v3631 = vld [vmem:[#allocation3 + $0xb68] sm:$0xff]
    %v3632 = vld [vmem:[#allocation3 + $0xb70] sm:$0xff]
    %v3633 = vld [vmem:[#allocation3 + $0xb78] sm:$0xf]
    %v3634 = vld [vmem:[#allocation3 + $0xb7c] sm:$0xff]
    %v3635 = vld [vmem:[#allocation3 + $0xb84] sm:$0xff]
    %v3636 = vld [vmem:[#allocation3 + $0xb8c] sm:$0xff]
    %v3637 = vld [vmem:[#allocation3 + $0xb94] sm:$0xf]
    %v3638 = vld [vmem:[#allocation3 + $0xb98] sm:$0xff]
    %v3639 = vld [vmem:[#allocation3 + $0xba0] sm:$0xff]
    %v3640 = vld [vmem:[#allocation3 + $0xba8] sm:$0xff]
    %v3641 = vld [vmem:[#allocation3 + $0xbb0] sm:$0xf]
    %v3642 = vld [vmem:[#allocation3 + $0xbb4] sm:$0xff]
    %v3643 = vld [vmem:[#allocation3 + $0xbbc] sm:$0xff]
    %v3644 = vld [vmem:[#allocation3 + $0xbc4] sm:$0xff]
    %v3645 = vld [vmem:[#allocation3 + $0xbcc] sm:$0xf]
    %v3646 = vld [vmem:[#allocation3 + $0xbd0] sm:$0xff]
    %v3647 = vld [vmem:[#allocation3 + $0xbd8] sm:$0xff]
    %v3648 = vld [vmem:[#allocation3 + $0xbe0] sm:$0xff]
    %v3649 = vld [vmem:[#allocation3 + $0xbe8] sm:$0xf]
    %v3650 = vld [vmem:[#allocation3 + $0xbec] sm:$0xff]
    %v3651 = vld [vmem:[#allocation3 + $0xbf4] sm:$0xff]
    %v3652 = vld [vmem:[#allocation3 + $0xbfc] sm:$0xff]
    %v3653 = vld [vmem:[#allocation3 + $0xc04] sm:$0xf]
    %v3654 = vld [vmem:[#allocation3 + $0xc08] sm:$0xff]
    %v3655 = vld [vmem:[#allocation3 + $0xc10] sm:$0xff]
    %v3656 = vld [vmem:[#allocation3 + $0xc18] sm:$0xff]
    %v3657 = vld [vmem:[#allocation3 + $0xc20] sm:$0xf]
    %v3658 = vld [vmem:[#allocation3 + $0xc24] sm:$0xff]
    %v3659 = vld [vmem:[#allocation3 + $0xc2c] sm:$0xff]
    %v3660 = vld [vmem:[#allocation3 + $0xc34] sm:$0xff]
    %v3661 = vld [vmem:[#allocation3 + $0xc3c] sm:$0xf]
    %v3662 = vld [vmem:[#allocation3 + $0xc40] sm:$0xff]
    %v3663 = vld [vmem:[#allocation3 + $0xc48] sm:$0xff]
    %v3664 = vld [vmem:[#allocation3 + $0xc50] sm:$0xff]
    %v3665 = vld [vmem:[#allocation3 + $0xc58] sm:$0xf]
    %v3666 = vld [vmem:[#allocation3 + $0xc5c] sm:$0xff]
    %v3667 = vld [vmem:[#allocation3 + $0xc64] sm:$0xff]
    %v3668 = vld [vmem:[#allocation3 + $0xc6c] sm:$0xff]
    %v3669 = vld [vmem:[#allocation3 + $0xc74] sm:$0xf]
    %v3670 = vld [vmem:[#allocation3 + $0xc78] sm:$0xff]
    %v3671 = vld [vmem:[#allocation3 + $0xc80] sm:$0xff]
    %v3672 = vld [vmem:[#allocation3 + $0xc88] sm:$0xff]
    %v3673 = vld [vmem:[#allocation3 + $0xc90] sm:$0xf]
    %v3674 = vld [vmem:[#allocation3 + $0xc94] sm:$0xff]
    %v3675 = vld [vmem:[#allocation3 + $0xc9c] sm:$0xff]
    %v3676 = vld [vmem:[#allocation3 + $0xca4] sm:$0xff]
    %v3677 = vld [vmem:[#allocation3 + $0xcac] sm:$0xf]
    %v3678 = vld [vmem:[#allocation3 + $0xcb0] sm:$0xff]
    %v3679 = vld [vmem:[#allocation3 + $0xcb8] sm:$0xff]
    %v3680 = vld [vmem:[#allocation3 + $0xcc0] sm:$0xff]
    %v3681 = vld [vmem:[#allocation3 + $0xcc8] sm:$0xf]
    %v3682 = vld [vmem:[#allocation3 + $0xccc] sm:$0xff]
    %v3683 = vld [vmem:[#allocation3 + $0xcd4] sm:$0xff]
    %v3684 = vld [vmem:[#allocation3 + $0xcdc] sm:$0xff]
    %v3685 = vld [vmem:[#allocation3 + $0xce4] sm:$0xf]
    %v3686 = vld [vmem:[#allocation3 + $0xce8] sm:$0xff]
    %v3687 = vld [vmem:[#allocation3 + $0xcf0] sm:$0xff]
    %v3688 = vld [vmem:[#allocation3 + $0xcf8] sm:$0xff]
    %v3689 = vld [vmem:[#allocation3 + $0xd00] sm:$0xf]
    %v3690 = vld [vmem:[#allocation3 + $0xd04] sm:$0xff]
    %v3691 = vld [vmem:[#allocation3 + $0xd0c] sm:$0xff]
    %v3692 = vld [vmem:[#allocation3 + $0xd14] sm:$0xff]
    %v3693 = vld [vmem:[#allocation3 + $0xd1c] sm:$0xf]
    %v3694 = vld [vmem:[#allocation3 + $0xd20] sm:$0xff]
    %v3695 = vld [vmem:[#allocation3 + $0xd28] sm:$0xff]
    %v3696 = vld [vmem:[#allocation3 + $0xd30] sm:$0xff]
    %v3697 = vld [vmem:[#allocation3 + $0xd38] sm:$0xf]
    %v3698 = vld [vmem:[#allocation3 + $0xd3c] sm:$0xff]
    %v3699 = vld [vmem:[#allocation3 + $0xd44] sm:$0xff]
    %v3700 = vld [vmem:[#allocation3 + $0xd4c] sm:$0xff]
    %v3701 = vld [vmem:[#allocation3 + $0xd54] sm:$0xf]
    %v3702 = vld [vmem:[#allocation3 + $0xd58] sm:$0xff]
    %v3703 = vld [vmem:[#allocation3 + $0xd60] sm:$0xff]
    %v3704 = vld [vmem:[#allocation3 + $0xd68] sm:$0xff]
    %v3705 = vld [vmem:[#allocation3 + $0xd70] sm:$0xf]
    %v3706 = vld [vmem:[#allocation3 + $0xd74] sm:$0xff]
    %v3707 = vld [vmem:[#allocation3 + $0xd7c] sm:$0xff]
    %v3708 = vld [vmem:[#allocation3 + $0xd84] sm:$0xff]
    %v3709 = vld [vmem:[#allocation3 + $0xd8c] sm:$0xf]
    %v3710 = vld [vmem:[#allocation3 + $0xd90] sm:$0xff]
    %v3711 = vld [vmem:[#allocation3 + $0xd98] sm:$0xff]
    %v3712 = vld [vmem:[#allocation3 + $0xda0] sm:$0xff]
    %v3713 = vld [vmem:[#allocation3 + $0xda8] sm:$0xf]
    %v3714 = vld [vmem:[#allocation3 + $0xdac] sm:$0xff]
    %v3715 = vld [vmem:[#allocation3 + $0xdb4] sm:$0xff]
    %v3716 = vld [vmem:[#allocation3 + $0xdbc] sm:$0xff]
    %v3717 = vld [vmem:[#allocation3 + $0xdc4] sm:$0xf]
    %v3718 = vld [vmem:[#allocation3 + $0xdc8] sm:$0xff]
    %v3719 = vld [vmem:[#allocation3 + $0xdd0] sm:$0xff]
    %v3720 = vld [vmem:[#allocation3 + $0xdd8] sm:$0xff]
    %v3721 = vld [vmem:[#allocation3 + $0xde0] sm:$0xf]
    %v3722 = vld [vmem:[#allocation3 + $0xde4] sm:$0xff]
    %v3723 = vld [vmem:[#allocation3 + $0xdec] sm:$0xff]
    %v3724 = vld [vmem:[#allocation3 + $0xdf4] sm:$0xff]
    %v3725 = vld [vmem:[#allocation3 + $0xdfc] sm:$0xf]
    %v3726 = vpack.c.bf16 %v3202, %v3202
    %v3727 = vpack.c.bf16 %v3203, %v3203
    %v3728 = vpack.c.bf16 %v3204, %v3204
    %v3729 = vpack.c.bf16 %v3205, %v3205
    %v3730 = vpack.c.bf16 %v3206, %v3206
    %v3731 = vpack.c.bf16 %v3207, %v3207
    %v3732 = vpack.c.bf16 %v3208, %v3208
    %v3733 = vpack.c.bf16 %v3209, %v3209
    %v3735 = vlaneseq
    %v3736 = vshrl.u32 %v3735, 7
    %v3737 = vsub.s32 0, %v3736
    %v3738 = vrot.slane %v106, %v3737
    %v3739 = vlaneseq
    %v3740 = vshrl.u32 %v3739, 7
    %v3741 = vsub.s32 1, %v3740
    %v3742 = vrot.slane %v106, %v3741
    %v3743 = vlaneseq
    %v3744 = vshrl.u32 %v3743, 7
    %v3745 = vsub.s32 2, %v3744
    %v3746 = vrot.slane %v106, %v3745
    %v3747 = vlaneseq
    %v3748 = vshrl.u32 %v3747, 7
    %v3749 = vsub.s32 3, %v3748
    %v3750 = vrot.slane %v106, %v3749
    %v3751 = vlaneseq
    %v3752 = vshrl.u32 %v3751, 7
    %v3753 = vsub.s32 4, %v3752
    %v3754 = vrot.slane %v106, %v3753
    %v3755 = vlaneseq
    %v3756 = vshrl.u32 %v3755, 7
    %v3757 = vsub.s32 5, %v3756
    %v3758 = vrot.slane %v106, %v3757
    %v3759 = vlaneseq
    %v3760 = vshrl.u32 %v3759, 7
    %v3761 = vsub.s32 6, %v3760
    %v3762 = vrot.slane %v106, %v3761
    %v4282 = vunpack.c.l.b16 %v3214
    %v4283 = vunpack.c.h.b16 %v3214
    %v4284 = vunpack.c.l.b16 %v3215
    %v4285 = vunpack.c.h.b16 %v3215
    %v4286 = vunpack.c.l.b16 %v3216
    %v4287 = vunpack.c.h.b16 %v3216
    %v4288 = vunpack.c.l.b16 %v3217
    %v4289 = vunpack.c.l.b16 %v3218
    %v4290 = vunpack.c.h.b16 %v3218
    %v4291 = vunpack.c.l.b16 %v3219
    %v4292 = vunpack.c.h.b16 %v3219
    %v4293 = vunpack.c.l.b16 %v3220
    %v4294 = vunpack.c.h.b16 %v3220
    %v4295 = vunpack.c.l.b16 %v3221
    %v4296 = vunpack.c.l.b16 %v3222
    %v4297 = vunpack.c.h.b16 %v3222
    %v4298 = vunpack.c.l.b16 %v3223
    %v4299 = vunpack.c.h.b16 %v3223
    %v4300 = vunpack.c.l.b16 %v3224
    %v4301 = vunpack.c.h.b16 %v3224
    %v4302 = vunpack.c.l.b16 %v3225
    %v4303 = vunpack.c.l.b16 %v3226
    %v4304 = vunpack.c.h.b16 %v3226
    %v4305 = vunpack.c.l.b16 %v3227
    %v4306 = vunpack.c.h.b16 %v3227
    %v4307 = vunpack.c.l.b16 %v3228
    %v4308 = vunpack.c.h.b16 %v3228
    %v4309 = vunpack.c.l.b16 %v3229
    %v4310 = vunpack.c.l.b16 %v3230
    %v4311 = vunpack.c.h.b16 %v3230
    %v4312 = vunpack.c.l.b16 %v3231
    %v4313 = vunpack.c.h.b16 %v3231
    %v4314 = vunpack.c.l.b16 %v3232
    %v4315 = vunpack.c.h.b16 %v3232
    %v4316 = vunpack.c.l.b16 %v3233
    %v4317 = vunpack.c.l.b16 %v3234
    %v4318 = vunpack.c.h.b16 %v3234
    %v4319 = vunpack.c.l.b16 %v3235
    %v4320 = vunpack.c.h.b16 %v3235
    %v4321 = vunpack.c.l.b16 %v3236
    %v4322 = vunpack.c.h.b16 %v3236
    %v4323 = vunpack.c.l.b16 %v3237
    %v4324 = vunpack.c.l.b16 %v3238
    %v4325 = vunpack.c.h.b16 %v3238
    %v4326 = vunpack.c.l.b16 %v3239
    %v4327 = vunpack.c.h.b16 %v3239
    %v4328 = vunpack.c.l.b16 %v3240
    %v4329 = vunpack.c.h.b16 %v3240
    %v4330 = vunpack.c.l.b16 %v3241
    %v4331 = vunpack.c.l.b16 %v3242
    %v4332 = vunpack.c.h.b16 %v3242
    %v4333 = vunpack.c.l.b16 %v3243
    %v4334 = vunpack.c.h.b16 %v3243
    %v4335 = vunpack.c.l.b16 %v3244
    %v4336 = vunpack.c.h.b16 %v3244
    %v4337 = vunpack.c.l.b16 %v3245
    %v4338 = vunpack.c.l.b16 %v3246
    %v4339 = vunpack.c.h.b16 %v3246
    %v4340 = vunpack.c.l.b16 %v3247
    %v4341 = vunpack.c.h.b16 %v3247
    %v4342 = vunpack.c.l.b16 %v3248
    %v4343 = vunpack.c.h.b16 %v3248
    %v4344 = vunpack.c.l.b16 %v3249
    %v4345 = vunpack.c.l.b16 %v3250
    %v4346 = vunpack.c.h.b16 %v3250
    %v4347 = vunpack.c.l.b16 %v3251
    %v4348 = vunpack.c.h.b16 %v3251
    %v4349 = vunpack.c.l.b16 %v3252
    %v4350 = vunpack.c.h.b16 %v3252
    %v4351 = vunpack.c.l.b16 %v3253
    %v4352 = vunpack.c.l.b16 %v3254
    %v4353 = vunpack.c.h.b16 %v3254
    %v4354 = vunpack.c.l.b16 %v3255
    %v4355 = vunpack.c.h.b16 %v3255
    %v4356 = vunpack.c.l.b16 %v3256
    %v4357 = vunpack.c.h.b16 %v3256
    %v4358 = vunpack.c.l.b16 %v3257
    %v4359 = vunpack.c.l.b16 %v3258
    %v4360 = vunpack.c.h.b16 %v3258
    %v4361 = vunpack.c.l.b16 %v3259
    %v4362 = vunpack.c.h.b16 %v3259
    %v4363 = vunpack.c.l.b16 %v3260
    %v4364 = vunpack.c.h.b16 %v3260
    %v4365 = vunpack.c.l.b16 %v3261
    %v4366 = vunpack.c.l.b16 %v3262
    %v4367 = vunpack.c.h.b16 %v3262
    %v4368 = vunpack.c.l.b16 %v3263
    %v4369 = vunpack.c.h.b16 %v3263
    %v4370 = vunpack.c.l.b16 %v3264
    %v4371 = vunpack.c.h.b16 %v3264
    %v4372 = vunpack.c.l.b16 %v3265
    %v4373 = vunpack.c.l.b16 %v3266
    %v4374 = vunpack.c.h.b16 %v3266
    %v4375 = vunpack.c.l.b16 %v3267
    %v4376 = vunpack.c.h.b16 %v3267
    %v4377 = vunpack.c.l.b16 %v3268
    %v4378 = vunpack.c.h.b16 %v3268
    %v4379 = vunpack.c.l.b16 %v3269
    %v4380 = vunpack.c.l.b16 %v3270
    %v4381 = vunpack.c.h.b16 %v3270
    %v4382 = vunpack.c.l.b16 %v3271
    %v4383 = vunpack.c.h.b16 %v3271
    %v4384 = vunpack.c.l.b16 %v3272
    %v4385 = vunpack.c.h.b16 %v3272
    %v4386 = vunpack.c.l.b16 %v3273
    %v4387 = vunpack.c.l.b16 %v3274
    %v4388 = vunpack.c.h.b16 %v3274
    %v4389 = vunpack.c.l.b16 %v3275
    %v4390 = vunpack.c.h.b16 %v3275
    %v4391 = vunpack.c.l.b16 %v3276
    %v4392 = vunpack.c.h.b16 %v3276
    %v4393 = vunpack.c.l.b16 %v3277
    %v4394 = vunpack.c.l.b16 %v3278
    %v4395 = vunpack.c.h.b16 %v3278
    %v4396 = vunpack.c.l.b16 %v3279
    %v4397 = vunpack.c.h.b16 %v3279
    %v4398 = vunpack.c.l.b16 %v3280
    %v4399 = vunpack.c.h.b16 %v3280
    %v4400 = vunpack.c.l.b16 %v3281
    %v4401 = vunpack.c.l.b16 %v3282
    %v4402 = vunpack.c.h.b16 %v3282
    %v4403 = vunpack.c.l.b16 %v3283
    %v4404 = vunpack.c.h.b16 %v3283
    %v4405 = vunpack.c.l.b16 %v3284
    %v4406 = vunpack.c.h.b16 %v3284
    %v4407 = vunpack.c.l.b16 %v3285
    %v4408 = vunpack.c.l.b16 %v3286
    %v4409 = vunpack.c.h.b16 %v3286
    %v4410 = vunpack.c.l.b16 %v3287
    %v4411 = vunpack.c.h.b16 %v3287
    %v4412 = vunpack.c.l.b16 %v3288
    %v4413 = vunpack.c.h.b16 %v3288
    %v4414 = vunpack.c.l.b16 %v3289
    %v4415 = vunpack.c.l.b16 %v3290
    %v4416 = vunpack.c.h.b16 %v3290
    %v4417 = vunpack.c.l.b16 %v3291
    %v4418 = vunpack.c.h.b16 %v3291
    %v4419 = vunpack.c.l.b16 %v3292
    %v4420 = vunpack.c.h.b16 %v3292
    %v4421 = vunpack.c.l.b16 %v3293
    %v4422 = vunpack.c.l.b16 %v3294
    %v4423 = vunpack.c.h.b16 %v3294
    %v4424 = vunpack.c.l.b16 %v3295
    %v4425 = vunpack.c.h.b16 %v3295
    %v4426 = vunpack.c.l.b16 %v3296
    %v4427 = vunpack.c.h.b16 %v3296
    %v4428 = vunpack.c.l.b16 %v3297
    %v4429 = vunpack.c.l.b16 %v3298
    %v4430 = vunpack.c.h.b16 %v3298
    %v4431 = vunpack.c.l.b16 %v3299
    %v4432 = vunpack.c.h.b16 %v3299
    %v4433 = vunpack.c.l.b16 %v3300
    %v4434 = vunpack.c.h.b16 %v3300
    %v4435 = vunpack.c.l.b16 %v3301
    %v4436 = vunpack.c.l.b16 %v3302
    %v4437 = vunpack.c.h.b16 %v3302
    %v4438 = vunpack.c.l.b16 %v3303
    %v4439 = vunpack.c.h.b16 %v3303
    %v4440 = vunpack.c.l.b16 %v3304
    %v4441 = vunpack.c.h.b16 %v3304
    %v4442 = vunpack.c.l.b16 %v3305
    %v4443 = vunpack.c.l.b16 %v3306
    %v4444 = vunpack.c.h.b16 %v3306
    %v4445 = vunpack.c.l.b16 %v3307
    %v4446 = vunpack.c.h.b16 %v3307
    %v4447 = vunpack.c.l.b16 %v3308
    %v4448 = vunpack.c.h.b16 %v3308
    %v4449 = vunpack.c.l.b16 %v3309
    %v4450 = vunpack.c.l.b16 %v3310
    %v4451 = vunpack.c.h.b16 %v3310
    %v4452 = vunpack.c.l.b16 %v3311
    %v4453 = vunpack.c.h.b16 %v3311
    %v4454 = vunpack.c.l.b16 %v3312
    %v4455 = vunpack.c.h.b16 %v3312
    %v4456 = vunpack.c.l.b16 %v3313
    %v4457 = vunpack.c.l.b16 %v3314
    %v4458 = vunpack.c.h.b16 %v3314
    %v4459 = vunpack.c.l.b16 %v3315
    %v4460 = vunpack.c.h.b16 %v3315
    %v4461 = vunpack.c.l.b16 %v3316
    %v4462 = vunpack.c.h.b16 %v3316
    %v4463 = vunpack.c.l.b16 %v3317
    %v4464 = vunpack.c.l.b16 %v3318
    %v4465 = vunpack.c.h.b16 %v3318
    %v4466 = vunpack.c.l.b16 %v3319
    %v4467 = vunpack.c.h.b16 %v3319
    %v4468 = vunpack.c.l.b16 %v3320
    %v4469 = vunpack.c.h.b16 %v3320
    %v4470 = vunpack.c.l.b16 %v3321
    %v4471 = vunpack.c.l.b16 %v3322
    %v4472 = vunpack.c.h.b16 %v3322
    %v4473 = vunpack.c.l.b16 %v3323
    %v4474 = vunpack.c.h.b16 %v3323
    %v4475 = vunpack.c.l.b16 %v3324
    %v4476 = vunpack.c.h.b16 %v3324
    %v4477 = vunpack.c.l.b16 %v3325
    %v4478 = vunpack.c.l.b16 %v3326
    %v4479 = vunpack.c.h.b16 %v3326
    %v4480 = vunpack.c.l.b16 %v3327
    %v4481 = vunpack.c.h.b16 %v3327
    %v4482 = vunpack.c.l.b16 %v3328
    %v4483 = vunpack.c.h.b16 %v3328
    %v4484 = vunpack.c.l.b16 %v3329
    %v4485 = vunpack.c.l.b16 %v3330
    %v4486 = vunpack.c.h.b16 %v3330
    %v4487 = vunpack.c.l.b16 %v3331
    %v4488 = vunpack.c.h.b16 %v3331
    %v4489 = vunpack.c.l.b16 %v3332
    %v4490 = vunpack.c.h.b16 %v3332
    %v4491 = vunpack.c.l.b16 %v3333
    %v4492 = vunpack.c.l.b16 %v3334
    %v4493 = vunpack.c.h.b16 %v3334
    %v4494 = vunpack.c.l.b16 %v3335
    %v4495 = vunpack.c.h.b16 %v3335
    %v4496 = vunpack.c.l.b16 %v3336
    %v4497 = vunpack.c.h.b16 %v3336
    %v4498 = vunpack.c.l.b16 %v3337
    %v4499 = vunpack.c.l.b16 %v3338
    %v4500 = vunpack.c.h.b16 %v3338
    %v4501 = vunpack.c.l.b16 %v3339
    %v4502 = vunpack.c.h.b16 %v3339
    %v4503 = vunpack.c.l.b16 %v3340
    %v4504 = vunpack.c.h.b16 %v3340
    %v4505 = vunpack.c.l.b16 %v3341
    %v4506 = vunpack.c.l.b16 %v3342
    %v4507 = vunpack.c.h.b16 %v3342
    %v4508 = vunpack.c.l.b16 %v3343
    %v4509 = vunpack.c.h.b16 %v3343
    %v4510 = vunpack.c.l.b16 %v3344
    %v4511 = vunpack.c.h.b16 %v3344
    %v4512 = vunpack.c.l.b16 %v3345
    %v4513 = vunpack.c.l.b16 %v3346
    %v4514 = vunpack.c.h.b16 %v3346
    %v4515 = vunpack.c.l.b16 %v3347
    %v4516 = vunpack.c.h.b16 %v3347
    %v4517 = vunpack.c.l.b16 %v3348
    %v4518 = vunpack.c.h.b16 %v3348
    %v4519 = vunpack.c.l.b16 %v3349
    %v4520 = vunpack.c.l.b16 %v3350
    %v4521 = vunpack.c.h.b16 %v3350
    %v4522 = vunpack.c.l.b16 %v3351
    %v4523 = vunpack.c.h.b16 %v3351
    %v4524 = vunpack.c.l.b16 %v3352
    %v4525 = vunpack.c.h.b16 %v3352
    %v4526 = vunpack.c.l.b16 %v3353
    %v4527 = vunpack.c.l.b16 %v3354
    %v4528 = vunpack.c.h.b16 %v3354
    %v4529 = vunpack.c.l.b16 %v3355
    %v4530 = vunpack.c.h.b16 %v3355
    %v4531 = vunpack.c.l.b16 %v3356
    %v4532 = vunpack.c.h.b16 %v3356
    %v4533 = vunpack.c.l.b16 %v3357
    %v4534 = vunpack.c.l.b16 %v3358
    %v4535 = vunpack.c.h.b16 %v3358
    %v4536 = vunpack.c.l.b16 %v3359
    %v4537 = vunpack.c.h.b16 %v3359
    %v4538 = vunpack.c.l.b16 %v3360
    %v4539 = vunpack.c.h.b16 %v3360
    %v4540 = vunpack.c.l.b16 %v3361
    %v4541 = vunpack.c.l.b16 %v3362
    %v4542 = vunpack.c.h.b16 %v3362
    %v4543 = vunpack.c.l.b16 %v3363
    %v4544 = vunpack.c.h.b16 %v3363
    %v4545 = vunpack.c.l.b16 %v3364
    %v4546 = vunpack.c.h.b16 %v3364
    %v4547 = vunpack.c.l.b16 %v3365
    %v4548 = vunpack.c.l.b16 %v3366
    %v4549 = vunpack.c.h.b16 %v3366
    %v4550 = vunpack.c.l.b16 %v3367
    %v4551 = vunpack.c.h.b16 %v3367
    %v4552 = vunpack.c.l.b16 %v3368
    %v4553 = vunpack.c.h.b16 %v3368
    %v4554 = vunpack.c.l.b16 %v3369
    %v4555 = vunpack.c.l.b16 %v3370
    %v4556 = vunpack.c.h.b16 %v3370
    %v4557 = vunpack.c.l.b16 %v3371
    %v4558 = vunpack.c.h.b16 %v3371
    %v4559 = vunpack.c.l.b16 %v3372
    %v4560 = vunpack.c.h.b16 %v3372
    %v4561 = vunpack.c.l.b16 %v3373
    %v4562 = vunpack.c.l.b16 %v3374
    %v4563 = vunpack.c.h.b16 %v3374
    %v4564 = vunpack.c.l.b16 %v3375
    %v4565 = vunpack.c.h.b16 %v3375
    %v4566 = vunpack.c.l.b16 %v3376
    %v4567 = vunpack.c.h.b16 %v3376
    %v4568 = vunpack.c.l.b16 %v3377
    %v4569 = vunpack.c.l.b16 %v3378
    %v4570 = vunpack.c.h.b16 %v3378
    %v4571 = vunpack.c.l.b16 %v3379
    %v4572 = vunpack.c.h.b16 %v3379
    %v4573 = vunpack.c.l.b16 %v3380
    %v4574 = vunpack.c.h.b16 %v3380
    %v4575 = vunpack.c.l.b16 %v3381
    %v4576 = vunpack.c.l.b16 %v3382
    %v4577 = vunpack.c.h.b16 %v3382
    %v4578 = vunpack.c.l.b16 %v3383
    %v4579 = vunpack.c.h.b16 %v3383
    %v4580 = vunpack.c.l.b16 %v3384
    %v4581 = vunpack.c.h.b16 %v3384
    %v4582 = vunpack.c.l.b16 %v3385
    %v4583 = vunpack.c.l.b16 %v3386
    %v4584 = vunpack.c.h.b16 %v3386
    %v4585 = vunpack.c.l.b16 %v3387
    %v4586 = vunpack.c.h.b16 %v3387
    %v4587 = vunpack.c.l.b16 %v3388
    %v4588 = vunpack.c.h.b16 %v3388
    %v4589 = vunpack.c.l.b16 %v3389
    %v4590 = vunpack.c.l.b16 %v3390
    %v4591 = vunpack.c.h.b16 %v3390
    %v4592 = vunpack.c.l.b16 %v3391
    %v4593 = vunpack.c.h.b16 %v3391
    %v4594 = vunpack.c.l.b16 %v3392
    %v4595 = vunpack.c.h.b16 %v3392
    %v4596 = vunpack.c.l.b16 %v3393
    %v4597 = vunpack.c.l.b16 %v3394
    %v4598 = vunpack.c.h.b16 %v3394
    %v4599 = vunpack.c.l.b16 %v3395
    %v4600 = vunpack.c.h.b16 %v3395
    %v4601 = vunpack.c.l.b16 %v3396
    %v4602 = vunpack.c.h.b16 %v3396
    %v4603 = vunpack.c.l.b16 %v3397
    %v4604 = vunpack.c.l.b16 %v3398
    %v4605 = vunpack.c.h.b16 %v3398
    %v4606 = vunpack.c.l.b16 %v3399
    %v4607 = vunpack.c.h.b16 %v3399
    %v4608 = vunpack.c.l.b16 %v3400
    %v4609 = vunpack.c.h.b16 %v3400
    %v4610 = vunpack.c.l.b16 %v3401
    %v4611 = vunpack.c.l.b16 %v3402
    %v4612 = vunpack.c.h.b16 %v3402
    %v4613 = vunpack.c.l.b16 %v3403
    %v4614 = vunpack.c.h.b16 %v3403
    %v4615 = vunpack.c.l.b16 %v3404
    %v4616 = vunpack.c.h.b16 %v3404
    %v4617 = vunpack.c.l.b16 %v3405
    %v4618 = vunpack.c.l.b16 %v3406
    %v4619 = vunpack.c.h.b16 %v3406
    %v4620 = vunpack.c.l.b16 %v3407
    %v4621 = vunpack.c.h.b16 %v3407
    %v4622 = vunpack.c.l.b16 %v3408
    %v4623 = vunpack.c.h.b16 %v3408
    %v4624 = vunpack.c.l.b16 %v3409
    %v4625 = vunpack.c.l.b16 %v3410
    %v4626 = vunpack.c.h.b16 %v3410
    %v4627 = vunpack.c.l.b16 %v3411
    %v4628 = vunpack.c.h.b16 %v3411
    %v4629 = vunpack.c.l.b16 %v3412
    %v4630 = vunpack.c.h.b16 %v3412
    %v4631 = vunpack.c.l.b16 %v3413
    %v4632 = vunpack.c.l.b16 %v3414
    %v4633 = vunpack.c.h.b16 %v3414
    %v4634 = vunpack.c.l.b16 %v3415
    %v4635 = vunpack.c.h.b16 %v3415
    %v4636 = vunpack.c.l.b16 %v3416
    %v4637 = vunpack.c.h.b16 %v3416
    %v4638 = vunpack.c.l.b16 %v3417
    %v4639 = vunpack.c.l.b16 %v3418
    %v4640 = vunpack.c.h.b16 %v3418
    %v4641 = vunpack.c.l.b16 %v3419
    %v4642 = vunpack.c.h.b16 %v3419
    %v4643 = vunpack.c.l.b16 %v3420
    %v4644 = vunpack.c.h.b16 %v3420
    %v4645 = vunpack.c.l.b16 %v3421
    %v4646 = vunpack.c.l.b16 %v3422
    %v4647 = vunpack.c.h.b16 %v3422
    %v4648 = vunpack.c.l.b16 %v3423
    %v4649 = vunpack.c.h.b16 %v3423
    %v4650 = vunpack.c.l.b16 %v3424
    %v4651 = vunpack.c.h.b16 %v3424
    %v4652 = vunpack.c.l.b16 %v3425
    %v4653 = vunpack.c.l.b16 %v3426
    %v4654 = vunpack.c.h.b16 %v3426
    %v4655 = vunpack.c.l.b16 %v3427
    %v4656 = vunpack.c.h.b16 %v3427
    %v4657 = vunpack.c.l.b16 %v3428
    %v4658 = vunpack.c.h.b16 %v3428
    %v4659 = vunpack.c.l.b16 %v3429
    %v4660 = vunpack.c.l.b16 %v3430
    %v4661 = vunpack.c.h.b16 %v3430
    %v4662 = vunpack.c.l.b16 %v3431
    %v4663 = vunpack.c.h.b16 %v3431
    %v4664 = vunpack.c.l.b16 %v3432
    %v4665 = vunpack.c.h.b16 %v3432
    %v4666 = vunpack.c.l.b16 %v3433
    %v4667 = vunpack.c.l.b16 %v3434
    %v4668 = vunpack.c.h.b16 %v3434
    %v4669 = vunpack.c.l.b16 %v3435
    %v4670 = vunpack.c.h.b16 %v3435
    %v4671 = vunpack.c.l.b16 %v3436
    %v4672 = vunpack.c.h.b16 %v3436
    %v4673 = vunpack.c.l.b16 %v3437
    %v4674 = vunpack.c.l.b16 %v3438
    %v4675 = vunpack.c.h.b16 %v3438
    %v4676 = vunpack.c.l.b16 %v3439
    %v4677 = vunpack.c.h.b16 %v3439
    %v4678 = vunpack.c.l.b16 %v3440
    %v4679 = vunpack.c.h.b16 %v3440
    %v4680 = vunpack.c.l.b16 %v3441
    %v4681 = vunpack.c.l.b16 %v3442
    %v4682 = vunpack.c.h.b16 %v3442
    %v4683 = vunpack.c.l.b16 %v3443
    %v4684 = vunpack.c.h.b16 %v3443
    %v4685 = vunpack.c.l.b16 %v3444
    %v4686 = vunpack.c.h.b16 %v3444
    %v4687 = vunpack.c.l.b16 %v3445
    %v4688 = vunpack.c.l.b16 %v3446
    %v4689 = vunpack.c.h.b16 %v3446
    %v4690 = vunpack.c.l.b16 %v3447
    %v4691 = vunpack.c.h.b16 %v3447
    %v4692 = vunpack.c.l.b16 %v3448
    %v4693 = vunpack.c.h.b16 %v3448
    %v4694 = vunpack.c.l.b16 %v3449
    %v4695 = vunpack.c.l.b16 %v3450
    %v4696 = vunpack.c.h.b16 %v3450
    %v4697 = vunpack.c.l.b16 %v3451
    %v4698 = vunpack.c.h.b16 %v3451
    %v4699 = vunpack.c.l.b16 %v3452
    %v4700 = vunpack.c.h.b16 %v3452
    %v4701 = vunpack.c.l.b16 %v3453
    %v4702 = vunpack.c.l.b16 %v3454
    %v4703 = vunpack.c.h.b16 %v3454
    %v4704 = vunpack.c.l.b16 %v3455
    %v4705 = vunpack.c.h.b16 %v3455
    %v4706 = vunpack.c.l.b16 %v3456
    %v4707 = vunpack.c.h.b16 %v3456
    %v4708 = vunpack.c.l.b16 %v3457
    %v4709 = vunpack.c.l.b16 %v3458
    %v4710 = vunpack.c.h.b16 %v3458
    %v4711 = vunpack.c.l.b16 %v3459
    %v4712 = vunpack.c.h.b16 %v3459
    %v4713 = vunpack.c.l.b16 %v3460
    %v4714 = vunpack.c.h.b16 %v3460
    %v4715 = vunpack.c.l.b16 %v3461
    %v4716 = vunpack.c.l.b16 %v3462
    %v4717 = vunpack.c.h.b16 %v3462
    %v4718 = vunpack.c.l.b16 %v3463
    %v4719 = vunpack.c.h.b16 %v3463
    %v4720 = vunpack.c.l.b16 %v3464
    %v4721 = vunpack.c.h.b16 %v3464
    %v4722 = vunpack.c.l.b16 %v3465
    %v4723 = vunpack.c.l.b16 %v3466
    %v4724 = vunpack.c.h.b16 %v3466
    %v4725 = vunpack.c.l.b16 %v3467
    %v4726 = vunpack.c.h.b16 %v3467
    %v4727 = vunpack.c.l.b16 %v3468
    %v4728 = vunpack.c.h.b16 %v3468
    %v4729 = vunpack.c.l.b16 %v3469
    %v4730 = vunpack.c.l.b16 %v3470
    %v4731 = vunpack.c.h.b16 %v3470
    %v4732 = vunpack.c.l.b16 %v3471
    %v4733 = vunpack.c.h.b16 %v3471
    %v4734 = vunpack.c.l.b16 %v3472
    %v4735 = vunpack.c.h.b16 %v3472
    %v4736 = vunpack.c.l.b16 %v3473
    %v4737 = vunpack.c.l.b16 %v3474
    %v4738 = vunpack.c.h.b16 %v3474
    %v4739 = vunpack.c.l.b16 %v3475
    %v4740 = vunpack.c.h.b16 %v3475
    %v4741 = vunpack.c.l.b16 %v3476
    %v4742 = vunpack.c.h.b16 %v3476
    %v4743 = vunpack.c.l.b16 %v3477
    %v4744 = vunpack.c.l.b16 %v3478
    %v4745 = vunpack.c.h.b16 %v3478
    %v4746 = vunpack.c.l.b16 %v3479
    %v4747 = vunpack.c.h.b16 %v3479
    %v4748 = vunpack.c.l.b16 %v3480
    %v4749 = vunpack.c.h.b16 %v3480
    %v4750 = vunpack.c.l.b16 %v3481
    %v4751 = vunpack.c.l.b16 %v3482
    %v4752 = vunpack.c.h.b16 %v3482
    %v4753 = vunpack.c.l.b16 %v3483
    %v4754 = vunpack.c.h.b16 %v3483
    %v4755 = vunpack.c.l.b16 %v3484
    %v4756 = vunpack.c.h.b16 %v3484
    %v4757 = vunpack.c.l.b16 %v3485
    %v4758 = vunpack.c.l.b16 %v3486
    %v4759 = vunpack.c.h.b16 %v3486
    %v4760 = vunpack.c.l.b16 %v3487
    %v4761 = vunpack.c.h.b16 %v3487
    %v4762 = vunpack.c.l.b16 %v3488
    %v4763 = vunpack.c.h.b16 %v3488
    %v4764 = vunpack.c.l.b16 %v3489
    %v4765 = vunpack.c.l.b16 %v3490
    %v4766 = vunpack.c.h.b16 %v3490
    %v4767 = vunpack.c.l.b16 %v3491
    %v4768 = vunpack.c.h.b16 %v3491
    %v4769 = vunpack.c.l.b16 %v3492
    %v4770 = vunpack.c.h.b16 %v3492
    %v4771 = vunpack.c.l.b16 %v3493
    %v4772 = vunpack.c.l.b16 %v3494
    %v4773 = vunpack.c.h.b16 %v3494
    %v4774 = vunpack.c.l.b16 %v3495
    %v4775 = vunpack.c.h.b16 %v3495
    %v4776 = vunpack.c.l.b16 %v3496
    %v4777 = vunpack.c.h.b16 %v3496
    %v4778 = vunpack.c.l.b16 %v3497
    %v4779 = vunpack.c.l.b16 %v3498
    %v4780 = vunpack.c.h.b16 %v3498
    %v4781 = vunpack.c.l.b16 %v3499
    %v4782 = vunpack.c.h.b16 %v3499
    %v4783 = vunpack.c.l.b16 %v3500
    %v4784 = vunpack.c.h.b16 %v3500
    %v4785 = vunpack.c.l.b16 %v3501
    %v4786 = vunpack.c.l.b16 %v3502
    %v4787 = vunpack.c.h.b16 %v3502
    %v4788 = vunpack.c.l.b16 %v3503
    %v4789 = vunpack.c.h.b16 %v3503
    %v4790 = vunpack.c.l.b16 %v3504
    %v4791 = vunpack.c.h.b16 %v3504
    %v4792 = vunpack.c.l.b16 %v3505
    %v4793 = vunpack.c.l.b16 %v3506
    %v4794 = vunpack.c.h.b16 %v3506
    %v4795 = vunpack.c.l.b16 %v3507
    %v4796 = vunpack.c.h.b16 %v3507
    %v4797 = vunpack.c.l.b16 %v3508
    %v4798 = vunpack.c.h.b16 %v3508
    %v4799 = vunpack.c.l.b16 %v3509
    %v4800 = vunpack.c.l.b16 %v3510
    %v4801 = vunpack.c.h.b16 %v3510
    %v4802 = vunpack.c.l.b16 %v3511
    %v4803 = vunpack.c.h.b16 %v3511
    %v4804 = vunpack.c.l.b16 %v3512
    %v4805 = vunpack.c.h.b16 %v3512
    %v4806 = vunpack.c.l.b16 %v3513
    %v4807 = vunpack.c.l.b16 %v3514
    %v4808 = vunpack.c.h.b16 %v3514
    %v4809 = vunpack.c.l.b16 %v3515
    %v4810 = vunpack.c.h.b16 %v3515
    %v4811 = vunpack.c.l.b16 %v3516
    %v4812 = vunpack.c.h.b16 %v3516
    %v4813 = vunpack.c.l.b16 %v3517
    %v4814 = vunpack.c.l.b16 %v3518
    %v4815 = vunpack.c.h.b16 %v3518
    %v4816 = vunpack.c.l.b16 %v3519
    %v4817 = vunpack.c.h.b16 %v3519
    %v4818 = vunpack.c.l.b16 %v3520
    %v4819 = vunpack.c.h.b16 %v3520
    %v4820 = vunpack.c.l.b16 %v3521
    %v4821 = vunpack.c.l.b16 %v3522
    %v4822 = vunpack.c.h.b16 %v3522
    %v4823 = vunpack.c.l.b16 %v3523
    %v4824 = vunpack.c.h.b16 %v3523
    %v4825 = vunpack.c.l.b16 %v3524
    %v4826 = vunpack.c.h.b16 %v3524
    %v4827 = vunpack.c.l.b16 %v3525
    %v4828 = vunpack.c.l.b16 %v3526
    %v4829 = vunpack.c.h.b16 %v3526
    %v4830 = vunpack.c.l.b16 %v3527
    %v4831 = vunpack.c.h.b16 %v3527
    %v4832 = vunpack.c.l.b16 %v3528
    %v4833 = vunpack.c.h.b16 %v3528
    %v4834 = vunpack.c.l.b16 %v3529
    %v4835 = vunpack.c.l.b16 %v3530
    %v4836 = vunpack.c.h.b16 %v3530
    %v4837 = vunpack.c.l.b16 %v3531
    %v4838 = vunpack.c.h.b16 %v3531
    %v4839 = vunpack.c.l.b16 %v3532
    %v4840 = vunpack.c.h.b16 %v3532
    %v4841 = vunpack.c.l.b16 %v3533
    %v4842 = vunpack.c.l.b16 %v3534
    %v4843 = vunpack.c.h.b16 %v3534
    %v4844 = vunpack.c.l.b16 %v3535
    %v4845 = vunpack.c.h.b16 %v3535
    %v4846 = vunpack.c.l.b16 %v3536
    %v4847 = vunpack.c.h.b16 %v3536
    %v4848 = vunpack.c.l.b16 %v3537
    %v4849 = vunpack.c.l.b16 %v3538
    %v4850 = vunpack.c.h.b16 %v3538
    %v4851 = vunpack.c.l.b16 %v3539
    %v4852 = vunpack.c.h.b16 %v3539
    %v4853 = vunpack.c.l.b16 %v3540
    %v4854 = vunpack.c.h.b16 %v3540
    %v4855 = vunpack.c.l.b16 %v3541
    %v4856 = vunpack.c.l.b16 %v3542
    %v4857 = vunpack.c.h.b16 %v3542
    %v4858 = vunpack.c.l.b16 %v3543
    %v4859 = vunpack.c.h.b16 %v3543
    %v4860 = vunpack.c.l.b16 %v3544
    %v4861 = vunpack.c.h.b16 %v3544
    %v4862 = vunpack.c.l.b16 %v3545
    %v4863 = vunpack.c.l.b16 %v3546
    %v4864 = vunpack.c.h.b16 %v3546
    %v4865 = vunpack.c.l.b16 %v3547
    %v4866 = vunpack.c.h.b16 %v3547
    %v4867 = vunpack.c.l.b16 %v3548
    %v4868 = vunpack.c.h.b16 %v3548
    %v4869 = vunpack.c.l.b16 %v3549
    %v4870 = vunpack.c.l.b16 %v3550
    %v4871 = vunpack.c.h.b16 %v3550
    %v4872 = vunpack.c.l.b16 %v3551
    %v4873 = vunpack.c.h.b16 %v3551
    %v4874 = vunpack.c.l.b16 %v3552
    %v4875 = vunpack.c.h.b16 %v3552
    %v4876 = vunpack.c.l.b16 %v3553
    %v4877 = vunpack.c.l.b16 %v3554
    %v4878 = vunpack.c.h.b16 %v3554
    %v4879 = vunpack.c.l.b16 %v3555
    %v4880 = vunpack.c.h.b16 %v3555
    %v4881 = vunpack.c.l.b16 %v3556
    %v4882 = vunpack.c.h.b16 %v3556
    %v4883 = vunpack.c.l.b16 %v3557
    %v4884 = vunpack.c.l.b16 %v3558
    %v4885 = vunpack.c.h.b16 %v3558
    %v4886 = vunpack.c.l.b16 %v3559
    %v4887 = vunpack.c.h.b16 %v3559
    %v4888 = vunpack.c.l.b16 %v3560
    %v4889 = vunpack.c.h.b16 %v3560
    %v4890 = vunpack.c.l.b16 %v3561
    %v4891 = vunpack.c.l.b16 %v3562
    %v4892 = vunpack.c.h.b16 %v3562
    %v4893 = vunpack.c.l.b16 %v3563
    %v4894 = vunpack.c.h.b16 %v3563
    %v4895 = vunpack.c.l.b16 %v3564
    %v4896 = vunpack.c.h.b16 %v3564
    %v4897 = vunpack.c.l.b16 %v3565
    %v4898 = vunpack.c.l.b16 %v3566
    %v4899 = vunpack.c.h.b16 %v3566
    %v4900 = vunpack.c.l.b16 %v3567
    %v4901 = vunpack.c.h.b16 %v3567
    %v4902 = vunpack.c.l.b16 %v3568
    %v4903 = vunpack.c.h.b16 %v3568
    %v4904 = vunpack.c.l.b16 %v3569
    %v4905 = vunpack.c.l.b16 %v3570
    %v4906 = vunpack.c.h.b16 %v3570
    %v4907 = vunpack.c.l.b16 %v3571
    %v4908 = vunpack.c.h.b16 %v3571
    %v4909 = vunpack.c.l.b16 %v3572
    %v4910 = vunpack.c.h.b16 %v3572
    %v4911 = vunpack.c.l.b16 %v3573
    %v4912 = vunpack.c.l.b16 %v3574
    %v4913 = vunpack.c.h.b16 %v3574
    %v4914 = vunpack.c.l.b16 %v3575
    %v4915 = vunpack.c.h.b16 %v3575
    %v4916 = vunpack.c.l.b16 %v3576
    %v4917 = vunpack.c.h.b16 %v3576
    %v4918 = vunpack.c.l.b16 %v3577
    %v4919 = vunpack.c.l.b16 %v3578
    %v4920 = vunpack.c.h.b16 %v3578
    %v4921 = vunpack.c.l.b16 %v3579
    %v4922 = vunpack.c.h.b16 %v3579
    %v4923 = vunpack.c.l.b16 %v3580
    %v4924 = vunpack.c.h.b16 %v3580
    %v4925 = vunpack.c.l.b16 %v3581
    %v4926 = vunpack.c.l.b16 %v3582
    %v4927 = vunpack.c.h.b16 %v3582
    %v4928 = vunpack.c.l.b16 %v3583
    %v4929 = vunpack.c.h.b16 %v3583
    %v4930 = vunpack.c.l.b16 %v3584
    %v4931 = vunpack.c.h.b16 %v3584
    %v4932 = vunpack.c.l.b16 %v3585
    %v4933 = vunpack.c.l.b16 %v3586
    %v4934 = vunpack.c.h.b16 %v3586
    %v4935 = vunpack.c.l.b16 %v3587
    %v4936 = vunpack.c.h.b16 %v3587
    %v4937 = vunpack.c.l.b16 %v3588
    %v4938 = vunpack.c.h.b16 %v3588
    %v4939 = vunpack.c.l.b16 %v3589
    %v4940 = vunpack.c.l.b16 %v3590
    %v4941 = vunpack.c.h.b16 %v3590
    %v4942 = vunpack.c.l.b16 %v3591
    %v4943 = vunpack.c.h.b16 %v3591
    %v4944 = vunpack.c.l.b16 %v3592
    %v4945 = vunpack.c.h.b16 %v3592
    %v4946 = vunpack.c.l.b16 %v3593
    %v4947 = vunpack.c.l.b16 %v3594
    %v4948 = vunpack.c.h.b16 %v3594
    %v4949 = vunpack.c.l.b16 %v3595
    %v4950 = vunpack.c.h.b16 %v3595
    %v4951 = vunpack.c.l.b16 %v3596
    %v4952 = vunpack.c.h.b16 %v3596
    %v4953 = vunpack.c.l.b16 %v3597
    %v4954 = vunpack.c.l.b16 %v3598
    %v4955 = vunpack.c.h.b16 %v3598
    %v4956 = vunpack.c.l.b16 %v3599
    %v4957 = vunpack.c.h.b16 %v3599
    %v4958 = vunpack.c.l.b16 %v3600
    %v4959 = vunpack.c.h.b16 %v3600
    %v4960 = vunpack.c.l.b16 %v3601
    %v4961 = vunpack.c.l.b16 %v3602
    %v4962 = vunpack.c.h.b16 %v3602
    %v4963 = vunpack.c.l.b16 %v3603
    %v4964 = vunpack.c.h.b16 %v3603
    %v4965 = vunpack.c.l.b16 %v3604
    %v4966 = vunpack.c.h.b16 %v3604
    %v4967 = vunpack.c.l.b16 %v3605
    %v4968 = vunpack.c.l.b16 %v3606
    %v4969 = vunpack.c.h.b16 %v3606
    %v4970 = vunpack.c.l.b16 %v3607
    %v4971 = vunpack.c.h.b16 %v3607
    %v4972 = vunpack.c.l.b16 %v3608
    %v4973 = vunpack.c.h.b16 %v3608
    %v4974 = vunpack.c.l.b16 %v3609
    %v4975 = vunpack.c.l.b16 %v3610
    %v4976 = vunpack.c.h.b16 %v3610
    %v4977 = vunpack.c.l.b16 %v3611
    %v4978 = vunpack.c.h.b16 %v3611
    %v4979 = vunpack.c.l.b16 %v3612
    %v4980 = vunpack.c.h.b16 %v3612
    %v4981 = vunpack.c.l.b16 %v3613
    %v4982 = vunpack.c.l.b16 %v3614
    %v4983 = vunpack.c.h.b16 %v3614
    %v4984 = vunpack.c.l.b16 %v3615
    %v4985 = vunpack.c.h.b16 %v3615
    %v4986 = vunpack.c.l.b16 %v3616
    %v4987 = vunpack.c.h.b16 %v3616
    %v4988 = vunpack.c.l.b16 %v3617
    %v4989 = vunpack.c.l.b16 %v3618
    %v4990 = vunpack.c.h.b16 %v3618
    %v4991 = vunpack.c.l.b16 %v3619
    %v4992 = vunpack.c.h.b16 %v3619
    %v4993 = vunpack.c.l.b16 %v3620
    %v4994 = vunpack.c.h.b16 %v3620
    %v4995 = vunpack.c.l.b16 %v3621
    %v4996 = vunpack.c.l.b16 %v3622
    %v4997 = vunpack.c.h.b16 %v3622
    %v4998 = vunpack.c.l.b16 %v3623
    %v4999 = vunpack.c.h.b16 %v3623
    %v5000 = vunpack.c.l.b16 %v3624
    %v5001 = vunpack.c.h.b16 %v3624
    %v5002 = vunpack.c.l.b16 %v3625
    %v5003 = vunpack.c.l.b16 %v3626
    %v5004 = vunpack.c.h.b16 %v3626
    %v5005 = vunpack.c.l.b16 %v3627
    %v5006 = vunpack.c.h.b16 %v3627
    %v5007 = vunpack.c.l.b16 %v3628
    %v5008 = vunpack.c.h.b16 %v3628
    %v5009 = vunpack.c.l.b16 %v3629
    %v5010 = vunpack.c.l.b16 %v3630
    %v5011 = vunpack.c.h.b16 %v3630
    %v5012 = vunpack.c.l.b16 %v3631
    %v5013 = vunpack.c.h.b16 %v3631
    %v5014 = vunpack.c.l.b16 %v3632
    %v5015 = vunpack.c.h.b16 %v3632
    %v5016 = vunpack.c.l.b16 %v3633
    %v5017 = vunpack.c.l.b16 %v3634
    %v5018 = vunpack.c.h.b16 %v3634
    %v5019 = vunpack.c.l.b16 %v3635
    %v5020 = vunpack.c.h.b16 %v3635
    %v5021 = vunpack.c.l.b16 %v3636
    %v5022 = vunpack.c.h.b16 %v3636
    %v5023 = vunpack.c.l.b16 %v3637
    %v5024 = vunpack.c.l.b16 %v3638
    %v5025 = vunpack.c.h.b16 %v3638
    %v5026 = vunpack.c.l.b16 %v3639
    %v5027 = vunpack.c.h.b16 %v3639
    %v5028 = vunpack.c.l.b16 %v3640
    %v5029 = vunpack.c.h.b16 %v3640
    %v5030 = vunpack.c.l.b16 %v3641
    %v5031 = vunpack.c.l.b16 %v3642
    %v5032 = vunpack.c.h.b16 %v3642
    %v5033 = vunpack.c.l.b16 %v3643
    %v5034 = vunpack.c.h.b16 %v3643
    %v5035 = vunpack.c.l.b16 %v3644
    %v5036 = vunpack.c.h.b16 %v3644
    %v5037 = vunpack.c.l.b16 %v3645
    %v5038 = vunpack.c.l.b16 %v3646
    %v5039 = vunpack.c.h.b16 %v3646
    %v5040 = vunpack.c.l.b16 %v3647
    %v5041 = vunpack.c.h.b16 %v3647
    %v5042 = vunpack.c.l.b16 %v3648
    %v5043 = vunpack.c.h.b16 %v3648
    %v5044 = vunpack.c.l.b16 %v3649
    %v5045 = vunpack.c.l.b16 %v3650
    %v5046 = vunpack.c.h.b16 %v3650
    %v5047 = vunpack.c.l.b16 %v3651
    %v5048 = vunpack.c.h.b16 %v3651
    %v5049 = vunpack.c.l.b16 %v3652
    %v5050 = vunpack.c.h.b16 %v3652
    %v5051 = vunpack.c.l.b16 %v3653
    %v5052 = vunpack.c.l.b16 %v3654
    %v5053 = vunpack.c.h.b16 %v3654
    %v5054 = vunpack.c.l.b16 %v3655
    %v5055 = vunpack.c.h.b16 %v3655
    %v5056 = vunpack.c.l.b16 %v3656
    %v5057 = vunpack.c.h.b16 %v3656
    %v5058 = vunpack.c.l.b16 %v3657
    %v5059 = vunpack.c.l.b16 %v3658
    %v5060 = vunpack.c.h.b16 %v3658
    %v5061 = vunpack.c.l.b16 %v3659
    %v5062 = vunpack.c.h.b16 %v3659
    %v5063 = vunpack.c.l.b16 %v3660
    %v5064 = vunpack.c.h.b16 %v3660
    %v5065 = vunpack.c.l.b16 %v3661
    %v5066 = vunpack.c.l.b16 %v3662
    %v5067 = vunpack.c.h.b16 %v3662
    %v5068 = vunpack.c.l.b16 %v3663
    %v5069 = vunpack.c.h.b16 %v3663
    %v5070 = vunpack.c.l.b16 %v3664
    %v5071 = vunpack.c.h.b16 %v3664
    %v5072 = vunpack.c.l.b16 %v3665
    %v5073 = vunpack.c.l.b16 %v3666
    %v5074 = vunpack.c.h.b16 %v3666
    %v5075 = vunpack.c.l.b16 %v3667
    %v5076 = vunpack.c.h.b16 %v3667
    %v5077 = vunpack.c.l.b16 %v3668
    %v5078 = vunpack.c.h.b16 %v3668
    %v5079 = vunpack.c.l.b16 %v3669
    %v5080 = vunpack.c.l.b16 %v3670
    %v5081 = vunpack.c.h.b16 %v3670
    %v5082 = vunpack.c.l.b16 %v3671
    %v5083 = vunpack.c.h.b16 %v3671
    %v5084 = vunpack.c.l.b16 %v3672
    %v5085 = vunpack.c.h.b16 %v3672
    %v5086 = vunpack.c.l.b16 %v3673
    %v5087 = vunpack.c.l.b16 %v3674
    %v5088 = vunpack.c.h.b16 %v3674
    %v5089 = vunpack.c.l.b16 %v3675
    %v5090 = vunpack.c.h.b16 %v3675
    %v5091 = vunpack.c.l.b16 %v3676
    %v5092 = vunpack.c.h.b16 %v3676
    %v5093 = vunpack.c.l.b16 %v3677
    %v5094 = vunpack.c.l.b16 %v3678
    %v5095 = vunpack.c.h.b16 %v3678
    %v5096 = vunpack.c.l.b16 %v3679
    %v5097 = vunpack.c.h.b16 %v3679
    %v5098 = vunpack.c.l.b16 %v3680
    %v5099 = vunpack.c.h.b16 %v3680
    %v5100 = vunpack.c.l.b16 %v3681
    %v5101 = vunpack.c.l.b16 %v3682
    %v5102 = vunpack.c.h.b16 %v3682
    %v5103 = vunpack.c.l.b16 %v3683
    %v5104 = vunpack.c.h.b16 %v3683
    %v5105 = vunpack.c.l.b16 %v3684
    %v5106 = vunpack.c.h.b16 %v3684
    %v5107 = vunpack.c.l.b16 %v3685
    %v5108 = vunpack.c.l.b16 %v3686
    %v5109 = vunpack.c.h.b16 %v3686
    %v5110 = vunpack.c.l.b16 %v3687
    %v5111 = vunpack.c.h.b16 %v3687
    %v5112 = vunpack.c.l.b16 %v3688
    %v5113 = vunpack.c.h.b16 %v3688
    %v5114 = vunpack.c.l.b16 %v3689
    %v5115 = vunpack.c.l.b16 %v3690
    %v5116 = vunpack.c.h.b16 %v3690
    %v5117 = vunpack.c.l.b16 %v3691
    %v5118 = vunpack.c.h.b16 %v3691
    %v5119 = vunpack.c.l.b16 %v3692
    %v5120 = vunpack.c.h.b16 %v3692
    %v5121 = vunpack.c.l.b16 %v3693
    %v5122 = vunpack.c.l.b16 %v3694
    %v5123 = vunpack.c.h.b16 %v3694
    %v5124 = vunpack.c.l.b16 %v3695
    %v5125 = vunpack.c.h.b16 %v3695
    %v5126 = vunpack.c.l.b16 %v3696
    %v5127 = vunpack.c.h.b16 %v3696
    %v5128 = vunpack.c.l.b16 %v3697
    %v5129 = vunpack.c.l.b16 %v3698
    %v5130 = vunpack.c.h.b16 %v3698
    %v5131 = vunpack.c.l.b16 %v3699
    %v5132 = vunpack.c.h.b16 %v3699
    %v5133 = vunpack.c.l.b16 %v3700
    %v5134 = vunpack.c.h.b16 %v3700
    %v5135 = vunpack.c.l.b16 %v3701
    %v5136 = vunpack.c.l.b16 %v3702
    %v5137 = vunpack.c.h.b16 %v3702
    %v5138 = vunpack.c.l.b16 %v3703
    %v5139 = vunpack.c.h.b16 %v3703
    %v5140 = vunpack.c.l.b16 %v3704
    %v5141 = vunpack.c.h.b16 %v3704
    %v5142 = vunpack.c.l.b16 %v3705
    %v5143 = vunpack.c.l.b16 %v3706
    %v5144 = vunpack.c.h.b16 %v3706
    %v5145 = vunpack.c.l.b16 %v3707
    %v5146 = vunpack.c.h.b16 %v3707
    %v5147 = vunpack.c.l.b16 %v3708
    %v5148 = vunpack.c.h.b16 %v3708
    %v5149 = vunpack.c.l.b16 %v3709
    %v5150 = vunpack.c.l.b16 %v3710
    %v5151 = vunpack.c.h.b16 %v3710
    %v5152 = vunpack.c.l.b16 %v3711
    %v5153 = vunpack.c.h.b16 %v3711
    %v5154 = vunpack.c.l.b16 %v3712
    %v5155 = vunpack.c.h.b16 %v3712
    %v5156 = vunpack.c.l.b16 %v3713
    %v5157 = vunpack.c.l.b16 %v3714
    %v5158 = vunpack.c.h.b16 %v3714
    %v5159 = vunpack.c.l.b16 %v3715
    %v5160 = vunpack.c.h.b16 %v3715
    %v5161 = vunpack.c.l.b16 %v3716
    %v5162 = vunpack.c.h.b16 %v3716
    %v5163 = vunpack.c.l.b16 %v3717
    %v5164 = vunpack.c.l.b16 %v3718
    %v5165 = vunpack.c.h.b16 %v3718
    %v5166 = vunpack.c.l.b16 %v3719
    %v5167 = vunpack.c.h.b16 %v3719
    %v5168 = vunpack.c.l.b16 %v3720
    %v5169 = vunpack.c.h.b16 %v3720
    %v5170 = vunpack.c.l.b16 %v3721
    %v5171 = vunpack.c.l.b16 %v3722
    %v5172 = vunpack.c.h.b16 %v3722
    %v5173 = vunpack.c.l.b16 %v3723
    %v5174 = vunpack.c.h.b16 %v3723
    %v5175 = vunpack.c.l.b16 %v3724
    %v5176 = vunpack.c.h.b16 %v3724
    %v5177 = vunpack.c.l.b16 %v3725
    %v5178 = vpack.c.b16 %v4289, %v4282
    %v5179 = vpack.c.b16 %v4290, %v4283
    %v5180 = vpack.c.b16 %v4291, %v4284
    %v5181 = vpack.c.b16 %v4292, %v4285
    %v5182 = vpack.c.b16 %v4293, %v4286
    %v5183 = vpack.c.b16 %v4294, %v4287
    %v5184 = vpack.c.b16 %v4295, %v4288
    %v5185 = vpack.c.b16 %v4303, %v4296
    %v5186 = vpack.c.b16 %v4304, %v4297
    %v5187 = vpack.c.b16 %v4305, %v4298
    %v5188 = vpack.c.b16 %v4306, %v4299
    %v5189 = vpack.c.b16 %v4307, %v4300
    %v5190 = vpack.c.b16 %v4308, %v4301
    %v5191 = vpack.c.b16 %v4309, %v4302
    %v5192 = vpack.c.b16 %v4317, %v4310
    %v5193 = vpack.c.b16 %v4318, %v4311
    %v5194 = vpack.c.b16 %v4319, %v4312
    %v5195 = vpack.c.b16 %v4320, %v4313
    %v5196 = vpack.c.b16 %v4321, %v4314
    %v5197 = vpack.c.b16 %v4322, %v4315
    %v5198 = vpack.c.b16 %v4323, %v4316
    %v5199 = vpack.c.b16 %v4331, %v4324
    %v5200 = vpack.c.b16 %v4332, %v4325
    %v5201 = vpack.c.b16 %v4333, %v4326
    %v5202 = vpack.c.b16 %v4334, %v4327
    %v5203 = vpack.c.b16 %v4335, %v4328
    %v5204 = vpack.c.b16 %v4336, %v4329
    %v5205 = vpack.c.b16 %v4337, %v4330
    %v5206 = vpack.c.b16 %v4345, %v4338
    %v5207 = vpack.c.b16 %v4346, %v4339
    %v5208 = vpack.c.b16 %v4347, %v4340
    %v5209 = vpack.c.b16 %v4348, %v4341
    %v5210 = vpack.c.b16 %v4349, %v4342
    %v5211 = vpack.c.b16 %v4350, %v4343
    %v5212 = vpack.c.b16 %v4351, %v4344
    %v5213 = vpack.c.b16 %v4359, %v4352
    %v5214 = vpack.c.b16 %v4360, %v4353
    %v5215 = vpack.c.b16 %v4361, %v4354
    %v5216 = vpack.c.b16 %v4362, %v4355
    %v5217 = vpack.c.b16 %v4363, %v4356
    %v5218 = vpack.c.b16 %v4364, %v4357
    %v5219 = vpack.c.b16 %v4365, %v4358
    %v5220 = vpack.c.b16 %v4373, %v4366
    %v5221 = vpack.c.b16 %v4374, %v4367
    %v5222 = vpack.c.b16 %v4375, %v4368
    %v5223 = vpack.c.b16 %v4376, %v4369
    %v5224 = vpack.c.b16 %v4377, %v4370
    %v5225 = vpack.c.b16 %v4378, %v4371
    %v5226 = vpack.c.b16 %v4379, %v4372
    %v5227 = vpack.c.b16 %v4387, %v4380
    %v5228 = vpack.c.b16 %v4388, %v4381
    %v5229 = vpack.c.b16 %v4389, %v4382
    %v5230 = vpack.c.b16 %v4390, %v4383
    %v5231 = vpack.c.b16 %v4391, %v4384
    %v5232 = vpack.c.b16 %v4392, %v4385
    %v5233 = vpack.c.b16 %v4393, %v4386
    %v5234 = vpack.c.b16 %v4401, %v4394
    %v5235 = vpack.c.b16 %v4402, %v4395
    %v5236 = vpack.c.b16 %v4403, %v4396
    %v5237 = vpack.c.b16 %v4404, %v4397
    %v5238 = vpack.c.b16 %v4405, %v4398
    %v5239 = vpack.c.b16 %v4406, %v4399
    %v5240 = vpack.c.b16 %v4407, %v4400
    %v5241 = vpack.c.b16 %v4415, %v4408
    %v5242 = vpack.c.b16 %v4416, %v4409
    %v5243 = vpack.c.b16 %v4417, %v4410
    %v5244 = vpack.c.b16 %v4418, %v4411
    %v5245 = vpack.c.b16 %v4419, %v4412
    %v5246 = vpack.c.b16 %v4420, %v4413
    %v5247 = vpack.c.b16 %v4421, %v4414
    %v5248 = vpack.c.b16 %v4429, %v4422
    %v5249 = vpack.c.b16 %v4430, %v4423
    %v5250 = vpack.c.b16 %v4431, %v4424
    %v5251 = vpack.c.b16 %v4432, %v4425
    %v5252 = vpack.c.b16 %v4433, %v4426
    %v5253 = vpack.c.b16 %v4434, %v4427
    %v5254 = vpack.c.b16 %v4435, %v4428
    %v5255 = vpack.c.b16 %v4443, %v4436
    %v5256 = vpack.c.b16 %v4444, %v4437
    %v5257 = vpack.c.b16 %v4445, %v4438
    %v5258 = vpack.c.b16 %v4446, %v4439
    %v5259 = vpack.c.b16 %v4447, %v4440
    %v5260 = vpack.c.b16 %v4448, %v4441
    %v5261 = vpack.c.b16 %v4449, %v4442
    %v5262 = vpack.c.b16 %v4457, %v4450
    %v5263 = vpack.c.b16 %v4458, %v4451
    %v5264 = vpack.c.b16 %v4459, %v4452
    %v5265 = vpack.c.b16 %v4460, %v4453
    %v5266 = vpack.c.b16 %v4461, %v4454
    %v5267 = vpack.c.b16 %v4462, %v4455
    %v5268 = vpack.c.b16 %v4463, %v4456
    %v5269 = vpack.c.b16 %v4471, %v4464
    %v5270 = vpack.c.b16 %v4472, %v4465
    %v5271 = vpack.c.b16 %v4473, %v4466
    %v5272 = vpack.c.b16 %v4474, %v4467
    %v5273 = vpack.c.b16 %v4475, %v4468
    %v5274 = vpack.c.b16 %v4476, %v4469
    %v5275 = vpack.c.b16 %v4477, %v4470
    %v5276 = vpack.c.b16 %v4485, %v4478
    %v5277 = vpack.c.b16 %v4486, %v4479
    %v5278 = vpack.c.b16 %v4487, %v4480
    %v5279 = vpack.c.b16 %v4488, %v4481
    %v5280 = vpack.c.b16 %v4489, %v4482
    %v5281 = vpack.c.b16 %v4490, %v4483
    %v5282 = vpack.c.b16 %v4491, %v4484
    %v5283 = vpack.c.b16 %v4499, %v4492
    %v5284 = vpack.c.b16 %v4500, %v4493
    %v5285 = vpack.c.b16 %v4501, %v4494
    %v5286 = vpack.c.b16 %v4502, %v4495
    %v5287 = vpack.c.b16 %v4503, %v4496
    %v5288 = vpack.c.b16 %v4504, %v4497
    %v5289 = vpack.c.b16 %v4505, %v4498
    %v5290 = vpack.c.b16 %v4513, %v4506
    %v5291 = vpack.c.b16 %v4514, %v4507
    %v5292 = vpack.c.b16 %v4515, %v4508
    %v5293 = vpack.c.b16 %v4516, %v4509
    %v5294 = vpack.c.b16 %v4517, %v4510
    %v5295 = vpack.c.b16 %v4518, %v4511
    %v5296 = vpack.c.b16 %v4519, %v4512
    %v5297 = vpack.c.b16 %v4527, %v4520
    %v5298 = vpack.c.b16 %v4528, %v4521
    %v5299 = vpack.c.b16 %v4529, %v4522
    %v5300 = vpack.c.b16 %v4530, %v4523
    %v5301 = vpack.c.b16 %v4531, %v4524
    %v5302 = vpack.c.b16 %v4532, %v4525
    %v5303 = vpack.c.b16 %v4533, %v4526
    %v5304 = vpack.c.b16 %v4541, %v4534
    %v5305 = vpack.c.b16 %v4542, %v4535
    %v5306 = vpack.c.b16 %v4543, %v4536
    %v5307 = vpack.c.b16 %v4544, %v4537
    %v5308 = vpack.c.b16 %v4545, %v4538
    %v5309 = vpack.c.b16 %v4546, %v4539
    %v5310 = vpack.c.b16 %v4547, %v4540
    %v5311 = vpack.c.b16 %v4555, %v4548
    %v5312 = vpack.c.b16 %v4556, %v4549
    %v5313 = vpack.c.b16 %v4557, %v4550
    %v5314 = vpack.c.b16 %v4558, %v4551
    %v5315 = vpack.c.b16 %v4559, %v4552
    %v5316 = vpack.c.b16 %v4560, %v4553
    %v5317 = vpack.c.b16 %v4561, %v4554
    %v5318 = vpack.c.b16 %v4569, %v4562
    %v5319 = vpack.c.b16 %v4570, %v4563
    %v5320 = vpack.c.b16 %v4571, %v4564
    %v5321 = vpack.c.b16 %v4572, %v4565
    %v5322 = vpack.c.b16 %v4573, %v4566
    %v5323 = vpack.c.b16 %v4574, %v4567
    %v5324 = vpack.c.b16 %v4575, %v4568
    %v5325 = vpack.c.b16 %v4583, %v4576
    %v5326 = vpack.c.b16 %v4584, %v4577
    %v5327 = vpack.c.b16 %v4585, %v4578
    %v5328 = vpack.c.b16 %v4586, %v4579
    %v5329 = vpack.c.b16 %v4587, %v4580
    %v5330 = vpack.c.b16 %v4588, %v4581
    %v5331 = vpack.c.b16 %v4589, %v4582
    %v5332 = vpack.c.b16 %v4597, %v4590
    %v5333 = vpack.c.b16 %v4598, %v4591
    %v5334 = vpack.c.b16 %v4599, %v4592
    %v5335 = vpack.c.b16 %v4600, %v4593
    %v5336 = vpack.c.b16 %v4601, %v4594
    %v5337 = vpack.c.b16 %v4602, %v4595
    %v5338 = vpack.c.b16 %v4603, %v4596
    %v5339 = vpack.c.b16 %v4611, %v4604
    %v5340 = vpack.c.b16 %v4612, %v4605
    %v5341 = vpack.c.b16 %v4613, %v4606
    %v5342 = vpack.c.b16 %v4614, %v4607
    %v5343 = vpack.c.b16 %v4615, %v4608
    %v5344 = vpack.c.b16 %v4616, %v4609
    %v5345 = vpack.c.b16 %v4617, %v4610
    %v5346 = vpack.c.b16 %v4625, %v4618
    %v5347 = vpack.c.b16 %v4626, %v4619
    %v5348 = vpack.c.b16 %v4627, %v4620
    %v5349 = vpack.c.b16 %v4628, %v4621
    %v5350 = vpack.c.b16 %v4629, %v4622
    %v5351 = vpack.c.b16 %v4630, %v4623
    %v5352 = vpack.c.b16 %v4631, %v4624
    %v5353 = vpack.c.b16 %v4639, %v4632
    %v5354 = vpack.c.b16 %v4640, %v4633
    %v5355 = vpack.c.b16 %v4641, %v4634
    %v5356 = vpack.c.b16 %v4642, %v4635
    %v5357 = vpack.c.b16 %v4643, %v4636
    %v5358 = vpack.c.b16 %v4644, %v4637
    %v5359 = vpack.c.b16 %v4645, %v4638
    %v5360 = vpack.c.b16 %v4653, %v4646
    %v5361 = vpack.c.b16 %v4654, %v4647
    %v5362 = vpack.c.b16 %v4655, %v4648
    %v5363 = vpack.c.b16 %v4656, %v4649
    %v5364 = vpack.c.b16 %v4657, %v4650
    %v5365 = vpack.c.b16 %v4658, %v4651
    %v5366 = vpack.c.b16 %v4659, %v4652
    %v5367 = vpack.c.b16 %v4667, %v4660
    %v5368 = vpack.c.b16 %v4668, %v4661
    %v5369 = vpack.c.b16 %v4669, %v4662
    %v5370 = vpack.c.b16 %v4670, %v4663
    %v5371 = vpack.c.b16 %v4671, %v4664
    %v5372 = vpack.c.b16 %v4672, %v4665
    %v5373 = vpack.c.b16 %v4673, %v4666
    %v5374 = vpack.c.b16 %v4681, %v4674
    %v5375 = vpack.c.b16 %v4682, %v4675
    %v5376 = vpack.c.b16 %v4683, %v4676
    %v5377 = vpack.c.b16 %v4684, %v4677
    %v5378 = vpack.c.b16 %v4685, %v4678
    %v5379 = vpack.c.b16 %v4686, %v4679
    %v5380 = vpack.c.b16 %v4687, %v4680
    %v5381 = vpack.c.b16 %v4695, %v4688
    %v5382 = vpack.c.b16 %v4696, %v4689
    %v5383 = vpack.c.b16 %v4697, %v4690
    %v5384 = vpack.c.b16 %v4698, %v4691
    %v5385 = vpack.c.b16 %v4699, %v4692
    %v5386 = vpack.c.b16 %v4700, %v4693
    %v5387 = vpack.c.b16 %v4701, %v4694
    %v5388 = vpack.c.b16 %v4709, %v4702
    %v5389 = vpack.c.b16 %v4710, %v4703
    %v5390 = vpack.c.b16 %v4711, %v4704
    %v5391 = vpack.c.b16 %v4712, %v4705
    %v5392 = vpack.c.b16 %v4713, %v4706
    %v5393 = vpack.c.b16 %v4714, %v4707
    %v5394 = vpack.c.b16 %v4715, %v4708
    %v5395 = vpack.c.b16 %v4723, %v4716
    %v5396 = vpack.c.b16 %v4724, %v4717
    %v5397 = vpack.c.b16 %v4725, %v4718
    %v5398 = vpack.c.b16 %v4726, %v4719
    %v5399 = vpack.c.b16 %v4727, %v4720
    %v5400 = vpack.c.b16 %v4728, %v4721
    %v5401 = vpack.c.b16 %v4729, %v4722
    %v5402 = vpack.c.b16 %v4737, %v4730
    %v5403 = vpack.c.b16 %v4738, %v4731
    %v5404 = vpack.c.b16 %v4739, %v4732
    %v5405 = vpack.c.b16 %v4740, %v4733
    %v5406 = vpack.c.b16 %v4741, %v4734
    %v5407 = vpack.c.b16 %v4742, %v4735
    %v5408 = vpack.c.b16 %v4743, %v4736
    %v5409 = vpack.c.b16 %v4751, %v4744
    %v5410 = vpack.c.b16 %v4752, %v4745
    %v5411 = vpack.c.b16 %v4753, %v4746
    %v5412 = vpack.c.b16 %v4754, %v4747
    %v5413 = vpack.c.b16 %v4755, %v4748
    %v5414 = vpack.c.b16 %v4756, %v4749
    %v5415 = vpack.c.b16 %v4757, %v4750
    %v5416 = vpack.c.b16 %v4765, %v4758
    %v5417 = vpack.c.b16 %v4766, %v4759
    %v5418 = vpack.c.b16 %v4767, %v4760
    %v5419 = vpack.c.b16 %v4768, %v4761
    %v5420 = vpack.c.b16 %v4769, %v4762
    %v5421 = vpack.c.b16 %v4770, %v4763
    %v5422 = vpack.c.b16 %v4771, %v4764
    %v5423 = vpack.c.b16 %v4779, %v4772
    %v5424 = vpack.c.b16 %v4780, %v4773
    %v5425 = vpack.c.b16 %v4781, %v4774
    %v5426 = vpack.c.b16 %v4782, %v4775
    %v5427 = vpack.c.b16 %v4783, %v4776
    %v5428 = vpack.c.b16 %v4784, %v4777
    %v5429 = vpack.c.b16 %v4785, %v4778
    %v5430 = vpack.c.b16 %v4793, %v4786
    %v5431 = vpack.c.b16 %v4794, %v4787
    %v5432 = vpack.c.b16 %v4795, %v4788
    %v5433 = vpack.c.b16 %v4796, %v4789
    %v5434 = vpack.c.b16 %v4797, %v4790
    %v5435 = vpack.c.b16 %v4798, %v4791
    %v5436 = vpack.c.b16 %v4799, %v4792
    %v5437 = vpack.c.b16 %v4807, %v4800
    %v5438 = vpack.c.b16 %v4808, %v4801
    %v5439 = vpack.c.b16 %v4809, %v4802
    %v5440 = vpack.c.b16 %v4810, %v4803
    %v5441 = vpack.c.b16 %v4811, %v4804
    %v5442 = vpack.c.b16 %v4812, %v4805
    %v5443 = vpack.c.b16 %v4813, %v4806
    %v5444 = vpack.c.b16 %v4821, %v4814
    %v5445 = vpack.c.b16 %v4822, %v4815
    %v5446 = vpack.c.b16 %v4823, %v4816
    %v5447 = vpack.c.b16 %v4824, %v4817
    %v5448 = vpack.c.b16 %v4825, %v4818
    %v5449 = vpack.c.b16 %v4826, %v4819
    %v5450 = vpack.c.b16 %v4827, %v4820
    %v5451 = vpack.c.b16 %v4835, %v4828
    %v5452 = vpack.c.b16 %v4836, %v4829
    %v5453 = vpack.c.b16 %v4837, %v4830
    %v5454 = vpack.c.b16 %v4838, %v4831
    %v5455 = vpack.c.b16 %v4839, %v4832
    %v5456 = vpack.c.b16 %v4840, %v4833
    %v5457 = vpack.c.b16 %v4841, %v4834
    %v5458 = vpack.c.b16 %v4849, %v4842
    %v5459 = vpack.c.b16 %v4850, %v4843
    %v5460 = vpack.c.b16 %v4851, %v4844
    %v5461 = vpack.c.b16 %v4852, %v4845
    %v5462 = vpack.c.b16 %v4853, %v4846
    %v5463 = vpack.c.b16 %v4854, %v4847
    %v5464 = vpack.c.b16 %v4855, %v4848
    %v5465 = vpack.c.b16 %v4863, %v4856
    %v5466 = vpack.c.b16 %v4864, %v4857
    %v5467 = vpack.c.b16 %v4865, %v4858
    %v5468 = vpack.c.b16 %v4866, %v4859
    %v5469 = vpack.c.b16 %v4867, %v4860
    %v5470 = vpack.c.b16 %v4868, %v4861
    %v5471 = vpack.c.b16 %v4869, %v4862
    %v5472 = vpack.c.b16 %v4877, %v4870
    %v5473 = vpack.c.b16 %v4878, %v4871
    %v5474 = vpack.c.b16 %v4879, %v4872
    %v5475 = vpack.c.b16 %v4880, %v4873
    %v5476 = vpack.c.b16 %v4881, %v4874
    %v5477 = vpack.c.b16 %v4882, %v4875
    %v5478 = vpack.c.b16 %v4883, %v4876
    %v5479 = vpack.c.b16 %v4891, %v4884
    %v5480 = vpack.c.b16 %v4892, %v4885
    %v5481 = vpack.c.b16 %v4893, %v4886
    %v5482 = vpack.c.b16 %v4894, %v4887
    %v5483 = vpack.c.b16 %v4895, %v4888
    %v5484 = vpack.c.b16 %v4896, %v4889
    %v5485 = vpack.c.b16 %v4897, %v4890
    %v5486 = vpack.c.b16 %v4905, %v4898
    %v5487 = vpack.c.b16 %v4906, %v4899
    %v5488 = vpack.c.b16 %v4907, %v4900
    %v5489 = vpack.c.b16 %v4908, %v4901
    %v5490 = vpack.c.b16 %v4909, %v4902
    %v5491 = vpack.c.b16 %v4910, %v4903
    %v5492 = vpack.c.b16 %v4911, %v4904
    %v5493 = vpack.c.b16 %v4919, %v4912
    %v5494 = vpack.c.b16 %v4920, %v4913
    %v5495 = vpack.c.b16 %v4921, %v4914
    %v5496 = vpack.c.b16 %v4922, %v4915
    %v5497 = vpack.c.b16 %v4923, %v4916
    %v5498 = vpack.c.b16 %v4924, %v4917
    %v5499 = vpack.c.b16 %v4925, %v4918
    %v5500 = vpack.c.b16 %v4933, %v4926
    %v5501 = vpack.c.b16 %v4934, %v4927
    %v5502 = vpack.c.b16 %v4935, %v4928
    %v5503 = vpack.c.b16 %v4936, %v4929
    %v5504 = vpack.c.b16 %v4937, %v4930
    %v5505 = vpack.c.b16 %v4938, %v4931
    %v5506 = vpack.c.b16 %v4939, %v4932
    %v5507 = vpack.c.b16 %v4947, %v4940
    %v5508 = vpack.c.b16 %v4948, %v4941
    %v5509 = vpack.c.b16 %v4949, %v4942
    %v5510 = vpack.c.b16 %v4950, %v4943
    %v5511 = vpack.c.b16 %v4951, %v4944
    %v5512 = vpack.c.b16 %v4952, %v4945
    %v5513 = vpack.c.b16 %v4953, %v4946
    %v5514 = vpack.c.b16 %v4961, %v4954
    %v5515 = vpack.c.b16 %v4962, %v4955
    %v5516 = vpack.c.b16 %v4963, %v4956
    %v5517 = vpack.c.b16 %v4964, %v4957
    %v5518 = vpack.c.b16 %v4965, %v4958
    %v5519 = vpack.c.b16 %v4966, %v4959
    %v5520 = vpack.c.b16 %v4967, %v4960
    %v5521 = vpack.c.b16 %v4975, %v4968
    %v5522 = vpack.c.b16 %v4976, %v4969
    %v5523 = vpack.c.b16 %v4977, %v4970
    %v5524 = vpack.c.b16 %v4978, %v4971
    %v5525 = vpack.c.b16 %v4979, %v4972
    %v5526 = vpack.c.b16 %v4980, %v4973
    %v5527 = vpack.c.b16 %v4981, %v4974
    %v5528 = vpack.c.b16 %v4989, %v4982
    %v5529 = vpack.c.b16 %v4990, %v4983
    %v5530 = vpack.c.b16 %v4991, %v4984
    %v5531 = vpack.c.b16 %v4992, %v4985
    %v5532 = vpack.c.b16 %v4993, %v4986
    %v5533 = vpack.c.b16 %v4994, %v4987
    %v5534 = vpack.c.b16 %v4995, %v4988
    %v5535 = vpack.c.b16 %v5003, %v4996
    %v5536 = vpack.c.b16 %v5004, %v4997
    %v5537 = vpack.c.b16 %v5005, %v4998
    %v5538 = vpack.c.b16 %v5006, %v4999
    %v5539 = vpack.c.b16 %v5007, %v5000
    %v5540 = vpack.c.b16 %v5008, %v5001
    %v5541 = vpack.c.b16 %v5009, %v5002
    %v5542 = vpack.c.b16 %v5017, %v5010
    %v5543 = vpack.c.b16 %v5018, %v5011
    %v5544 = vpack.c.b16 %v5019, %v5012
    %v5545 = vpack.c.b16 %v5020, %v5013
    %v5546 = vpack.c.b16 %v5021, %v5014
    %v5547 = vpack.c.b16 %v5022, %v5015
    %v5548 = vpack.c.b16 %v5023, %v5016
    %v5549 = vpack.c.b16 %v5031, %v5024
    %v5550 = vpack.c.b16 %v5032, %v5025
    %v5551 = vpack.c.b16 %v5033, %v5026
    %v5552 = vpack.c.b16 %v5034, %v5027
    %v5553 = vpack.c.b16 %v5035, %v5028
    %v5554 = vpack.c.b16 %v5036, %v5029
    %v5555 = vpack.c.b16 %v5037, %v5030
    %v5556 = vpack.c.b16 %v5045, %v5038
    %v5557 = vpack.c.b16 %v5046, %v5039
    %v5558 = vpack.c.b16 %v5047, %v5040
    %v5559 = vpack.c.b16 %v5048, %v5041
    %v5560 = vpack.c.b16 %v5049, %v5042
    %v5561 = vpack.c.b16 %v5050, %v5043
    %v5562 = vpack.c.b16 %v5051, %v5044
    %v5563 = vpack.c.b16 %v5059, %v5052
    %v5564 = vpack.c.b16 %v5060, %v5053
    %v5565 = vpack.c.b16 %v5061, %v5054
    %v5566 = vpack.c.b16 %v5062, %v5055
    %v5567 = vpack.c.b16 %v5063, %v5056
    %v5568 = vpack.c.b16 %v5064, %v5057
    %v5569 = vpack.c.b16 %v5065, %v5058
    %v5570 = vpack.c.b16 %v5073, %v5066
    %v5571 = vpack.c.b16 %v5074, %v5067
    %v5572 = vpack.c.b16 %v5075, %v5068
    %v5573 = vpack.c.b16 %v5076, %v5069
    %v5574 = vpack.c.b16 %v5077, %v5070
    %v5575 = vpack.c.b16 %v5078, %v5071
    %v5576 = vpack.c.b16 %v5079, %v5072
    %v5577 = vpack.c.b16 %v5087, %v5080
    %v5578 = vpack.c.b16 %v5088, %v5081
    %v5579 = vpack.c.b16 %v5089, %v5082
    %v5580 = vpack.c.b16 %v5090, %v5083
    %v5581 = vpack.c.b16 %v5091, %v5084
    %v5582 = vpack.c.b16 %v5092, %v5085
    %v5583 = vpack.c.b16 %v5093, %v5086
    %v5584 = vpack.c.b16 %v5101, %v5094
    %v5585 = vpack.c.b16 %v5102, %v5095
    %v5586 = vpack.c.b16 %v5103, %v5096
    %v5587 = vpack.c.b16 %v5104, %v5097
    %v5588 = vpack.c.b16 %v5105, %v5098
    %v5589 = vpack.c.b16 %v5106, %v5099
    %v5590 = vpack.c.b16 %v5107, %v5100
    %v5591 = vpack.c.b16 %v5115, %v5108
    %v5592 = vpack.c.b16 %v5116, %v5109
    %v5593 = vpack.c.b16 %v5117, %v5110
    %v5594 = vpack.c.b16 %v5118, %v5111
    %v5595 = vpack.c.b16 %v5119, %v5112
    %v5596 = vpack.c.b16 %v5120, %v5113
    %v5597 = vpack.c.b16 %v5121, %v5114
    %v5598 = vpack.c.b16 %v5129, %v5122
    %v5599 = vpack.c.b16 %v5130, %v5123
    %v5600 = vpack.c.b16 %v5131, %v5124
    %v5601 = vpack.c.b16 %v5132, %v5125
    %v5602 = vpack.c.b16 %v5133, %v5126
    %v5603 = vpack.c.b16 %v5134, %v5127
    %v5604 = vpack.c.b16 %v5135, %v5128
    %v5605 = vpack.c.b16 %v5143, %v5136
    %v5606 = vpack.c.b16 %v5144, %v5137
    %v5607 = vpack.c.b16 %v5145, %v5138
    %v5608 = vpack.c.b16 %v5146, %v5139
    %v5609 = vpack.c.b16 %v5147, %v5140
    %v5610 = vpack.c.b16 %v5148, %v5141
    %v5611 = vpack.c.b16 %v5149, %v5142
    %v5612 = vpack.c.b16 %v5157, %v5150
    %v5613 = vpack.c.b16 %v5158, %v5151
    %v5614 = vpack.c.b16 %v5159, %v5152
    %v5615 = vpack.c.b16 %v5160, %v5153
    %v5616 = vpack.c.b16 %v5161, %v5154
    %v5617 = vpack.c.b16 %v5162, %v5155
    %v5618 = vpack.c.b16 %v5163, %v5156
    %v5619 = vpack.c.b16 %v5171, %v5164
    %v5620 = vpack.c.b16 %v5172, %v5165
    %v5621 = vpack.c.b16 %v5173, %v5166
    %v5622 = vpack.c.b16 %v5174, %v5167
    %v5623 = vpack.c.b16 %v5175, %v5168
    %v5624 = vpack.c.b16 %v5176, %v5169
    %v5625 = vpack.c.b16 %v5177, %v5170
    %6074 = vmatprep.subr.bf16.mxu0 %v5228
    %6075 = vmatpush1.bf16.msra.mxu0 %v5227
    %6076 = vmatprep.subr.bf16.mxu0 %v5221
    %6077 = vmatpush1.bf16.msra.mxu0 %v5220
    %6078 = vmatprep.subr.bf16.mxu0 %v5214
    %6079 = vmatpush1.bf16.msra.mxu0 %v5213
    %6080 = vmatprep.subr.bf16.mxu0 %v5207
    %6081 = vmatpush1.bf16.msra.mxu0 %v5206
    %6082 = vmatprep.subr.bf16.mxu0 %v5200
    %6083 = vmatpush1.bf16.msra.mxu0 %v5199
    %6084 = vmatprep.subr.bf16.mxu0 %v5193
    %6085 = vmatpush1.bf16.msra.mxu0 %v5192
    %6086 = vmatprep.subr.bf16.mxu0 %v5186
    %6087 = vmatpush1.bf16.msra.mxu0 %v5185
    %6088 = vmatprep.subr.bf16.mxu0 %v5179
    %6089 = vmatpush1.bf16.msra.mxu0 %v5178
    %6090 = vmatprep.subr.bf16.mxu0 %v5284
    %6091 = vmatpush2.bf16.msra.mxu0 %v5283
    %6092 = vmatprep.subr.bf16.mxu0 %v5277
    %6093 = vmatpush2.bf16.msra.mxu0 %v5276
    %6094 = vmatprep.subr.bf16.mxu0 %v5270
    %6095 = vmatpush2.bf16.msra.mxu0 %v5269
    %6096 = vmatprep.subr.bf16.mxu0 %v5263
    %6097 = vmatpush2.bf16.msra.mxu0 %v5262
    %6098 = vmatprep.subr.bf16.mxu0 %v5256
    %6099 = vmatpush2.bf16.msra.mxu0 %v5255
    %6100 = vmatprep.subr.bf16.mxu0 %v5249
    %6101 = vmatpush2.bf16.msra.mxu0 %v5248
    %6102 = vmatprep.subr.bf16.mxu0 %v5242
    %6103 = vmatpush2.bf16.msra.mxu0 %v5241
    %6104 = vmatprep.subr.bf16.mxu0 %v5235
    %6105 = vmatpush2.bf16.msra.mxu0 %v5234
    %6106 = vmatprep.mubr.bf16.mxu0 %v3727
    %6107 = vmatmul.mubr.bf16.gmra.mxu0 %v3726
    %v6108 = vpop.f32.mrf.mxu0
    %v6109 = vadd.f32 %v3738, %v6108
    %v6110 = vpop.f32.mrf.mxu0
    %v6111 = vadd.f32 %v3742, %v6110
    %v6112 = vpop.f32.mrf.mxu0
    %v6113 = vpop.f32.mrf.mxu0
    %6114 = vdwg.mxu0
    %6115 = vmatprep.subr.bf16.mxu0 %v5340
    %6116 = vmatpush1.bf16.msra.mxu0 %v5339
    %6117 = vmatprep.subr.bf16.mxu0 %v5333
    %6118 = vmatpush1.bf16.msra.mxu0 %v5332
    %6119 = vmatprep.subr.bf16.mxu0 %v5326
    %6120 = vmatpush1.bf16.msra.mxu0 %v5325
    %6121 = vmatprep.subr.bf16.mxu0 %v5319
    %6122 = vmatpush1.bf16.msra.mxu0 %v5318
    %6123 = vmatprep.subr.bf16.mxu0 %v5312
    %6124 = vmatpush1.bf16.msra.mxu0 %v5311
    %6125 = vmatprep.subr.bf16.mxu0 %v5305
    %6126 = vmatpush1.bf16.msra.mxu0 %v5304
    %6127 = vmatprep.subr.bf16.mxu0 %v5298
    %6128 = vmatpush1.bf16.msra.mxu0 %v5297
    %6129 = vmatprep.subr.bf16.mxu0 %v5291
    %6130 = vmatpush1.bf16.msra.mxu0 %v5290
    %6131 = vmatprep.subr.bf16.mxu0 %v5396
    %6132 = vmatpush2.bf16.msra.mxu0 %v5395
    %6133 = vmatprep.subr.bf16.mxu0 %v5389
    %6134 = vmatpush2.bf16.msra.mxu0 %v5388
    %6135 = vmatprep.subr.bf16.mxu0 %v5382
    %6136 = vmatpush2.bf16.msra.mxu0 %v5381
    %6137 = vmatprep.subr.bf16.mxu0 %v5375
    %6138 = vmatpush2.bf16.msra.mxu0 %v5374
    %6139 = vmatprep.subr.bf16.mxu0 %v5368
    %6140 = vmatpush2.bf16.msra.mxu0 %v5367
    %6141 = vmatprep.subr.bf16.mxu0 %v5361
    %6142 = vmatpush2.bf16.msra.mxu0 %v5360
    %6143 = vmatprep.subr.bf16.mxu0 %v5354
    %6144 = vmatpush2.bf16.msra.mxu0 %v5353
    %6145 = vmatprep.subr.bf16.mxu0 %v5347
    %6146 = vmatpush2.bf16.msra.mxu0 %v5346
    %6147 = vmatprep.mubr.bf16.mxu0 %v3729
    %6148 = vmatmul.mubr.bf16.gmra.mxu0 %v3728
    %v6149 = vpop.f32.mrf.mxu0
    %v6150 = vadd.f32 %v6109, %v6149
    %v6151 = vpop.f32.mrf.mxu0
    %v6152 = vadd.f32 %v6111, %v6151
    %v6153 = vpop.f32.mrf.mxu0
    %v6154 = vpop.f32.mrf.mxu0
    %6155 = vdwg.mxu0
    %6156 = vmatprep.subr.bf16.mxu0 %v5452
    %6157 = vmatpush1.bf16.msra.mxu0 %v5451
    %6158 = vmatprep.subr.bf16.mxu0 %v5445
    %6159 = vmatpush1.bf16.msra.mxu0 %v5444
    %6160 = vmatprep.subr.bf16.mxu0 %v5438
    %6161 = vmatpush1.bf16.msra.mxu0 %v5437
    %6162 = vmatprep.subr.bf16.mxu0 %v5431
    %6163 = vmatpush1.bf16.msra.mxu0 %v5430
    %6164 = vmatprep.subr.bf16.mxu0 %v5424
    %6165 = vmatpush1.bf16.msra.mxu0 %v5423
    %6166 = vmatprep.subr.bf16.mxu0 %v5417
    %6167 = vmatpush1.bf16.msra.mxu0 %v5416
    %6168 = vmatprep.subr.bf16.mxu0 %v5410
    %6169 = vmatpush1.bf16.msra.mxu0 %v5409
    %6170 = vmatprep.subr.bf16.mxu0 %v5403
    %6171 = vmatpush1.bf16.msra.mxu0 %v5402
    %6172 = vmatprep.subr.bf16.mxu0 %v5508
    %6173 = vmatpush2.bf16.msra.mxu0 %v5507
    %6174 = vmatprep.subr.bf16.mxu0 %v5501
    %6175 = vmatpush2.bf16.msra.mxu0 %v5500
    %6176 = vmatprep.subr.bf16.mxu0 %v5494
    %6177 = vmatpush2.bf16.msra.mxu0 %v5493
    %6178 = vmatprep.subr.bf16.mxu0 %v5487
    %6179 = vmatpush2.bf16.msra.mxu0 %v5486
    %6180 = vmatprep.subr.bf16.mxu0 %v5480
    %6181 = vmatpush2.bf16.msra.mxu0 %v5479
    %6182 = vmatprep.subr.bf16.mxu0 %v5473
    %6183 = vmatpush2.bf16.msra.mxu0 %v5472
    %6184 = vmatprep.subr.bf16.mxu0 %v5466
    %6185 = vmatpush2.bf16.msra.mxu0 %v5465
    %6186 = vmatprep.subr.bf16.mxu0 %v5459
    %6187 = vmatpush2.bf16.msra.mxu0 %v5458
    %6188 = vmatprep.mubr.bf16.mxu0 %v3731
    %6189 = vmatmul.mubr.bf16.gmra.mxu0 %v3730
    %v6190 = vpop.f32.mrf.mxu0
    %v6191 = vadd.f32 %v6150, %v6190
    %v6192 = vpop.f32.mrf.mxu0
    %v6193 = vadd.f32 %v6152, %v6192
    %v6194 = vpop.f32.mrf.mxu0
    %v6195 = vpop.f32.mrf.mxu0
    %6196 = vdwg.mxu0
    %6197 = vmatprep.subr.bf16.mxu0 %v5564
    %6198 = vmatpush1.bf16.msra.mxu0 %v5563
    %6199 = vmatprep.subr.bf16.mxu0 %v5557
    %6200 = vmatpush1.bf16.msra.mxu0 %v5556
    %6201 = vmatprep.subr.bf16.mxu0 %v5550
    %6202 = vmatpush1.bf16.msra.mxu0 %v5549
    %6203 = vmatprep.subr.bf16.mxu0 %v5543
    %6204 = vmatpush1.bf16.msra.mxu0 %v5542
    %6205 = vmatprep.subr.bf16.mxu0 %v5536
    %6206 = vmatpush1.bf16.msra.mxu0 %v5535
    %6207 = vmatprep.subr.bf16.mxu0 %v5529
    %6208 = vmatpush1.bf16.msra.mxu0 %v5528
    %6209 = vmatprep.subr.bf16.mxu0 %v5522
    %6210 = vmatpush1.bf16.msra.mxu0 %v5521
    %6211 = vmatprep.subr.bf16.mxu0 %v5515
    %6212 = vmatpush1.bf16.msra.mxu0 %v5514
    %6213 = vmatprep.subr.bf16.mxu0 %v5620
    %6214 = vmatpush2.bf16.msra.mxu0 %v5619
    %6215 = vmatprep.subr.bf16.mxu0 %v5613
    %6216 = vmatpush2.bf16.msra.mxu0 %v5612
    %6217 = vmatprep.subr.bf16.mxu0 %v5606
    %6218 = vmatpush2.bf16.msra.mxu0 %v5605
    %6219 = vmatprep.subr.bf16.mxu0 %v5599
    %6220 = vmatpush2.bf16.msra.mxu0 %v5598
    %6221 = vmatprep.subr.bf16.mxu0 %v5592
    %6222 = vmatpush2.bf16.msra.mxu0 %v5591
    %6223 = vmatprep.subr.bf16.mxu0 %v5585
    %6224 = vmatpush2.bf16.msra.mxu0 %v5584
    %6225 = vmatprep.subr.bf16.mxu0 %v5578
    %6226 = vmatpush2.bf16.msra.mxu0 %v5577
    %6227 = vmatprep.subr.bf16.mxu0 %v5571
    %6228 = vmatpush2.bf16.msra.mxu0 %v5570
    %6229 = vmatprep.mubr.bf16.mxu0 %v3733
    %6230 = vmatmul.mubr.bf16.gmra.mxu0 %v3732
    %v6231 = vpop.f32.mrf.mxu0
    %v6232 = vadd.f32 %v6191, %v6231
    %v6233 = vpop.f32.mrf.mxu0
    %v6234 = vadd.f32 %v6193, %v6233
    %v6235 = vpop.f32.mrf.mxu0
    %v6236 = vpop.f32.mrf.mxu0
    %6237 = vdwg.mxu0
    %6238 = vmatprep.subr.bf16.mxu0 %v5230
    %6239 = vmatpush1.bf16.msra.mxu0 %v5229
    %6240 = vmatprep.subr.bf16.mxu0 %v5223
    %6241 = vmatpush1.bf16.msra.mxu0 %v5222
    %6242 = vmatprep.subr.bf16.mxu0 %v5216
    %6243 = vmatpush1.bf16.msra.mxu0 %v5215
    %6244 = vmatprep.subr.bf16.mxu0 %v5209
    %6245 = vmatpush1.bf16.msra.mxu0 %v5208
    %6246 = vmatprep.subr.bf16.mxu0 %v5202
    %6247 = vmatpush1.bf16.msra.mxu0 %v5201
    %6248 = vmatprep.subr.bf16.mxu0 %v5195
    %6249 = vmatpush1.bf16.msra.mxu0 %v5194
    %6250 = vmatprep.subr.bf16.mxu0 %v5188
    %6251 = vmatpush1.bf16.msra.mxu0 %v5187
    %6252 = vmatprep.subr.bf16.mxu0 %v5181
    %6253 = vmatpush1.bf16.msra.mxu0 %v5180
    %6254 = vmatprep.subr.bf16.mxu0 %v5286
    %6255 = vmatpush2.bf16.msra.mxu0 %v5285
    %6256 = vmatprep.subr.bf16.mxu0 %v5279
    %6257 = vmatpush2.bf16.msra.mxu0 %v5278
    %6258 = vmatprep.subr.bf16.mxu0 %v5272
    %6259 = vmatpush2.bf16.msra.mxu0 %v5271
    %6260 = vmatprep.subr.bf16.mxu0 %v5265
    %6261 = vmatpush2.bf16.msra.mxu0 %v5264
    %6262 = vmatprep.subr.bf16.mxu0 %v5258
    %6263 = vmatpush2.bf16.msra.mxu0 %v5257
    %6264 = vmatprep.subr.bf16.mxu0 %v5251
    %6265 = vmatpush2.bf16.msra.mxu0 %v5250
    %6266 = vmatprep.subr.bf16.mxu0 %v5244
    %6267 = vmatpush2.bf16.msra.mxu0 %v5243
    %6268 = vmatprep.subr.bf16.mxu0 %v5237
    %6269 = vmatpush2.bf16.msra.mxu0 %v5236
    %6270 = vmatprep.mubr.bf16.mxu0 %v3727
    %6271 = vmatmul.mubr.bf16.gmra.mxu0 %v3726
    %v6272 = vpop.f32.mrf.mxu0
    %v6273 = vadd.f32 %v3746, %v6272
    %v6274 = vpop.f32.mrf.mxu0
    %v6275 = vadd.f32 %v3750, %v6274
    %v6276 = vpop.f32.mrf.mxu0
    %v6277 = vpop.f32.mrf.mxu0
    %6278 = vdwg.mxu0
    %6279 = vmatprep.subr.bf16.mxu0 %v5342
    %6280 = vmatpush1.bf16.msra.mxu0 %v5341
    %6281 = vmatprep.subr.bf16.mxu0 %v5335
    %6282 = vmatpush1.bf16.msra.mxu0 %v5334
    %6283 = vmatprep.subr.bf16.mxu0 %v5328
    %6284 = vmatpush1.bf16.msra.mxu0 %v5327
    %6285 = vmatprep.subr.bf16.mxu0 %v5321
    %6286 = vmatpush1.bf16.msra.mxu0 %v5320
    %6287 = vmatprep.subr.bf16.mxu0 %v5314
    %6288 = vmatpush1.bf16.msra.mxu0 %v5313
    %6289 = vmatprep.subr.bf16.mxu0 %v5307
    %6290 = vmatpush1.bf16.msra.mxu0 %v5306
    %6291 = vmatprep.subr.bf16.mxu0 %v5300
    %6292 = vmatpush1.bf16.msra.mxu0 %v5299
    %6293 = vmatprep.subr.bf16.mxu0 %v5293
    %6294 = vmatpush1.bf16.msra.mxu0 %v5292
    %6295 = vmatprep.subr.bf16.mxu0 %v5398
    %6296 = vmatpush2.bf16.msra.mxu0 %v5397
    %6297 = vmatprep.subr.bf16.mxu0 %v5391
    %6298 = vmatpush2.bf16.msra.mxu0 %v5390
    %6299 = vmatprep.subr.bf16.mxu0 %v5384
    %6300 = vmatpush2.bf16.msra.mxu0 %v5383
    %6301 = vmatprep.subr.bf16.mxu0 %v5377
    %6302 = vmatpush2.bf16.msra.mxu0 %v5376
    %6303 = vmatprep.subr.bf16.mxu0 %v5370
    %6304 = vmatpush2.bf16.msra.mxu0 %v5369
    %6305 = vmatprep.subr.bf16.mxu0 %v5363
    %6306 = vmatpush2.bf16.msra.mxu0 %v5362
    %6307 = vmatprep.subr.bf16.mxu0 %v5356
    %6308 = vmatpush2.bf16.msra.mxu0 %v5355
    %6309 = vmatprep.subr.bf16.mxu0 %v5349
    %6310 = vmatpush2.bf16.msra.mxu0 %v5348
    %6311 = vmatprep.mubr.bf16.mxu0 %v3729
    %6312 = vmatmul.mubr.bf16.gmra.mxu0 %v3728
    %v6313 = vpop.f32.mrf.mxu0
    %v6314 = vadd.f32 %v6273, %v6313
    %v6315 = vpop.f32.mrf.mxu0
    %v6316 = vadd.f32 %v6275, %v6315
    %v6317 = vpop.f32.mrf.mxu0
    %v6318 = vpop.f32.mrf.mxu0
    %6319 = vdwg.mxu0
    %6320 = vmatprep.subr.bf16.mxu0 %v5454
    %6321 = vmatpush1.bf16.msra.mxu0 %v5453
    %6322 = vmatprep.subr.bf16.mxu0 %v5447
    %6323 = vmatpush1.bf16.msra.mxu0 %v5446
    %6324 = vmatprep.subr.bf16.mxu0 %v5440
    %6325 = vmatpush1.bf16.msra.mxu0 %v5439
    %6326 = vmatprep.subr.bf16.mxu0 %v5433
    %6327 = vmatpush1.bf16.msra.mxu0 %v5432
    %6328 = vmatprep.subr.bf16.mxu0 %v5426
    %6329 = vmatpush1.bf16.msra.mxu0 %v5425
    %6330 = vmatprep.subr.bf16.mxu0 %v5419
    %6331 = vmatpush1.bf16.msra.mxu0 %v5418
    %6332 = vmatprep.subr.bf16.mxu0 %v5412
    %6333 = vmatpush1.bf16.msra.mxu0 %v5411
    %6334 = vmatprep.subr.bf16.mxu0 %v5405
    %6335 = vmatpush1.bf16.msra.mxu0 %v5404
    %6336 = vmatprep.subr.bf16.mxu0 %v5510
    %6337 = vmatpush2.bf16.msra.mxu0 %v5509
    %6338 = vmatprep.subr.bf16.mxu0 %v5503
    %6339 = vmatpush2.bf16.msra.mxu0 %v5502
    %6340 = vmatprep.subr.bf16.mxu0 %v5496
    %6341 = vmatpush2.bf16.msra.mxu0 %v5495
    %6342 = vmatprep.subr.bf16.mxu0 %v5489
    %6343 = vmatpush2.bf16.msra.mxu0 %v5488
    %6344 = vmatprep.subr.bf16.mxu0 %v5482
    %6345 = vmatpush2.bf16.msra.mxu0 %v5481
    %6346 = vmatprep.subr.bf16.mxu0 %v5475
    %6347 = vmatpush2.bf16.msra.mxu0 %v5474
    %6348 = vmatprep.subr.bf16.mxu0 %v5468
    %6349 = vmatpush2.bf16.msra.mxu0 %v5467
    %6350 = vmatprep.subr.bf16.mxu0 %v5461
    %6351 = vmatpush2.bf16.msra.mxu0 %v5460
    %6352 = vmatprep.mubr.bf16.mxu0 %v3731
    %6353 = vmatmul.mubr.bf16.gmra.mxu0 %v3730
    %v6354 = vpop.f32.mrf.mxu0
    %v6355 = vadd.f32 %v6314, %v6354
    %v6356 = vpop.f32.mrf.mxu0
    %v6357 = vadd.f32 %v6316, %v6356
    %v6358 = vpop.f32.mrf.mxu0
    %v6359 = vpop.f32.mrf.mxu0
    %6360 = vdwg.mxu0
    %6361 = vmatprep.subr.bf16.mxu0 %v5566
    %6362 = vmatpush1.bf16.msra.mxu0 %v5565
    %6363 = vmatprep.subr.bf16.mxu0 %v5559
    %6364 = vmatpush1.bf16.msra.mxu0 %v5558
    %6365 = vmatprep.subr.bf16.mxu0 %v5552
    %6366 = vmatpush1.bf16.msra.mxu0 %v5551
    %6367 = vmatprep.subr.bf16.mxu0 %v5545
    %6368 = vmatpush1.bf16.msra.mxu0 %v5544
    %6369 = vmatprep.subr.bf16.mxu0 %v5538
    %6370 = vmatpush1.bf16.msra.mxu0 %v5537
    %6371 = vmatprep.subr.bf16.mxu0 %v5531
    %6372 = vmatpush1.bf16.msra.mxu0 %v5530
    %6373 = vmatprep.subr.bf16.mxu0 %v5524
    %6374 = vmatpush1.bf16.msra.mxu0 %v5523
    %6375 = vmatprep.subr.bf16.mxu0 %v5517
    %6376 = vmatpush1.bf16.msra.mxu0 %v5516
    %6377 = vmatprep.subr.bf16.mxu0 %v5622
    %6378 = vmatpush2.bf16.msra.mxu0 %v5621
    %6379 = vmatprep.subr.bf16.mxu0 %v5615
    %6380 = vmatpush2.bf16.msra.mxu0 %v5614
    %6381 = vmatprep.subr.bf16.mxu0 %v5608
    %6382 = vmatpush2.bf16.msra.mxu0 %v5607
    %6383 = vmatprep.subr.bf16.mxu0 %v5601
    %6384 = vmatpush2.bf16.msra.mxu0 %v5600
    %6385 = vmatprep.subr.bf16.mxu0 %v5594
    %6386 = vmatpush2.bf16.msra.mxu0 %v5593
    %6387 = vmatprep.subr.bf16.mxu0 %v5587
    %6388 = vmatpush2.bf16.msra.mxu0 %v5586
    %6389 = vmatprep.subr.bf16.mxu0 %v5580
    %6390 = vmatpush2.bf16.msra.mxu0 %v5579
    %6391 = vmatprep.subr.bf16.mxu0 %v5573
    %6392 = vmatpush2.bf16.msra.mxu0 %v5572
    %6393 = vmatprep.mubr.bf16.mxu0 %v3733
    %6394 = vmatmul.mubr.bf16.gmra.mxu0 %v3732
    %v6395 = vpop.f32.mrf.mxu0
    %v6396 = vadd.f32 %v6355, %v6395
    %v6397 = vpop.f32.mrf.mxu0
    %v6398 = vadd.f32 %v6357, %v6397
    %v6399 = vpop.f32.mrf.mxu0
    %v6400 = vpop.f32.mrf.mxu0
    %6401 = vdwg.mxu0
    %6402 = vmatprep.subr.bf16.mxu0 %v5232
    %6403 = vmatpush1.bf16.msra.mxu0 %v5231
    %6404 = vmatprep.subr.bf16.mxu0 %v5225
    %6405 = vmatpush1.bf16.msra.mxu0 %v5224
    %6406 = vmatprep.subr.bf16.mxu0 %v5218
    %6407 = vmatpush1.bf16.msra.mxu0 %v5217
    %6408 = vmatprep.subr.bf16.mxu0 %v5211
    %6409 = vmatpush1.bf16.msra.mxu0 %v5210
    %6410 = vmatprep.subr.bf16.mxu0 %v5204
    %6411 = vmatpush1.bf16.msra.mxu0 %v5203
    %6412 = vmatprep.subr.bf16.mxu0 %v5197
    %6413 = vmatpush1.bf16.msra.mxu0 %v5196
    %6414 = vmatprep.subr.bf16.mxu0 %v5190
    %6415 = vmatpush1.bf16.msra.mxu0 %v5189
    %6416 = vmatprep.subr.bf16.mxu0 %v5183
    %6417 = vmatpush1.bf16.msra.mxu0 %v5182
    %6418 = vmatprep.subr.bf16.mxu0 %v5288
    %6419 = vmatpush2.bf16.msra.mxu0 %v5287
    %6420 = vmatprep.subr.bf16.mxu0 %v5281
    %6421 = vmatpush2.bf16.msra.mxu0 %v5280
    %6422 = vmatprep.subr.bf16.mxu0 %v5274
    %6423 = vmatpush2.bf16.msra.mxu0 %v5273
    %6424 = vmatprep.subr.bf16.mxu0 %v5267
    %6425 = vmatpush2.bf16.msra.mxu0 %v5266
    %6426 = vmatprep.subr.bf16.mxu0 %v5260
    %6427 = vmatpush2.bf16.msra.mxu0 %v5259
    %6428 = vmatprep.subr.bf16.mxu0 %v5253
    %6429 = vmatpush2.bf16.msra.mxu0 %v5252
    %6430 = vmatprep.subr.bf16.mxu0 %v5246
    %6431 = vmatpush2.bf16.msra.mxu0 %v5245
    %6432 = vmatprep.subr.bf16.mxu0 %v5239
    %6433 = vmatpush2.bf16.msra.mxu0 %v5238
    %6434 = vmatprep.mubr.bf16.mxu0 %v3727
    %6435 = vmatmul.mubr.bf16.gmra.mxu0 %v3726
    %v6436 = vpop.f32.mrf.mxu0
    %v6437 = vadd.f32 %v3754, %v6436
    %v6438 = vpop.f32.mrf.mxu0
    %v6439 = vadd.f32 %v3758, %v6438
    %v6440 = vpop.f32.mrf.mxu0
    %v6441 = vpop.f32.mrf.mxu0
    %6442 = vdwg.mxu0
    %6443 = vmatprep.subr.bf16.mxu0 %v5344
    %6444 = vmatpush1.bf16.msra.mxu0 %v5343
    %6445 = vmatprep.subr.bf16.mxu0 %v5337
    %6446 = vmatpush1.bf16.msra.mxu0 %v5336
    %6447 = vmatprep.subr.bf16.mxu0 %v5330
    %6448 = vmatpush1.bf16.msra.mxu0 %v5329
    %6449 = vmatprep.subr.bf16.mxu0 %v5323
    %6450 = vmatpush1.bf16.msra.mxu0 %v5322
    %6451 = vmatprep.subr.bf16.mxu0 %v5316
    %6452 = vmatpush1.bf16.msra.mxu0 %v5315
    %6453 = vmatprep.subr.bf16.mxu0 %v5309
    %6454 = vmatpush1.bf16.msra.mxu0 %v5308
    %6455 = vmatprep.subr.bf16.mxu0 %v5302
    %6456 = vmatpush1.bf16.msra.mxu0 %v5301
    %6457 = vmatprep.subr.bf16.mxu0 %v5295
    %6458 = vmatpush1.bf16.msra.mxu0 %v5294
    %6459 = vmatprep.subr.bf16.mxu0 %v5400
    %6460 = vmatpush2.bf16.msra.mxu0 %v5399
    %6461 = vmatprep.subr.bf16.mxu0 %v5393
    %6462 = vmatpush2.bf16.msra.mxu0 %v5392
    %6463 = vmatprep.subr.bf16.mxu0 %v5386
    %6464 = vmatpush2.bf16.msra.mxu0 %v5385
    %6465 = vmatprep.subr.bf16.mxu0 %v5379
    %6466 = vmatpush2.bf16.msra.mxu0 %v5378
    %6467 = vmatprep.subr.bf16.mxu0 %v5372
    %6468 = vmatpush2.bf16.msra.mxu0 %v5371
    %6469 = vmatprep.subr.bf16.mxu0 %v5365
    %6470 = vmatpush2.bf16.msra.mxu0 %v5364
    %6471 = vmatprep.subr.bf16.mxu0 %v5358
    %6472 = vmatpush2.bf16.msra.mxu0 %v5357
    %6473 = vmatprep.subr.bf16.mxu0 %v5351
    %6474 = vmatpush2.bf16.msra.mxu0 %v5350
    %6475 = vmatprep.mubr.bf16.mxu0 %v3729
    %6476 = vmatmul.mubr.bf16.gmra.mxu0 %v3728
    %v6477 = vpop.f32.mrf.mxu0
    %v6478 = vadd.f32 %v6437, %v6477
    %v6479 = vpop.f32.mrf.mxu0
    %v6480 = vadd.f32 %v6439, %v6479
    %v6481 = vpop.f32.mrf.mxu0
    %v6482 = vpop.f32.mrf.mxu0
    %6483 = vdwg.mxu0
    %6484 = vmatprep.subr.bf16.mxu0 %v5456
    %6485 = vmatpush1.bf16.msra.mxu0 %v5455
    %6486 = vmatprep.subr.bf16.mxu0 %v5449
    %6487 = vmatpush1.bf16.msra.mxu0 %v5448
    %6488 = vmatprep.subr.bf16.mxu0 %v5442
    %6489 = vmatpush1.bf16.msra.mxu0 %v5441
    %6490 = vmatprep.subr.bf16.mxu0 %v5435
    %6491 = vmatpush1.bf16.msra.mxu0 %v5434
    %6492 = vmatprep.subr.bf16.mxu0 %v5428
    %6493 = vmatpush1.bf16.msra.mxu0 %v5427
    %6494 = vmatprep.subr.bf16.mxu0 %v5421
    %6495 = vmatpush1.bf16.msra.mxu0 %v5420
    %6496 = vmatprep.subr.bf16.mxu0 %v5414
    %6497 = vmatpush1.bf16.msra.mxu0 %v5413
    %6498 = vmatprep.subr.bf16.mxu0 %v5407
    %6499 = vmatpush1.bf16.msra.mxu0 %v5406
    %6500 = vmatprep.subr.bf16.mxu0 %v5512
    %6501 = vmatpush2.bf16.msra.mxu0 %v5511
    %6502 = vmatprep.subr.bf16.mxu0 %v5505
    %6503 = vmatpush2.bf16.msra.mxu0 %v5504
    %6504 = vmatprep.subr.bf16.mxu0 %v5498
    %6505 = vmatpush2.bf16.msra.mxu0 %v5497
    %6506 = vmatprep.subr.bf16.mxu0 %v5491
    %6507 = vmatpush2.bf16.msra.mxu0 %v5490
    %6508 = vmatprep.subr.bf16.mxu0 %v5484
    %6509 = vmatpush2.bf16.msra.mxu0 %v5483
    %6510 = vmatprep.subr.bf16.mxu0 %v5477
    %6511 = vmatpush2.bf16.msra.mxu0 %v5476
    %6512 = vmatprep.subr.bf16.mxu0 %v5470
    %6513 = vmatpush2.bf16.msra.mxu0 %v5469
    %6514 = vmatprep.subr.bf16.mxu0 %v5463
    %6515 = vmatpush2.bf16.msra.mxu0 %v5462
    %6516 = vmatprep.mubr.bf16.mxu0 %v3731
    %6517 = vmatmul.mubr.bf16.gmra.mxu0 %v3730
    %v6518 = vpop.f32.mrf.mxu0
    %v6519 = vadd.f32 %v6478, %v6518
    %v6520 = vpop.f32.mrf.mxu0
    %v6521 = vadd.f32 %v6480, %v6520
    %v6522 = vpop.f32.mrf.mxu0
    %v6523 = vpop.f32.mrf.mxu0
    %6524 = vdwg.mxu0
    %6525 = vmatprep.subr.bf16.mxu0 %v5568
    %6526 = vmatpush1.bf16.msra.mxu0 %v5567
    %6527 = vmatprep.subr.bf16.mxu0 %v5561
    %6528 = vmatpush1.bf16.msra.mxu0 %v5560
    %6529 = vmatprep.subr.bf16.mxu0 %v5554
    %6530 = vmatpush1.bf16.msra.mxu0 %v5553
    %6531 = vmatprep.subr.bf16.mxu0 %v5547
    %6532 = vmatpush1.bf16.msra.mxu0 %v5546
    %6533 = vmatprep.subr.bf16.mxu0 %v5540
    %6534 = vmatpush1.bf16.msra.mxu0 %v5539
    %6535 = vmatprep.subr.bf16.mxu0 %v5533
    %6536 = vmatpush1.bf16.msra.mxu0 %v5532
    %6537 = vmatprep.subr.bf16.mxu0 %v5526
    %6538 = vmatpush1.bf16.msra.mxu0 %v5525
    %6539 = vmatprep.subr.bf16.mxu0 %v5519
    %6540 = vmatpush1.bf16.msra.mxu0 %v5518
    %6541 = vmatprep.subr.bf16.mxu0 %v5624
    %6542 = vmatpush2.bf16.msra.mxu0 %v5623
    %6543 = vmatprep.subr.bf16.mxu0 %v5617
    %6544 = vmatpush2.bf16.msra.mxu0 %v5616
    %6545 = vmatprep.subr.bf16.mxu0 %v5610
    %6546 = vmatpush2.bf16.msra.mxu0 %v5609
    %6547 = vmatprep.subr.bf16.mxu0 %v5603
    %6548 = vmatpush2.bf16.msra.mxu0 %v5602
    %6549 = vmatprep.subr.bf16.mxu0 %v5596
    %6550 = vmatpush2.bf16.msra.mxu0 %v5595
    %6551 = vmatprep.subr.bf16.mxu0 %v5589
    %6552 = vmatpush2.bf16.msra.mxu0 %v5588
    %6553 = vmatprep.subr.bf16.mxu0 %v5582
    %6554 = vmatpush2.bf16.msra.mxu0 %v5581
    %6555 = vmatprep.subr.bf16.mxu0 %v5575
    %6556 = vmatpush2.bf16.msra.mxu0 %v5574
    %6557 = vmatprep.mubr.bf16.mxu0 %v3733
    %6558 = vmatmul.mubr.bf16.gmra.mxu0 %v3732
    %v6559 = vpop.f32.mrf.mxu0
    %v6560 = vadd.f32 %v6519, %v6559
    %v6561 = vpop.f32.mrf.mxu0
    %v6562 = vadd.f32 %v6521, %v6561
    %v6563 = vpop.f32.mrf.mxu0
    %v6564 = vpop.f32.mrf.mxu0
    %6565 = vdwg.mxu0
    %6566 = vmatprep.subr.bf16.mxu0 0
    %6567 = vmatpush1.bf16.msra.mxu0 %v5233
    %6568 = vmatprep.subr.bf16.mxu0 0
    %6569 = vmatpush1.bf16.msra.mxu0 %v5226
    %6570 = vmatprep.subr.bf16.mxu0 0
    %6571 = vmatpush1.bf16.msra.mxu0 %v5219
    %6572 = vmatprep.subr.bf16.mxu0 0
    %6573 = vmatpush1.bf16.msra.mxu0 %v5212
    %6574 = vmatprep.subr.bf16.mxu0 0
    %6575 = vmatpush1.bf16.msra.mxu0 %v5205
    %6576 = vmatprep.subr.bf16.mxu0 0
    %6577 = vmatpush1.bf16.msra.mxu0 %v5198
    %6578 = vmatprep.subr.bf16.mxu0 0
    %6579 = vmatpush1.bf16.msra.mxu0 %v5191
    %6580 = vmatprep.subr.bf16.mxu0 0
    %6581 = vmatpush1.bf16.msra.mxu0 %v5184
    %6582 = vmatprep.subr.bf16.mxu0 0
    %6583 = vmatpush2.bf16.msra.mxu0 %v5289
    %6584 = vmatprep.subr.bf16.mxu0 0
    %6585 = vmatpush2.bf16.msra.mxu0 %v5282
    %6586 = vmatprep.subr.bf16.mxu0 0
    %6587 = vmatpush2.bf16.msra.mxu0 %v5275
    %6588 = vmatprep.subr.bf16.mxu0 0
    %6589 = vmatpush2.bf16.msra.mxu0 %v5268
    %6590 = vmatprep.subr.bf16.mxu0 0
    %6591 = vmatpush2.bf16.msra.mxu0 %v5261
    %6592 = vmatprep.subr.bf16.mxu0 0
    %6593 = vmatpush2.bf16.msra.mxu0 %v5254
    %6594 = vmatprep.subr.bf16.mxu0 0
    %6595 = vmatpush2.bf16.msra.mxu0 %v5247
    %6596 = vmatprep.subr.bf16.mxu0 0
    %6597 = vmatpush2.bf16.msra.mxu0 %v5240
    %6598 = vmatprep.mubr.bf16.mxu0 %v3727
    %6599 = vmatmul.mubr.bf16.gmra.mxu0 %v3726
    %v6600 = vpop.f32.mrf.mxu0
    %v6601 = vadd.f32 %v3762, %v6600
    %v6602 = vpop.f32.mrf.mxu0
    %v6603 = vpop.f32.mrf.mxu0
    %v6604 = vpop.f32.mrf.mxu0
    %6605 = vdwg.mxu0
    %6606 = vmatprep.subr.bf16.mxu0 0
    %6607 = vmatpush1.bf16.msra.mxu0 %v5345
    %6608 = vmatprep.subr.bf16.mxu0 0
    %6609 = vmatpush1.bf16.msra.mxu0 %v5338
    %6610 = vmatprep.subr.bf16.mxu0 0
    %6611 = vmatpush1.bf16.msra.mxu0 %v5331
    %6612 = vmatprep.subr.bf16.mxu0 0
    %6613 = vmatpush1.bf16.msra.mxu0 %v5324
    %6614 = vmatprep.subr.bf16.mxu0 0
    %6615 = vmatpush1.bf16.msra.mxu0 %v5317
    %6616 = vmatprep.subr.bf16.mxu0 0
    %6617 = vmatpush1.bf16.msra.mxu0 %v5310
    %6618 = vmatprep.subr.bf16.mxu0 0
    %6619 = vmatpush1.bf16.msra.mxu0 %v5303
    %6620 = vmatprep.subr.bf16.mxu0 0
    %6621 = vmatpush1.bf16.msra.mxu0 %v5296
    %6622 = vmatprep.subr.bf16.mxu0 0
    %6623 = vmatpush2.bf16.msra.mxu0 %v5401
    %6624 = vmatprep.subr.bf16.mxu0 0
    %6625 = vmatpush2.bf16.msra.mxu0 %v5394
    %6626 = vmatprep.subr.bf16.mxu0 0
    %6627 = vmatpush2.bf16.msra.mxu0 %v5387
    %6628 = vmatprep.subr.bf16.mxu0 0
    %6629 = vmatpush2.bf16.msra.mxu0 %v5380
    %6630 = vmatprep.subr.bf16.mxu0 0
    %6631 = vmatpush2.bf16.msra.mxu0 %v5373
    %6632 = vmatprep.subr.bf16.mxu0 0
    %6633 = vmatpush2.bf16.msra.mxu0 %v5366
    %6634 = vmatprep.subr.bf16.mxu0 0
    %6635 = vmatpush2.bf16.msra.mxu0 %v5359
    %6636 = vmatprep.subr.bf16.mxu0 0
    %6637 = vmatpush2.bf16.msra.mxu0 %v5352
    %6638 = vmatprep.mubr.bf16.mxu0 %v3729
    %6639 = vmatmul.mubr.bf16.gmra.mxu0 %v3728
    %v6640 = vpop.f32.mrf.mxu0
    %v6641 = vadd.f32 %v6601, %v6640
    %v6642 = vpop.f32.mrf.mxu0
    %v6643 = vpop.f32.mrf.mxu0
    %v6644 = vpop.f32.mrf.mxu0
    %6645 = vdwg.mxu0
    %6646 = vmatprep.subr.bf16.mxu0 0
    %6647 = vmatpush1.bf16.msra.mxu0 %v5457
    %6648 = vmatprep.subr.bf16.mxu0 0
    %6649 = vmatpush1.bf16.msra.mxu0 %v5450
    %6650 = vmatprep.subr.bf16.mxu0 0
    %6651 = vmatpush1.bf16.msra.mxu0 %v5443
    %6652 = vmatprep.subr.bf16.mxu0 0
    %6653 = vmatpush1.bf16.msra.mxu0 %v5436
    %6654 = vmatprep.subr.bf16.mxu0 0
    %6655 = vmatpush1.bf16.msra.mxu0 %v5429
    %6656 = vmatprep.subr.bf16.mxu0 0
    %6657 = vmatpush1.bf16.msra.mxu0 %v5422
    %6658 = vmatprep.subr.bf16.mxu0 0
    %6659 = vmatpush1.bf16.msra.mxu0 %v5415
    %6660 = vmatprep.subr.bf16.mxu0 0
    %6661 = vmatpush1.bf16.msra.mxu0 %v5408
    %6662 = vmatprep.subr.bf16.mxu0 0
    %6663 = vmatpush2.bf16.msra.mxu0 %v5513
    %6664 = vmatprep.subr.bf16.mxu0 0
    %6665 = vmatpush2.bf16.msra.mxu0 %v5506
    %6666 = vmatprep.subr.bf16.mxu0 0
    %6667 = vmatpush2.bf16.msra.mxu0 %v5499
    %6668 = vmatprep.subr.bf16.mxu0 0
    %6669 = vmatpush2.bf16.msra.mxu0 %v5492
    %6670 = vmatprep.subr.bf16.mxu0 0
    %6671 = vmatpush2.bf16.msra.mxu0 %v5485
    %6672 = vmatprep.subr.bf16.mxu0 0
    %6673 = vmatpush2.bf16.msra.mxu0 %v5478
    %6674 = vmatprep.subr.bf16.mxu0 0
    %6675 = vmatpush2.bf16.msra.mxu0 %v5471
    %6676 = vmatprep.subr.bf16.mxu0 0
    %6677 = vmatpush2.bf16.msra.mxu0 %v5464
    %6678 = vmatprep.mubr.bf16.mxu0 %v3731
    %6679 = vmatmul.mubr.bf16.gmra.mxu0 %v3730
    %v6680 = vpop.f32.mrf.mxu0
    %v6681 = vadd.f32 %v6641, %v6680
    %v6682 = vpop.f32.mrf.mxu0
    %v6683 = vpop.f32.mrf.mxu0
    %v6684 = vpop.f32.mrf.mxu0
    %6685 = vdwg.mxu0
    %6686 = vmatprep.subr.bf16.mxu0 0
    %6687 = vmatpush1.bf16.msra.mxu0 %v5569
    %6688 = vmatprep.subr.bf16.mxu0 0
    %6689 = vmatpush1.bf16.msra.mxu0 %v5562
    %6690 = vmatprep.subr.bf16.mxu0 0
    %6691 = vmatpush1.bf16.msra.mxu0 %v5555
    %6692 = vmatprep.subr.bf16.mxu0 0
    %6693 = vmatpush1.bf16.msra.mxu0 %v5548
    %6694 = vmatprep.subr.bf16.mxu0 0
    %6695 = vmatpush1.bf16.msra.mxu0 %v5541
    %6696 = vmatprep.subr.bf16.mxu0 0
    %6697 = vmatpush1.bf16.msra.mxu0 %v5534
    %6698 = vmatprep.subr.bf16.mxu0 0
    %6699 = vmatpush1.bf16.msra.mxu0 %v5527
    %6700 = vmatprep.subr.bf16.mxu0 0
    %6701 = vmatpush1.bf16.msra.mxu0 %v5520
    %6702 = vmatprep.subr.bf16.mxu0 0
    %6703 = vmatpush2.bf16.msra.mxu0 %v5625
    %6704 = vmatprep.subr.bf16.mxu0 0
    %6705 = vmatpush2.bf16.msra.mxu0 %v5618
    %6706 = vmatprep.subr.bf16.mxu0 0
    %6707 = vmatpush2.bf16.msra.mxu0 %v5611
    %6708 = vmatprep.subr.bf16.mxu0 0
    %6709 = vmatpush2.bf16.msra.mxu0 %v5604
    %6710 = vmatprep.subr.bf16.mxu0 0
    %6711 = vmatpush2.bf16.msra.mxu0 %v5597
    %6712 = vmatprep.subr.bf16.mxu0 0
    %6713 = vmatpush2.bf16.msra.mxu0 %v5590
    %6714 = vmatprep.subr.bf16.mxu0 0
    %6715 = vmatpush2.bf16.msra.mxu0 %v5583
    %6716 = vmatprep.subr.bf16.mxu0 0
    %6717 = vmatpush2.bf16.msra.mxu0 %v5576
    %6718 = vmatprep.mubr.bf16.mxu0 %v3733
    %6719 = vmatmul.mubr.bf16.gmra.mxu0 %v3732
    %v6720 = vpop.f32.mrf.mxu0
    %v6721 = vadd.f32 %v6681, %v6720
    %v6722 = vpop.f32.mrf.mxu0
    %v6723 = vpop.f32.mrf.mxu0
    %v6724 = vpop.f32.mrf.mxu0
    %6725 = vdwg.mxu0
    %v6726 = vtanh.pop %v6232
    %v6727 = vtanh.pop %v6234
    %v6728 = vtanh.pop %v6396
    %v6729 = vtanh.pop %v6398
    %v6730 = vtanh.pop %v6560
    %v6731 = vtanh.pop %v6562
    %v6732 = vtanh.pop %v6721
    %6733 = vst [vmem:[%s7] sm:$0xff] %v6726
    %6734 = vst [vmem:[%s7 + $0x8] sm:$0xff] %v6727
    %6735 = vst [vmem:[%s7 + $0x10] sm:$0xff] %v6728
    %6736 = vst [vmem:[%s7 + $0x18] sm:$0xff] %v6729
    %6737 = vst [vmem:[%s7 + $0x20] sm:$0xff] %v6730
    %6738 = vst [vmem:[%s7 + $0x28] sm:$0xff] %v6731
    %6739 = vst [vmem:[%s7 + $0x30] sm:$0xff] %v6732
    // Predicated region
    $region46: #{generator_forward.1} parent=1 // pred_check
      _
    $region47: #{generator_forward.1} parent=1 // pred_check_branch
      %6741 = sbr.rel (0) target = $region49
    $region48: #{generator_forward.1} parent=1 // pred_region
      _
    $region49: #{generator_forward.1} parent=1 // pred_fallthru
      _
    // Predicated region
    $region50: #{generator_forward.1} parent=1 // pred_check
      _
    $region51: #{generator_forward.1} parent=1 // pred_check_branch
      %6743 = sbr.rel (0) target = $region53
    $region52: #{generator_forward.1} parent=1 // pred_region
      _
    $region53: #{generator_forward.1} parent=1 // pred_fallthru
      _
    %6744 = vsyncpa [#allocation6], 1
    %6745 = vsyncpa [#allocation8], 1
    %6746 = vsyncpa [#allocation11], 1
  %6747 = vsyncmov [#allocation4]
  %s6748 = vpop.sfrf %6747
  %p6749 = scmp.eq.s32.totalorder %s6748, 0
  %p6750 = pneg %p6749
  %6752 = shalt.err (%p6750)
  %s6753 = scalar_lea.sflag [#allocation4], 1
  %6754 = vsyncmov %s6753
  %s6755 = vpop.sfrf %6754
  %p6756 = scmp.eq.s32.totalorder %s6755, 0
  %p6757 = pneg %p6756
  %6759 = shalt.err (%p6757)

</llo_original>
